<compile_context>
chip_gen: v5e
topology: v5e:2x2
jax: 0.10.0
libtpu: 0.0.40
codegen_flags: <defaults>
</compile_context>

<pallas_src>
import functools

import numpy as np
import jax
import jax.numpy as jnp
from jax.experimental import pallas as pl
from jax.experimental.pallas import tpu as pltpu


def _round_up(n, m):
    return ((n + m - 1) // m) * m


# -----------------------------------------------------------------------------
# Fused kernel: whole SmallNet forward for a batch tile of `bt` images.
# -----------------------------------------------------------------------------
def _smallnet_kernel(x_ref, m1_ref, b1_ref, m2_ref, b2_ref,
                     w1_ref, bl1_ref, w2_ref, bl2_ref,
                     out_ref, s0, s1, s2, s3, s4, *, bt):
    f32, bf16 = jnp.float32, jnp.bfloat16
    R1 = bt * 32          # conv1 rows: 32-row slab per image (28 valid)
    R2 = bt * 16          # pool1/conv2 rows: 16-row slab per image (14 valid)
    R3 = bt * 8           # pool2 rows: 8-row slab per image (7 valid)

    # ---- stage the host-pre-padded bf16 images; refresh the zero tail -------
    # (borders are rewritten every step: cheap at batch scale, and safe under
    #  megacore 'parallel' splitting where each core has its own scratch)
    s0[0:R1, :] = x_ref[...].reshape(R1, 32).astype(f32)
    s0[R1:R1 + 8, :] = jnp.zeros((8, 32), f32)

    # ---- conv1: 5 banded MXU matmuls, out lane = 4*w + c_out ----------------
    acc1 = jnp.zeros((R1, 128), f32)
    for kh in range(5):
        acc1 = acc1 + jnp.dot(s0[kh:kh + R1, :].astype(bf16), m1_ref[kh],
                              preferred_element_type=f32)
    s1[...] = jnp.maximum(acc1 + b1_ref[...], 0.0)            # bias + ReLU

    # ---- 2x2 max-pool #1: rows via strided sublane reads, cols via XLU roll -
    t1 = jnp.maximum(s1[pl.ds(0, R2, 2), :], s1[pl.ds(1, R2, 2), :])  # (R2,128)
    # shift=124 == shift by -4 lanes: pairs lane 8w'+c with 8w'+4+c; the
    # wrapped-around lanes only land in junk lanes zeroed out by m2/w1eff.
    z1 = jnp.maximum(t1, pltpu.roll(t1, shift=124, axis=1))
    # zero the 2 junk row-slots per image -> they double as conv2 row padding
    rid = jax.lax.broadcasted_iota(jnp.int32, (R2, 128), 0)
    z1 = jnp.where((rid & 15) < 14, z1, 0.0)

    s2[0:2, :] = jnp.zeros((2, 128), f32)                     # top border
    s2[2:2 + R2, :] = z1                                      # pooled rows
    s2[2 + R2:R2 + 8, :] = jnp.zeros((6, 128), f32)           # tail border

    # ---- conv2: 5 banded matmuls over the pooled lane layout ----------------
    acc2 = jnp.zeros((R2, 128), f32)
    for kh in range(5):
        acc2 = acc2 + jnp.dot(s2[kh:kh + R2, :].astype(bf16), m2_ref[kh],
                              preferred_element_type=f32)
    s3[...] = jnp.maximum(acc2 + b2_ref[...], 0.0)            # bias + ReLU

    # ---- 2x2 max-pool #2 -----------------------------------------------------
    t2 = jnp.maximum(s3[pl.ds(0, R3, 2), :], s3[pl.ds(1, R3, 2), :])  # (R3,128)
    s4[...] = jnp.maximum(t2, pltpu.roll(t2, shift=120, axis=1))      # -8 lanes

    # ---- lin1 (NCHW flatten folded into w1_ref) + lin2, fused in VMEM -------
    # TODO(synk): conv K could be deepened (5x K=32 -> 1x K=160) for v6e/v7x's
    # 256-deep MXU; left as 5 bands to keep the proven banded lowering.
    acc3 = jnp.zeros((bt, 1024), f32)
    for h3 in range(7):
        acc3 = acc3 + jnp.dot(s4[pl.ds(h3, bt, 8), :].astype(bf16), w1_ref[h3],
                              preferred_element_type=f32)
    hidden = acc3 + bl1_ref[...]                  # (bt,1024); torch has no ReLU
    out_ref[...] = jnp.dot(hidden.astype(bf16), w2_ref[...],
                           preferred_element_type=f32) + bl2_ref[...]  # (bt,128)


# -----------------------------------------------------------------------------
# One-time parameter folding (torch layout -> 128-lane kernel layout).
# -----------------------------------------------------------------------------
def prepare_params(params):
    w1 = jnp.asarray(params["conv1_w"], jnp.float32)      # (4, 1, 5, 5)
    b1 = jnp.asarray(params["conv1_b"], jnp.float32)      # (4,)
    w2 = jnp.asarray(params["conv2_w"], jnp.float32)      # (8, 4, 5, 5)
    b2 = jnp.asarray(params["conv2_b"], jnp.float32)      # (8,)
    l1w = jnp.asarray(params["lin1_w"], jnp.float32)      # (1024, 392)
    l1b = jnp.asarray(params["lin1_b"], jnp.float32)      # (1024,)
    l2w = jnp.asarray(params["lin2_w"], jnp.float32)      # (10, 1024)
    l2b = jnp.asarray(params["lin2_b"], jnp.float32)      # (10,)

    # conv1 banded matrices: M1[kh, w + kw, 4*w + co] = w1[co, 0, kh, kw];
    # lanes 112..127 stay zero (lane-dense 128 layout).
    kh, kw, co, w = np.meshgrid(np.arange(5), np.arange(5), np.arange(4),
                                np.arange(28), indexing="ij")
    m1 = (jnp.zeros((5, 32, 128), jnp.float32)
          .at[kh.ravel(), (w + kw).ravel(), (4 * w + co).ravel()]
          .set(w1[co.ravel(), 0, kh.ravel(), kw.ravel()]))
    b1v = jnp.zeros((1, 128), jnp.float32).at[0, :112].set(jnp.tile(b1, 28))

    # conv2 banded matrices over the pooled lane layout: input channel ci of
    # pooled column w' sits at lane 8*w'+ci (ci<4); lanes 8*w'+4..7 and >=112
    # hold pooling junk and get all-zero rows.  Output lane = 8*w + co.  Width
    # taps outside [0,14) are omitted == zero padding; height padding comes
    # from the zeroed junk/border rows of the s2 scratch.
    kh, kw, ci, co, w = np.meshgrid(np.arange(5), np.arange(5), np.arange(4),
                                    np.arange(8), np.arange(14), indexing="ij")
    win = w + kw - 2
    ok = (win >= 0) & (win < 14)
    m2 = (jnp.zeros((5, 128, 128), jnp.float32)
          .at[kh[ok], (8 * win + ci)[ok], (8 * w + co)[ok]]
          .set(w2[co[ok], ci[ok], kh[ok], kw[ok]]))
    b2v = jnp.zeros((1, 128), jnp.float32).at[0, :112].set(jnp.tile(b2, 14))

    # lin1: fold torch's NCHW flatten (index 49*co + 7*h + w) plus the pooled
    # lane layout (channel co of column w'' at lane 16*w'' + co) into the
    # weight, one (128,1024) matrix per pooled row-slot h''.
    h3, w3, co = np.meshgrid(np.arange(7), np.arange(7), np.arange(8),
                             indexing="ij")
    flat = (49 * co + 7 * h3 + w3).ravel()
    w1eff = (jnp.zeros((7, 128, 1024), jnp.float32)
             .at[h3.ravel(), (16 * w3 + co).ravel(), :]
             .set(l1w[:, flat].T))

    # lin2: pre-transpose and pad the 10 logits out to a full 128-lane block.
    w2eff = jnp.zeros((1024, 128), jnp.float32).at[:, :10].set(l2w.T)
    bl2 = jnp.zeros((1, 128), jnp.float32).at[0, :10].set(l2b)

    return {
        "m1": m1.astype(jnp.bfloat16),
        "b1": b1v,
        "m2": m2.astype(jnp.bfloat16),
        "b2": b2v,
        "w1": w1eff.astype(jnp.bfloat16),
        "bl1": l1b.reshape(1, 1024),
        "w2": w2eff.astype(jnp.bfloat16),
        "bl2": bl2,
    }


# -----------------------------------------------------------------------------
# Forward wrapper: one pallas_call, grid over batch tiles of `batch_tile`.
# -----------------------------------------------------------------------------
def smallnet_forward(x_nchw, prep, *, batch_tile=64):
    """x_nchw: (B, 1, 28, 28) float32 -> logits (B, 10) float32."""
    B = x_nchw.shape[0]
    bt = _round_up(min(batch_tile, _round_up(B, 8)), 8)
    Bpad = _round_up(B, bt)

    # Host-side pre-pad (conv1 'same' padding) + bf16 cast: no per-image
    # zero-fill or unaligned sub-rect write inside the kernel; half the DMA.
    xp = jnp.zeros((Bpad, 32, 32), jnp.bfloat16)
    xp = xp.at[:B, 2:30, 2:30].set(x_nchw[:, 0, :, :].astype(jnp.bfloat16))

    flops = 2 * Bpad * (32 * 32 * 128 * 5      # conv1 bands (incl. junk rows)
                        + 16 * 128 * 128 * 5   # conv2 bands
                        + 128 * 1024 * 7       # lin1
                        + 1024 * 128)          # lin2
    bytes_accessed = int(xp.size * 2 + Bpad * 128 * 4
                         + sum(int(np.prod(v.shape)) * v.dtype.itemsize
                               for v in prep.values()))

    out = pl.pallas_call(
        functools.partial(_smallnet_kernel, bt=bt),
        out_shape=jax.ShapeDtypeStruct((Bpad, 128), jnp.float32),
        grid=(Bpad // bt,),
        in_specs=[
            pl.BlockSpec((bt, 32, 32), lambda g: (g, 0, 0)),   # images (bf16)
            pl.BlockSpec((5, 32, 128), lambda g: (0, 0, 0)),   # conv1 bands
            pl.BlockSpec((1, 128), lambda g: (0, 0)),          # conv1 bias
            pl.BlockSpec((5, 128, 128), lambda g: (0, 0, 0)),  # conv2 bands
            pl.BlockSpec((1, 128), lambda g: (0, 0)),          # conv2 bias
            pl.BlockSpec((7, 128, 1024), lambda g: (0, 0, 0)),  # lin1 (folded)
            pl.BlockSpec((1, 1024), lambda g: (0, 0)),         # lin1 bias
            pl.BlockSpec((1024, 128), lambda g: (0, 0)),       # lin2 (padded)
            pl.BlockSpec((1, 128), lambda g: (0, 0)),          # lin2 bias
        ],
        out_specs=pl.BlockSpec((bt, 128), lambda g: (g, 0)),
        scratch_shapes=[
            pltpu.VMEM((bt * 32 + 8, 32), jnp.float32),   # padded conv1 input
            pltpu.VMEM((bt * 32, 128), jnp.float32),      # conv1 ReLU act
            pltpu.VMEM((bt * 16 + 8, 128), jnp.float32),  # padded pooled1
            pltpu.VMEM((bt * 16, 128), jnp.float32),      # conv2 ReLU act
            pltpu.VMEM((bt * 8, 128), jnp.float32),       # pooled2
        ],
        compiler_params=pltpu.CompilerParams(
            dimension_semantics=("parallel",),
            vmem_limit_bytes=32 * 1024 * 1024),
        cost_estimate=pl.CostEstimate(flops=flops, transcendentals=0,
                                      bytes_accessed=bytes_accessed),
    )(xp, prep["m1"], prep["b1"], prep["m2"], prep["b2"],
      prep["w1"], prep["bl1"], prep["w2"], prep["bl2"])
    return out[:B, :10]


# -----------------------------------------------------------------------------
# Pure-JAX reference (f32) for a tolerance-based correctness check.
# -----------------------------------------------------------------------------
def reference_forward(x_nchw, params):
    dn = ("NCHW", "OIHW", "NCHW")
    y = jax.lax.conv_general_dilated(x_nchw, params["conv1_w"], (1, 1),
                                     ((2, 2), (2, 2)), dimension_numbers=dn)
    y = jnp.maximum(y + params["conv1_b"][None, :, None, None], 0.0)
    b, c, h, w = y.shape
    y = y.reshape(b, c, h // 2, 2, w // 2, 2).max(axis=(3, 5))
    y = jax.lax.conv_general_dilated(y, params["conv2_w"], (1, 1),
                                     ((2, 2), (2, 2)), dimension_numbers=dn)
    y = jnp.maximum(y + params["conv2_b"][None, :, None, None], 0.0)
    b, c, h, w = y.shape
    y = y.reshape(b, c, h // 2, 2, w // 2, 2).max(axis=(3, 5))
    y = y.reshape(b, 7 * 7 * 8)                      # torch NCHW flatten order
    y = y @ params["lin1_w"].T + params["lin1_b"]
    y = y @ params["lin2_w"].T + params["lin2_b"]
    return y


# -----------------------------------------------------------------------------
# Deterministic parameter init (PyTorch-default-style uniform(-1/sqrt(fan_in)))
# -----------------------------------------------------------------------------
def init_params(key):
    def uniform(k, shape, fan_in):
        bound = 1.0 / jnp.sqrt(jnp.float32(fan_in))
        return jax.random.uniform(k, shape, jnp.float32, -bound, bound)

    ks = jax.random.split(key, 8)
    return {
        "conv1_w": uniform(ks[0], (4, 1, 5, 5), 1 * 5 * 5),
        "conv1_b": uniform(ks[1], (4,), 1 * 5 * 5),
        "conv2_w": uniform(ks[2], (8, 4, 5, 5), 4 * 5 * 5),
        "conv2_b": uniform(ks[3], (8,), 4 * 5 * 5),
        "lin1_w": uniform(ks[4], (1024, 392), 392),
        "lin1_b": uniform(ks[5], (1024,), 392),
        "lin2_w": uniform(ks[6], (10, 1024), 1024),
        "lin2_b": uniform(ks[7], (10,), 1024),
    }


if __name__ == "__main__":
    key = jax.random.PRNGKey(0)
    pkey, xkey = jax.random.split(key)
    params = init_params(pkey)
    prep = prepare_params(params)      # one-time weight folding, not per call

    # The conv/pool stack implies 28x28 spatial input (MNIST); batch kept small
    # for the demo (it is padded up to one 8-image batch tile internally).
    x = jax.random.normal(xkey, (2, 1, 28, 28), jnp.float32)   # NCHW

    fwd = jax.jit(smallnet_forward)
    out = jax.block_until_ready(fwd(x, prep))
    assert out.shape == (2, 10), out.shape
    assert out.dtype == jnp.float32

    # Tolerance-based check vs. the f32 reference (kernel uses bf16 matmuls).
    ref = jax.block_until_ready(jax.jit(reference_forward)(x, params))
    np.testing.assert_allclose(np.asarray(out), np.asarray(ref),
                               rtol=5e-2, atol=6e-2)
    print("KERNEL_OK")
</pallas_src>

<mosaic_0001>
module attributes {stable_mosaic.version = 11 : i64} {
  func.func @_smallnet_kernel(%arg0: i32, %arg1: memref<8x32x32xbf16, #tpu.memory_space<vmem>>, %arg2: memref<5x32x128xbf16, #tpu.memory_space<vmem>>, %arg3: memref<1x128xf32, #tpu.memory_space<vmem>>, %arg4: memref<5x128x128xbf16, #tpu.memory_space<vmem>>, %arg5: memref<1x128xf32, #tpu.memory_space<vmem>>, %arg6: memref<7x128x1024xbf16, #tpu.memory_space<vmem>>, %arg7: memref<1x1024xf32, #tpu.memory_space<vmem>>, %arg8: memref<1024x128xbf16, #tpu.memory_space<vmem>>, %arg9: memref<1x128xf32, #tpu.memory_space<vmem>>, %arg10: memref<8x128xf32, #tpu.memory_space<vmem>>, %arg11: memref<264x32xf32, #tpu.memory_space<vmem>>, %arg12: memref<256x128xf32, #tpu.memory_space<vmem>>, %arg13: memref<136x128xf32, #tpu.memory_space<vmem>>, %arg14: memref<128x128xf32, #tpu.memory_space<vmem>>, %arg15: memref<64x128xf32, #tpu.memory_space<vmem>>) attributes {dimension_semantics = [#tpu.dimension_semantics<parallel>], iteration_bounds = array<i64: 1>, scalar_prefetch = 0 : i64, scratch_operands = 5 : i64, tpu.core_type = #tpu.core_type<tc>, window_params = [{transform_indices = @transform_0, window_bounds = array<i64: 8, 32, 32>}, {pipeline_mode = #tpu.pipeline_mode<synchronous>, transform_indices = @transform_1, window_bounds = array<i64: 5, 32, 128>}, {pipeline_mode = #tpu.pipeline_mode<synchronous>, transform_indices = @transform_2, window_bounds = array<i64: 1, 128>}, {pipeline_mode = #tpu.pipeline_mode<synchronous>, transform_indices = @transform_3, window_bounds = array<i64: 5, 128, 128>}, {pipeline_mode = #tpu.pipeline_mode<synchronous>, transform_indices = @transform_4, window_bounds = array<i64: 1, 128>}, {pipeline_mode = #tpu.pipeline_mode<synchronous>, transform_indices = @transform_5, window_bounds = array<i64: 7, 128, 1024>}, {pipeline_mode = #tpu.pipeline_mode<synchronous>, transform_indices = @transform_6, window_bounds = array<i64: 1, 1024>}, {pipeline_mode = #tpu.pipeline_mode<synchronous>, transform_indices = @transform_7, window_bounds = array<i64: 1024, 128>}, {pipeline_mode = #tpu.pipeline_mode<synchronous>, transform_indices = @transform_8, window_bounds = array<i64: 1, 128>}, {transform_indices = @transform_9, window_bounds = array<i64: 8, 128>}]} {
    %c0 = arith.constant 0 : index
    %c0_0 = arith.constant 0 : index
    %c0_1 = arith.constant 0 : index
    %0 = vector.load %arg1[%c0, %c0_0, %c0_1] : memref<8x32x32xbf16, #tpu.memory_space<vmem>>, vector<8x32x32xbf16>
    %1 = vector.shape_cast %0 : vector<8x32x32xbf16> to vector<256x32xbf16>
    %2 = arith.extf %1 : vector<256x32xbf16> to vector<256x32xf32>
    %c0_2 = arith.constant 0 : index
    %c0_3 = arith.constant 0 : index
    %3 = vector.load %arg11[%c0_2, %c0_3] : memref<264x32xf32, #tpu.memory_space<vmem>>, vector<256x32xf32>
    tpu.vector_store %arg11[%c0_2, %c0_3], %2 {strides = array<i32>} : memref<264x32xf32, #tpu.memory_space<vmem>>, vector<256x32xf32>,
    %cst = arith.constant 0.000000e+00 : f32
    %4 = vector.broadcast %cst : f32 to vector<8x32xf32>
    %c256 = arith.constant 256 : index
    %c0_4 = arith.constant 0 : index
    %5 = vector.load %arg11[%c256, %c0_4] : memref<264x32xf32, #tpu.memory_space<vmem>>, vector<8x32xf32>
    tpu.vector_store %arg11[%c256, %c0_4], %4 {strides = array<i32>} : memref<264x32xf32, #tpu.memory_space<vmem>>, vector<8x32xf32>,
    %cst_5 = arith.constant 0.000000e+00 : f32
    %6 = vector.broadcast %cst_5 : f32 to vector<256x128xf32>
    %c0_6 = arith.constant 0 : index
    %c0_7 = arith.constant 0 : index
    %7 = vector.load %arg11[%c0_6, %c0_7] : memref<264x32xf32, #tpu.memory_space<vmem>>, vector<256x32xf32>
    %8 = arith.truncf %7 : vector<256x32xf32> to vector<256x32xbf16>
    %c0_8 = arith.constant 0 : index
    %c0_9 = arith.constant 0 : index
    %c0_10 = arith.constant 0 : index
    %9 = vector.load %arg2[%c0_8, %c0_9, %c0_10] : memref<5x32x128xbf16, #tpu.memory_space<vmem>>, vector<1x32x128xbf16>
    %10 = vector.shape_cast %9 : vector<1x32x128xbf16> to vector<32x128xbf16>
    %cst_11 = arith.constant dense<0.000000e+00> : vector<256x128xf32>
    %11 = tpu.matmul %8, %10, %cst_11 {dimension_numbers = #tpu.dot_dimension_numbers<[1], [0], [0], [1], [0, 0, 1, 1], [], []>} : vector<256x32xbf16>, vector<32x128xbf16>, vector<256x128xf32> -> vector<256x128xf32>
    %12 = arith.addf %6, %11 : vector<256x128xf32>
    %c1 = arith.constant 1 : index
    %c0_12 = arith.constant 0 : index
    %13 = vector.load %arg11[%c1, %c0_12] : memref<264x32xf32, #tpu.memory_space<vmem>>, vector<256x32xf32>
    %14 = arith.truncf %13 : vector<256x32xf32> to vector<256x32xbf16>
    %c1_13 = arith.constant 1 : index
    %c0_14 = arith.constant 0 : index
    %c0_15 = arith.constant 0 : index
    %15 = vector.load %arg2[%c1_13, %c0_14, %c0_15] : memref<5x32x128xbf16, #tpu.memory_space<vmem>>, vector<1x32x128xbf16>
    %16 = vector.shape_cast %15 : vector<1x32x128xbf16> to vector<32x128xbf16>
    %cst_16 = arith.constant dense<0.000000e+00> : vector<256x128xf32>
    %17 = tpu.matmul %14, %16, %cst_16 {dimension_numbers = #tpu.dot_dimension_numbers<[1], [0], [0], [1], [0, 0, 1, 1], [], []>} : vector<256x32xbf16>, vector<32x128xbf16>, vector<256x128xf32> -> vector<256x128xf32>
    %18 = arith.addf %12, %17 : vector<256x128xf32>
    %c2 = arith.constant 2 : index
    %c0_17 = arith.constant 0 : index
    %19 = vector.load %arg11[%c2, %c0_17] : memref<264x32xf32, #tpu.memory_space<vmem>>, vector<256x32xf32>
    %20 = arith.truncf %19 : vector<256x32xf32> to vector<256x32xbf16>
    %c2_18 = arith.constant 2 : index
    %c0_19 = arith.constant 0 : index
    %c0_20 = arith.constant 0 : index
    %21 = vector.load %arg2[%c2_18, %c0_19, %c0_20] : memref<5x32x128xbf16, #tpu.memory_space<vmem>>, vector<1x32x128xbf16>
    %22 = vector.shape_cast %21 : vector<1x32x128xbf16> to vector<32x128xbf16>
    %cst_21 = arith.constant dense<0.000000e+00> : vector<256x128xf32>
    %23 = tpu.matmul %20, %22, %cst_21 {dimension_numbers = #tpu.dot_dimension_numbers<[1], [0], [0], [1], [0, 0, 1, 1], [], []>} : vector<256x32xbf16>, vector<32x128xbf16>, vector<256x128xf32> -> vector<256x128xf32>
    %24 = arith.addf %18, %23 : vector<256x128xf32>
    %c3 = arith.constant 3 : index
    %c0_22 = arith.constant 0 : index
    %25 = vector.load %arg11[%c3, %c0_22] : memref<264x32xf32, #tpu.memory_space<vmem>>, vector<256x32xf32>
    %26 = arith.truncf %25 : vector<256x32xf32> to vector<256x32xbf16>
    %c3_23 = arith.constant 3 : index
    %c0_24 = arith.constant 0 : index
    %c0_25 = arith.constant 0 : index
    %27 = vector.load %arg2[%c3_23, %c0_24, %c0_25] : memref<5x32x128xbf16, #tpu.memory_space<vmem>>, vector<1x32x128xbf16>
    %28 = vector.shape_cast %27 : vector<1x32x128xbf16> to vector<32x128xbf16>
    %cst_26 = arith.constant dense<0.000000e+00> : vector<256x128xf32>
    %29 = tpu.matmul %26, %28, %cst_26 {dimension_numbers = #tpu.dot_dimension_numbers<[1], [0], [0], [1], [0, 0, 1, 1], [], []>} : vector<256x32xbf16>, vector<32x128xbf16>, vector<256x128xf32> -> vector<256x128xf32>
    %30 = arith.addf %24, %29 : vector<256x128xf32>
    %c4 = arith.constant 4 : index
    %c0_27 = arith.constant 0 : index
    %31 = vector.load %arg11[%c4, %c0_27] : memref<264x32xf32, #tpu.memory_space<vmem>>, vector<256x32xf32>
    %32 = arith.truncf %31 : vector<256x32xf32> to vector<256x32xbf16>
    %c4_28 = arith.constant 4 : index
    %c0_29 = arith.constant 0 : index
    %c0_30 = arith.constant 0 : index
    %33 = vector.load %arg2[%c4_28, %c0_29, %c0_30] : memref<5x32x128xbf16, #tpu.memory_space<vmem>>, vector<1x32x128xbf16>
    %34 = vector.shape_cast %33 : vector<1x32x128xbf16> to vector<32x128xbf16>
    %cst_31 = arith.constant dense<0.000000e+00> : vector<256x128xf32>
    %35 = tpu.matmul %32, %34, %cst_31 {dimension_numbers = #tpu.dot_dimension_numbers<[1], [0], [0], [1], [0, 0, 1, 1], [], []>} : vector<256x32xbf16>, vector<32x128xbf16>, vector<256x128xf32> -> vector<256x128xf32>
    %36 = arith.addf %30, %35 : vector<256x128xf32>
    %c0_32 = arith.constant 0 : index
    %c0_33 = arith.constant 0 : index
    %37 = vector.load %arg3[%c0_32, %c0_33] : memref<1x128xf32, #tpu.memory_space<vmem>>, vector<1x128xf32>
    %38 = vector.broadcast %37 : vector<1x128xf32> to vector<256x128xf32>
    %39 = arith.addf %36, %38 : vector<256x128xf32>
    %cst_34 = arith.constant 0.000000e+00 : f32
    %40 = vector.broadcast %cst_34 : f32 to vector<256x128xf32>
    %41 = arith.maximumf %39, %40 : vector<256x128xf32>
    %c0_35 = arith.constant 0 : index
    %c0_36 = arith.constant 0 : index
    %42 = vector.load %arg12[%c0_35, %c0_36] : memref<256x128xf32, #tpu.memory_space<vmem>>, vector<256x128xf32>
    tpu.vector_store %arg12[%c0_35, %c0_36], %41 {strides = array<i32>} : memref<256x128xf32, #tpu.memory_space<vmem>>, vector<256x128xf32>,
    %c0_37 = arith.constant 0 : index
    %c0_38 = arith.constant 0 : index
    %43 = tpu.strided_load %arg12[%c0_37, %c0_38] {strides = array<i32: 2, 1>} : memref<256x128xf32, #tpu.memory_space<vmem>>, vector<128x128xf32>
    %c1_39 = arith.constant 1 : index
    %c0_40 = arith.constant 0 : index
    %44 = tpu.strided_load %arg12[%c1_39, %c0_40] {strides = array<i32: 2, 1>} : memref<256x128xf32, #tpu.memory_space<vmem>>, vector<128x128xf32>
    %45 = arith.maximumf %43, %44 : vector<128x128xf32>
    %c124_i32 = arith.constant 124 : i32
    %46 = tpu.dynamic_rotate %45 by %c124_i32 dim 1 : vector<128x128xf32>, i32 -> vector<128x128xf32>
    %47 = arith.maximumf %45, %46 : vector<128x128xf32>
    %48 = tpu.iota {dimensions = array<i32: 0>} : vector<128x128xi32>
    %c15_i32 = arith.constant 15 : i32
    %49 = vector.broadcast %c15_i32 : i32 to vector<128x128xi32>
    %50 = arith.andi %48, %49 : vector<128x128xi32>
    %c14_i32 = arith.constant 14 : i32
    %51 = vector.broadcast %c14_i32 : i32 to vector<128x128xi32>
    %52 = arith.cmpi slt, %50, %51 : vector<128x128xi32>
    %cst_41 = arith.constant 0.000000e+00 : f32
    %53 = vector.broadcast %cst_41 : f32 to vector<128x128xf32>
    %54 = arith.select %52, %47, %53 : vector<128x128xi1>, vector<128x128xf32>
    %cst_42 = arith.constant 0.000000e+00 : f32
    %55 = vector.broadcast %cst_42 : f32 to vector<2x128xf32>
    %c0_43 = arith.constant 0 : index
    %c0_44 = arith.constant 0 : index
    %56 = vector.load %arg13[%c0_43, %c0_44] : memref<136x128xf32, #tpu.memory_space<vmem>>, vector<2x128xf32>
    tpu.vector_store %arg13[%c0_43, %c0_44], %55 {strides = array<i32>} : memref<136x128xf32, #tpu.memory_space<vmem>>, vector<2x128xf32>,
    %c2_45 = arith.constant 2 : index
    %c0_46 = arith.constant 0 : index
    %57 = vector.load %arg13[%c2_45, %c0_46] : memref<136x128xf32, #tpu.memory_space<vmem>>, vector<128x128xf32>
    tpu.vector_store %arg13[%c2_45, %c0_46], %54 {strides = array<i32>} : memref<136x128xf32, #tpu.memory_space<vmem>>, vector<128x128xf32>,
    %cst_47 = arith.constant 0.000000e+00 : f32
    %58 = vector.broadcast %cst_47 : f32 to vector<6x128xf32>
    %c130 = arith.constant 130 : index
    %c0_48 = arith.constant 0 : index
    %59 = vector.load %arg13[%c130, %c0_48] : memref<136x128xf32, #tpu.memory_space<vmem>>, vector<6x128xf32>
    tpu.vector_store %arg13[%c130, %c0_48], %58 {strides = array<i32>} : memref<136x128xf32, #tpu.memory_space<vmem>>, vector<6x128xf32>,
    %cst_49 = arith.constant 0.000000e+00 : f32
    %60 = vector.broadcast %cst_49 : f32 to vector<128x128xf32>
    %c0_50 = arith.constant 0 : index
    %c0_51 = arith.constant 0 : index
    %61 = vector.load %arg13[%c0_50, %c0_51] : memref<136x128xf32, #tpu.memory_space<vmem>>, vector<128x128xf32>
    %62 = arith.truncf %61 : vector<128x128xf32> to vector<128x128xbf16>
    %c0_52 = arith.constant 0 : index
    %c0_53 = arith.constant 0 : index
    %c0_54 = arith.constant 0 : index
    %63 = vector.load %arg4[%c0_52, %c0_53, %c0_54] : memref<5x128x128xbf16, #tpu.memory_space<vmem>>, vector<1x128x128xbf16>
    %64 = vector.shape_cast %63 : vector<1x128x128xbf16> to vector<128x128xbf16>
    %cst_55 = arith.constant dense<0.000000e+00> : vector<128x128xf32>
    %65 = tpu.matmul %62, %64, %cst_55 {dimension_numbers = #tpu.dot_dimension_numbers<[1], [0], [0], [1], [0, 0, 1, 1], [], []>} : vector<128x128xbf16>, vector<128x128xbf16>, vector<128x128xf32> -> vector<128x128xf32>
    %66 = arith.addf %60, %65 : vector<128x128xf32>
    %c1_56 = arith.constant 1 : index
    %c0_57 = arith.constant 0 : index
    %67 = vector.load %arg13[%c1_56, %c0_57] : memref<136x128xf32, #tpu.memory_space<vmem>>, vector<128x128xf32>
    %68 = arith.truncf %67 : vector<128x128xf32> to vector<128x128xbf16>
    %c1_58 = arith.constant 1 : index
    %c0_59 = arith.constant 0 : index
    %c0_60 = arith.constant 0 : index
    %69 = vector.load %arg4[%c1_58, %c0_59, %c0_60] : memref<5x128x128xbf16, #tpu.memory_space<vmem>>, vector<1x128x128xbf16>
    %70 = vector.shape_cast %69 : vector<1x128x128xbf16> to vector<128x128xbf16>
    %cst_61 = arith.constant dense<0.000000e+00> : vector<128x128xf32>
    %71 = tpu.matmul %68, %70, %cst_61 {dimension_numbers = #tpu.dot_dimension_numbers<[1], [0], [0], [1], [0, 0, 1, 1], [], []>} : vector<128x128xbf16>, vector<128x128xbf16>, vector<128x128xf32> -> vector<128x128xf32>
    %72 = arith.addf %66, %71 : vector<128x128xf32>
    %c2_62 = arith.constant 2 : index
    %c0_63 = arith.constant 0 : index
    %73 = vector.load %arg13[%c2_62, %c0_63] : memref<136x128xf32, #tpu.memory_space<vmem>>, vector<128x128xf32>
    %74 = arith.truncf %73 : vector<128x128xf32> to vector<128x128xbf16>
    %c2_64 = arith.constant 2 : index
    %c0_65 = arith.constant 0 : index
    %c0_66 = arith.constant 0 : index
    %75 = vector.load %arg4[%c2_64, %c0_65, %c0_66] : memref<5x128x128xbf16, #tpu.memory_space<vmem>>, vector<1x128x128xbf16>
    %76 = vector.shape_cast %75 : vector<1x128x128xbf16> to vector<128x128xbf16>
    %cst_67 = arith.constant dense<0.000000e+00> : vector<128x128xf32>
    %77 = tpu.matmul %74, %76, %cst_67 {dimension_numbers = #tpu.dot_dimension_numbers<[1], [0], [0], [1], [0, 0, 1, 1], [], []>} : vector<128x128xbf16>, vector<128x128xbf16>, vector<128x128xf32> -> vector<128x128xf32>
    %78 = arith.addf %72, %77 : vector<128x128xf32>
    %c3_68 = arith.constant 3 : index
    %c0_69 = arith.constant 0 : index
    %79 = vector.load %arg13[%c3_68, %c0_69] : memref<136x128xf32, #tpu.memory_space<vmem>>, vector<128x128xf32>
    %80 = arith.truncf %79 : vector<128x128xf32> to vector<128x128xbf16>
    %c3_70 = arith.constant 3 : index
    %c0_71 = arith.constant 0 : index
    %c0_72 = arith.constant 0 : index
    %81 = vector.load %arg4[%c3_70, %c0_71, %c0_72] : memref<5x128x128xbf16, #tpu.memory_space<vmem>>, vector<1x128x128xbf16>
    %82 = vector.shape_cast %81 : vector<1x128x128xbf16> to vector<128x128xbf16>
    %cst_73 = arith.constant dense<0.000000e+00> : vector<128x128xf32>
    %83 = tpu.matmul %80, %82, %cst_73 {dimension_numbers = #tpu.dot_dimension_numbers<[1], [0], [0], [1], [0, 0, 1, 1], [], []>} : vector<128x128xbf16>, vector<128x128xbf16>, vector<128x128xf32> -> vector<128x128xf32>
    %84 = arith.addf %78, %83 : vector<128x128xf32>
    %c4_74 = arith.constant 4 : index
    %c0_75 = arith.constant 0 : index
    %85 = vector.load %arg13[%c4_74, %c0_75] : memref<136x128xf32, #tpu.memory_space<vmem>>, vector<128x128xf32>
    %86 = arith.truncf %85 : vector<128x128xf32> to vector<128x128xbf16>
    %c4_76 = arith.constant 4 : index
    %c0_77 = arith.constant 0 : index
    %c0_78 = arith.constant 0 : index
    %87 = vector.load %arg4[%c4_76, %c0_77, %c0_78] : memref<5x128x128xbf16, #tpu.memory_space<vmem>>, vector<1x128x128xbf16>
    %88 = vector.shape_cast %87 : vector<1x128x128xbf16> to vector<128x128xbf16>
    %cst_79 = arith.constant dense<0.000000e+00> : vector<128x128xf32>
    %89 = tpu.matmul %86, %88, %cst_79 {dimension_numbers = #tpu.dot_dimension_numbers<[1], [0], [0], [1], [0, 0, 1, 1], [], []>} : vector<128x128xbf16>, vector<128x128xbf16>, vector<128x128xf32> -> vector<128x128xf32>
    %90 = arith.addf %84, %89 : vector<128x128xf32>
    %c0_80 = arith.constant 0 : index
    %c0_81 = arith.constant 0 : index
    %91 = vector.load %arg5[%c0_80, %c0_81] : memref<1x128xf32, #tpu.memory_space<vmem>>, vector<1x128xf32>
    %92 = vector.broadcast %91 : vector<1x128xf32> to vector<128x128xf32>
    %93 = arith.addf %90, %92 : vector<128x128xf32>
    %cst_82 = arith.constant 0.000000e+00 : f32
    %94 = vector.broadcast %cst_82 : f32 to vector<128x128xf32>
    %95 = arith.maximumf %93, %94 : vector<128x128xf32>
    %c0_83 = arith.constant 0 : index
    %c0_84 = arith.constant 0 : index
    %96 = vector.load %arg14[%c0_83, %c0_84] : memref<128x128xf32, #tpu.memory_space<vmem>>, vector<128x128xf32>
    tpu.vector_store %arg14[%c0_83, %c0_84], %95 {strides = array<i32>} : memref<128x128xf32, #tpu.memory_space<vmem>>, vector<128x128xf32>,
    %c0_85 = arith.constant 0 : index
    %c0_86 = arith.constant 0 : index
    %97 = tpu.strided_load %arg14[%c0_85, %c0_86] {strides = array<i32: 2, 1>} : memref<128x128xf32, #tpu.memory_space<vmem>>, vector<64x128xf32>
    %c1_87 = arith.constant 1 : index
    %c0_88 = arith.constant 0 : index
    %98 = tpu.strided_load %arg14[%c1_87, %c0_88] {strides = array<i32: 2, 1>} : memref<128x128xf32, #tpu.memory_space<vmem>>, vector<64x128xf32>
    %99 = arith.maximumf %97, %98 : vector<64x128xf32>
    %c120_i32 = arith.constant 120 : i32
    %100 = tpu.dynamic_rotate %99 by %c120_i32 dim 1 : vector<64x128xf32>, i32 -> vector<64x128xf32>
    %101 = arith.maximumf %99, %100 : vector<64x128xf32>
    %c0_89 = arith.constant 0 : index
    %c0_90 = arith.constant 0 : index
    %102 = vector.load %arg15[%c0_89, %c0_90] : memref<64x128xf32, #tpu.memory_space<vmem>>, vector<64x128xf32>
    tpu.vector_store %arg15[%c0_89, %c0_90], %101 {strides = array<i32>} : memref<64x128xf32, #tpu.memory_space<vmem>>, vector<64x128xf32>,
    %cst_91 = arith.constant 0.000000e+00 : f32
    %103 = vector.broadcast %cst_91 : f32 to vector<8x1024xf32>
    %c0_92 = arith.constant 0 : index
    %c0_93 = arith.constant 0 : index
    %104 = tpu.strided_load %arg15[%c0_92, %c0_93] {strides = array<i32: 8, 1>} : memref<64x128xf32, #tpu.memory_space<vmem>>, vector<8x128xf32>
    %105 = arith.truncf %104 : vector<8x128xf32> to vector<8x128xbf16>
    %c0_94 = arith.constant 0 : index
    %c0_95 = arith.constant 0 : index
    %c0_96 = arith.constant 0 : index
    %106 = vector.load %arg6[%c0_94, %c0_95, %c0_96] : memref<7x128x1024xbf16, #tpu.memory_space<vmem>>, vector<1x128x1024xbf16>
    %107 = vector.shape_cast %106 : vector<1x128x1024xbf16> to vector<128x1024xbf16>
    %cst_97 = arith.constant dense<0.000000e+00> : vector<8x1024xf32>
    %108 = tpu.matmul %105, %107, %cst_97 {dimension_numbers = #tpu.dot_dimension_numbers<[1], [0], [0], [1], [0, 0, 1, 1], [], []>} : vector<8x128xbf16>, vector<128x1024xbf16>, vector<8x1024xf32> -> vector<8x1024xf32>
    %109 = arith.addf %103, %108 : vector<8x1024xf32>
    %c1_98 = arith.constant 1 : index
    %c0_99 = arith.constant 0 : index
    %110 = tpu.strided_load %arg15[%c1_98, %c0_99] {strides = array<i32: 8, 1>} : memref<64x128xf32, #tpu.memory_space<vmem>>, vector<8x128xf32>
    %111 = arith.truncf %110 : vector<8x128xf32> to vector<8x128xbf16>
    %c1_100 = arith.constant 1 : index
    %c0_101 = arith.constant 0 : index
    %c0_102 = arith.constant 0 : index
    %112 = vector.load %arg6[%c1_100, %c0_101, %c0_102] : memref<7x128x1024xbf16, #tpu.memory_space<vmem>>, vector<1x128x1024xbf16>
    %113 = vector.shape_cast %112 : vector<1x128x1024xbf16> to vector<128x1024xbf16>
    %cst_103 = arith.constant dense<0.000000e+00> : vector<8x1024xf32>
    %114 = tpu.matmul %111, %113, %cst_103 {dimension_numbers = #tpu.dot_dimension_numbers<[1], [0], [0], [1], [0, 0, 1, 1], [], []>} : vector<8x128xbf16>, vector<128x1024xbf16>, vector<8x1024xf32> -> vector<8x1024xf32>
    %115 = arith.addf %109, %114 : vector<8x1024xf32>
    %c2_104 = arith.constant 2 : index
    %c0_105 = arith.constant 0 : index
    %116 = tpu.strided_load %arg15[%c2_104, %c0_105] {strides = array<i32: 8, 1>} : memref<64x128xf32, #tpu.memory_space<vmem>>, vector<8x128xf32>
    %117 = arith.truncf %116 : vector<8x128xf32> to vector<8x128xbf16>
    %c2_106 = arith.constant 2 : index
    %c0_107 = arith.constant 0 : index
    %c0_108 = arith.constant 0 : index
    %118 = vector.load %arg6[%c2_106, %c0_107, %c0_108] : memref<7x128x1024xbf16, #tpu.memory_space<vmem>>, vector<1x128x1024xbf16>
    %119 = vector.shape_cast %118 : vector<1x128x1024xbf16> to vector<128x1024xbf16>
    %cst_109 = arith.constant dense<0.000000e+00> : vector<8x1024xf32>
    %120 = tpu.matmul %117, %119, %cst_109 {dimension_numbers = #tpu.dot_dimension_numbers<[1], [0], [0], [1], [0, 0, 1, 1], [], []>} : vector<8x128xbf16>, vector<128x1024xbf16>, vector<8x1024xf32> -> vector<8x1024xf32>
    %121 = arith.addf %115, %120 : vector<8x1024xf32>
    %c3_110 = arith.constant 3 : index
    %c0_111 = arith.constant 0 : index
    %122 = tpu.strided_load %arg15[%c3_110, %c0_111] {strides = array<i32: 8, 1>} : memref<64x128xf32, #tpu.memory_space<vmem>>, vector<8x128xf32>
    %123 = arith.truncf %122 : vector<8x128xf32> to vector<8x128xbf16>
    %c3_112 = arith.constant 3 : index
    %c0_113 = arith.constant 0 : index
    %c0_114 = arith.constant 0 : index
    %124 = vector.load %arg6[%c3_112, %c0_113, %c0_114] : memref<7x128x1024xbf16, #tpu.memory_space<vmem>>, vector<1x128x1024xbf16>
    %125 = vector.shape_cast %124 : vector<1x128x1024xbf16> to vector<128x1024xbf16>
    %cst_115 = arith.constant dense<0.000000e+00> : vector<8x1024xf32>
    %126 = tpu.matmul %123, %125, %cst_115 {dimension_numbers = #tpu.dot_dimension_numbers<[1], [0], [0], [1], [0, 0, 1, 1], [], []>} : vector<8x128xbf16>, vector<128x1024xbf16>, vector<8x1024xf32> -> vector<8x1024xf32>
    %127 = arith.addf %121, %126 : vector<8x1024xf32>
    %c4_116 = arith.constant 4 : index
    %c0_117 = arith.constant 0 : index
    %128 = tpu.strided_load %arg15[%c4_116, %c0_117] {strides = array<i32: 8, 1>} : memref<64x128xf32, #tpu.memory_space<vmem>>, vector<8x128xf32>
    %129 = arith.truncf %128 : vector<8x128xf32> to vector<8x128xbf16>
    %c4_118 = arith.constant 4 : index
    %c0_119 = arith.constant 0 : index
    %c0_120 = arith.constant 0 : index
    %130 = vector.load %arg6[%c4_118, %c0_119, %c0_120] : memref<7x128x1024xbf16, #tpu.memory_space<vmem>>, vector<1x128x1024xbf16>
    %131 = vector.shape_cast %130 : vector<1x128x1024xbf16> to vector<128x1024xbf16>
    %cst_121 = arith.constant dense<0.000000e+00> : vector<8x1024xf32>
    %132 = tpu.matmul %129, %131, %cst_121 {dimension_numbers = #tpu.dot_dimension_numbers<[1], [0], [0], [1], [0, 0, 1, 1], [], []>} : vector<8x128xbf16>, vector<128x1024xbf16>, vector<8x1024xf32> -> vector<8x1024xf32>
    %133 = arith.addf %127, %132 : vector<8x1024xf32>
    %c5 = arith.constant 5 : index
    %c0_122 = arith.constant 0 : index
    %134 = tpu.strided_load %arg15[%c5, %c0_122] {strides = array<i32: 8, 1>} : memref<64x128xf32, #tpu.memory_space<vmem>>, vector<8x128xf32>
    %135 = arith.truncf %134 : vector<8x128xf32> to vector<8x128xbf16>
    %c5_123 = arith.constant 5 : index
    %c0_124 = arith.constant 0 : index
    %c0_125 = arith.constant 0 : index
    %136 = vector.load %arg6[%c5_123, %c0_124, %c0_125] : memref<7x128x1024xbf16, #tpu.memory_space<vmem>>, vector<1x128x1024xbf16>
    %137 = vector.shape_cast %136 : vector<1x128x1024xbf16> to vector<128x1024xbf16>
    %cst_126 = arith.constant dense<0.000000e+00> : vector<8x1024xf32>
    %138 = tpu.matmul %135, %137, %cst_126 {dimension_numbers = #tpu.dot_dimension_numbers<[1], [0], [0], [1], [0, 0, 1, 1], [], []>} : vector<8x128xbf16>, vector<128x1024xbf16>, vector<8x1024xf32> -> vector<8x1024xf32>
    %139 = arith.addf %133, %138 : vector<8x1024xf32>
    %c6 = arith.constant 6 : index
    %c0_127 = arith.constant 0 : index
    %140 = tpu.strided_load %arg15[%c6, %c0_127] {strides = array<i32: 8, 1>} : memref<64x128xf32, #tpu.memory_space<vmem>>, vector<8x128xf32>
    %141 = arith.truncf %140 : vector<8x128xf32> to vector<8x128xbf16>
    %c6_128 = arith.constant 6 : index
    %c0_129 = arith.constant 0 : index
    %c0_130 = arith.constant 0 : index
    %142 = vector.load %arg6[%c6_128, %c0_129, %c0_130] : memref<7x128x1024xbf16, #tpu.memory_space<vmem>>, vector<1x128x1024xbf16>
    %143 = vector.shape_cast %142 : vector<1x128x1024xbf16> to vector<128x1024xbf16>
    %cst_131 = arith.constant dense<0.000000e+00> : vector<8x1024xf32>
    %144 = tpu.matmul %141, %143, %cst_131 {dimension_numbers = #tpu.dot_dimension_numbers<[1], [0], [0], [1], [0, 0, 1, 1], [], []>} : vector<8x128xbf16>, vector<128x1024xbf16>, vector<8x1024xf32> -> vector<8x1024xf32>
    %145 = arith.addf %139, %144 : vector<8x1024xf32>
    %c0_132 = arith.constant 0 : index
    %c0_133 = arith.constant 0 : index
    %146 = vector.load %arg7[%c0_132, %c0_133] : memref<1x1024xf32, #tpu.memory_space<vmem>>, vector<1x1024xf32>
    %147 = vector.broadcast %146 : vector<1x1024xf32> to vector<8x1024xf32>
    %148 = arith.addf %145, %147 : vector<8x1024xf32>
    %149 = arith.truncf %148 : vector<8x1024xf32> to vector<8x1024xbf16>
    %c0_134 = arith.constant 0 : index
    %c0_135 = arith.constant 0 : index
    %150 = vector.load %arg8[%c0_134, %c0_135] : memref<1024x128xbf16, #tpu.memory_space<vmem>>, vector<1024x128xbf16>
    %cst_136 = arith.constant dense<0.000000e+00> : vector<8x128xf32>
    %151 = tpu.matmul %149, %150, %cst_136 {dimension_numbers = #tpu.dot_dimension_numbers<[1], [0], [0], [1], [0, 0, 1, 1], [], []>} : vector<8x1024xbf16>, vector<1024x128xbf16>, vector<8x128xf32> -> vector<8x128xf32>
    %c0_137 = arith.constant 0 : index
    %c0_138 = arith.constant 0 : index
    %152 = vector.load %arg9[%c0_137, %c0_138] : memref<1x128xf32, #tpu.memory_space<vmem>>, vector<1x128xf32>
    %153 = vector.broadcast %152 : vector<1x128xf32> to vector<8x128xf32>
    %154 = arith.addf %151, %153 : vector<8x128xf32>
    %c0_139 = arith.constant 0 : index
    %c0_140 = arith.constant 0 : index
    %155 = vector.load %arg10[%c0_139, %c0_140] : memref<8x128xf32, #tpu.memory_space<vmem>>, vector<8x128xf32>
    tpu.vector_store %arg10[%c0_139, %c0_140], %154 {strides = array<i32>} : memref<8x128xf32, #tpu.memory_space<vmem>>, vector<8x128xf32>,
    return
  }
  func.func @transform_0(%arg0: i32) -> (i32, i32, i32) {
    %c0_i32 = arith.constant 0 : i32
    %c0_i32_0 = arith.constant 0 : i32
    %c0_i32_1 = arith.constant 0 : i32
    return %arg0, %c0_i32, %c0_i32_0 : i32, i32, i32
  }
  func.func @transform_1(%arg0: i32) -> (i32, i32, i32) {
    %c0_i32 = arith.constant 0 : i32
    %c0_i32_0 = arith.constant 0 : i32
    %c0_i32_1 = arith.constant 0 : i32
    %c0_i32_2 = arith.constant 0 : i32
    return %c0_i32, %c0_i32_0, %c0_i32_1 : i32, i32, i32
  }
  func.func @transform_2(%arg0: i32) -> (i32, i32) {
    %c0_i32 = arith.constant 0 : i32
    %c0_i32_0 = arith.constant 0 : i32
    %c0_i32_1 = arith.constant 0 : i32
    return %c0_i32, %c0_i32_0 : i32, i32
  }
  func.func @transform_3(%arg0: i32) -> (i32, i32, i32) {
    %c0_i32 = arith.constant 0 : i32
    %c0_i32_0 = arith.constant 0 : i32
    %c0_i32_1 = arith.constant 0 : i32
    %c0_i32_2 = arith.constant 0 : i32
    return %c0_i32, %c0_i32_0, %c0_i32_1 : i32, i32, i32
  }
  func.func @transform_4(%arg0: i32) -> (i32, i32) {
    %c0_i32 = arith.constant 0 : i32
    %c0_i32_0 = arith.constant 0 : i32
    %c0_i32_1 = arith.constant 0 : i32
    return %c0_i32, %c0_i32_0 : i32, i32
  }
  func.func @transform_5(%arg0: i32) -> (i32, i32, i32) {
    %c0_i32 = arith.constant 0 : i32
    %c0_i32_0 = arith.constant 0 : i32
    %c0_i32_1 = arith.constant 0 : i32
    %c0_i32_2 = arith.constant 0 : i32
    return %c0_i32, %c0_i32_0, %c0_i32_1 : i32, i32, i32
  }
  func.func @transform_6(%arg0: i32) -> (i32, i32) {
    %c0_i32 = arith.constant 0 : i32
    %c0_i32_0 = arith.constant 0 : i32
    %c0_i32_1 = arith.constant 0 : i32
    return %c0_i32, %c0_i32_0 : i32, i32
  }
  func.func @transform_7(%arg0: i32) -> (i32, i32) {
    %c0_i32 = arith.constant 0 : i32
    %c0_i32_0 = arith.constant 0 : i32
    %c0_i32_1 = arith.constant 0 : i32
    return %c0_i32, %c0_i32_0 : i32, i32
  }
  func.func @transform_8(%arg0: i32) -> (i32, i32) {
    %c0_i32 = arith.constant 0 : i32
    %c0_i32_0 = arith.constant 0 : i32
    %c0_i32_1 = arith.constant 0 : i32
    return %c0_i32, %c0_i32_0 : i32, i32
  }
  func.func @transform_9(%arg0: i32) -> (i32, i32) {
    %c0_i32 = arith.constant 0 : i32
    %c0_i32_0 = arith.constant 0 : i32
    return %arg0, %c0_i32 : i32, i32
  }
}

</mosaic_0001>

<llo_original>
// kernel: smallnet_forward.1
$region0: #{smallnet_forward.1}
  #allocation0 [shape = 'u32[]', space=smem, size = 0x4, offset = 0x4, fixed_abs, tag = 'smem constant byte address 0x4 - core index']
  #allocation1 [shape = 'u32[72,128]{1,0:T(1,128)}', space=vmem, size = 0x9000, scoped, tag = 'internal scratch']
  #allocation2 [shape = 'f32[264,32]{1,0:T(8,128)}', space=vmem, size = 0x21000, scoped, tag = 'scratch operand']
  #allocation3 [shape = 'f32[256,128]{1,0:T(8,128)}', space=vmem, size = 0x20000, scoped, tag = 'scratch operand']
  #allocation4 [shape = 'f32[136,128]{1,0:T(8,128)}', space=vmem, size = 0x11000, scoped, tag = 'scratch operand']
  #allocation5 [shape = 'f32[128,128]{1,0:T(8,128)}', space=vmem, size = 0x10000, scoped, tag = 'scratch operand']
  #allocation6 [shape = 'f32[64,128]{1,0:T(8,128)}', space=vmem, size = 0x8000, scoped, tag = 'scratch operand']
  %s0 = inlined_call_operand.vmem [shape: bf16[8,32,32], index: 0, kind: input, shape index: {}]
  %s1 = inlined_call_operand.hbm [shape: bf16[5,32,128], index: 1, kind: input, shape index: {}]
  %s2 = inlined_call_operand.hbm [shape: f32[1,128], index: 2, kind: input, shape index: {}]
  %s3 = inlined_call_operand.hbm [shape: bf16[5,128,128], index: 3, kind: input, shape index: {}]
  %s4 = inlined_call_operand.hbm [shape: f32[1,128], index: 4, kind: input, shape index: {}]
  %s5 = inlined_call_operand.hbm [shape: bf16[7,128,1024], index: 5, kind: input, shape index: {}]
  %s6 = inlined_call_operand.hbm [shape: f32[1,1024], index: 6, kind: input, shape index: {}]
  %s7 = inlined_call_operand.hbm [shape: bf16[1024,128], index: 7, kind: input, shape index: {}]
  %s8 = inlined_call_operand.hbm [shape: f32[1,128], index: 8, kind: input, shape index: {}]
  %s9 = inlined_call_operand.vmem [shape: f32[8,128], index: 9, kind: output, shape index: {}]
  %s10 = sld [smem:[#allocation0]]
  $region78: #{smallnet_forward.1} parent=0
    _
  %s12 = ssub.s32 1, %s10
  %s13 = scalar_select 0, %s12, %s10
  $region1: #{smallnet_forward.1} parent=0
    #allocation7 [shape = 'u8[40960]{0}', space=vmem, size = 0xa000, scoped, tag = 'input window, operand 1, single buffered']
    #allocation8 [shape = 's32[1]{0}', space=sflag, size = 0x4, scoped, tag = 'scoped memory for smallnet_forward.1']
    #allocation9 [shape = 'u8[512]{0}', space=vmem, size = 0x400, scoped, tag = 'input window, operand 2, single buffered']
    #allocation10 [shape = 's32[1]{0}', space=sflag, size = 0x4, scoped, tag = 'scoped memory for smallnet_forward.1']
    #allocation11 [shape = 'u8[163840]{0}', space=vmem, size = 0x28000, scoped, tag = 'input window, operand 3, single buffered']
    #allocation12 [shape = 'u8[512]{0}', space=vmem, size = 0x400, scoped, tag = 'input window, operand 4, single buffered']
    #allocation13 [shape = 's32[1]{0}', space=sflag, size = 0x4, scoped, tag = 'scoped memory for smallnet_forward.1']
    #allocation14 [shape = 'u8[1835008]{0}', space=vmem, size = 0x1c0000, scoped, tag = 'input window, operand 5, single buffered']
    #allocation15 [shape = 'u8[4096]{0}', space=vmem, size = 0x1000, scoped, tag = 'input window, operand 6, single buffered']
    #allocation16 [shape = 's32[1]{0}', space=sflag, size = 0x4, scoped, tag = 'scoped memory for smallnet_forward.1']
    #allocation17 [shape = 'u8[262144]{0}', space=vmem, size = 0x40000, scoped, tag = 'input window, operand 7, single buffered']
    #allocation18 [shape = 'u8[512]{0}', space=vmem, size = 0x400, scoped, tag = 'input window, operand 8, single buffered']
    #allocation19 [shape = 's32[1]{0}', space=sflag, size = 0x4, scoped, tag = 'scoped memory for smallnet_forward.1']
    %14 = vsyncpa [#allocation8], 0
    %15 = vsyncpa [#allocation10], 0
    %16 = vsyncpa [#allocation13], 0
    %17 = vsyncpa [#allocation16], 0
    %18 = vsyncpa [#allocation19], 0
    // Predicated region
    $region2: #{smallnet_forward.1} parent=1 // pred_check
      _
    $region3: #{smallnet_forward.1} parent=1 // pred_check_branch
      %20 = sbr.rel (0) target = $region5
    $region4: #{smallnet_forward.1} parent=1 // pred_region
      _
    $region5: #{smallnet_forward.1} parent=1 // pred_fallthru
      _
    // Predicated region
    $region6: #{smallnet_forward.1} parent=1 // pred_check
      _
    $region7: #{smallnet_forward.1} parent=1 // pred_check_branch
      %22 = sbr.rel (0) target = $region9
    $region8: #{smallnet_forward.1} parent=1 // pred_region
      %24 = vsyncadd [#allocation8], 0
      %s25 = sshll.u32 %s1, 4
      %s26 = int_to_ptr.hbm [resolvable:$true] %s25
      %s27 = sshll.u32 [#allocation7], 4
      %s28 = int_to_ptr.vmem [resolvable:$true] %s27
      %33 = dma.hbm_to_vmem [thread:$0]  %s26, 1280, %s28, [#allocation8], 64, 64, 4
    $region9: #{smallnet_forward.1} parent=1 // pred_fallthru
      _
    // Predicated region
    $region10: #{smallnet_forward.1} parent=1 // pred_check
      _
    $region11: #{smallnet_forward.1} parent=1 // pred_check_branch
      %35 = sbr.rel (0) target = $region13
    $region12: #{smallnet_forward.1} parent=1 // pred_region
      %37 = vsyncadd [#allocation10], 0
      %s39 = sshll.u32 %s2, 4
      %s40 = int_to_ptr.hbm [resolvable:$true] %s39
      %s41 = sshll.u32 [#allocation9], 4
      %s42 = int_to_ptr.vmem [resolvable:$true] %s41
      %44 = dma.hbm_to_vmem [thread:$0]  %s40, 16, %s42, [#allocation10]
    $region13: #{smallnet_forward.1} parent=1 // pred_fallthru
      _
    // Predicated region
    $region14: #{smallnet_forward.1} parent=1 // pred_check
      _
    $region15: #{smallnet_forward.1} parent=1 // pred_check_branch
      %46 = sbr.rel (0) target = $region17
    $region16: #{smallnet_forward.1} parent=1 // pred_region
      %48 = vsyncadd [#allocation10], 0
      %s49 = sshll.u32 %s3, 4
      %s50 = int_to_ptr.hbm [resolvable:$true] %s49
      %s51 = sshll.u32 [#allocation11], 4
      %s52 = int_to_ptr.vmem [resolvable:$true] %s51
      %57 = dma.hbm_to_vmem [thread:$0]  %s50, 5120, %s52, [#allocation10], 64, 64, 4
    $region17: #{smallnet_forward.1} parent=1 // pred_fallthru
      _
    // Predicated region
    $region18: #{smallnet_forward.1} parent=1 // pred_check
      _
    $region19: #{smallnet_forward.1} parent=1 // pred_check_branch
      %59 = sbr.rel (0) target = $region21
    $region20: #{smallnet_forward.1} parent=1 // pred_region
      %61 = vsyncadd [#allocation13], 0
      %s63 = sshll.u32 %s4, 4
      %s64 = int_to_ptr.hbm [resolvable:$true] %s63
      %s65 = sshll.u32 [#allocation12], 4
      %s66 = int_to_ptr.vmem [resolvable:$true] %s65
      %68 = dma.hbm_to_vmem [thread:$0]  %s64, 16, %s66, [#allocation13]
    $region21: #{smallnet_forward.1} parent=1 // pred_fallthru
      _
    // Predicated region
    $region22: #{smallnet_forward.1} parent=1 // pred_check
      _
    $region23: #{smallnet_forward.1} parent=1 // pred_check_branch
      %70 = sbr.rel (0) target = $region25
    $region24: #{smallnet_forward.1} parent=1 // pred_region
      %72 = vsyncadd [#allocation13], 0
      %s73 = sshll.u32 %s5, 4
      %s74 = int_to_ptr.hbm [resolvable:$true] %s73
      %s75 = sshll.u32 [#allocation14], 4
      %s76 = int_to_ptr.vmem [resolvable:$true] %s75
      %81 = dma.hbm_to_vmem [thread:$0]  %s74, 57344, %s76, [#allocation13], 512, 512, 32
    $region25: #{smallnet_forward.1} parent=1 // pred_fallthru
      _
    // Predicated region
    $region26: #{smallnet_forward.1} parent=1 // pred_check
      _
    $region27: #{smallnet_forward.1} parent=1 // pred_check_branch
      %83 = sbr.rel (0) target = $region29
    $region28: #{smallnet_forward.1} parent=1 // pred_region
      %85 = vsyncadd [#allocation16], 0
      %s87 = sshll.u32 %s6, 4
      %s88 = int_to_ptr.hbm [resolvable:$true] %s87
      %s89 = sshll.u32 [#allocation15], 4
      %s90 = int_to_ptr.vmem [resolvable:$true] %s89
      %92 = dma.hbm_to_vmem [thread:$0]  %s88, 128, %s90, [#allocation16]
    $region29: #{smallnet_forward.1} parent=1 // pred_fallthru
      _
    // Predicated region
    $region30: #{smallnet_forward.1} parent=1 // pred_check
      _
    $region31: #{smallnet_forward.1} parent=1 // pred_check_branch
      %94 = sbr.rel (0) target = $region33
    $region32: #{smallnet_forward.1} parent=1 // pred_region
      %96 = vsyncadd [#allocation16], 0
      %s97 = sshll.u32 %s7, 4
      %s98 = int_to_ptr.hbm [resolvable:$true] %s97
      %s99 = sshll.u32 [#allocation17], 4
      %s100 = int_to_ptr.vmem [resolvable:$true] %s99
      %105 = dma.hbm_to_vmem [thread:$0]  %s98, 8192, %s100, [#allocation16], 64, 64, 4
    $region33: #{smallnet_forward.1} parent=1 // pred_fallthru
      _
    // Predicated region
    $region34: #{smallnet_forward.1} parent=1 // pred_check
      _
    $region35: #{smallnet_forward.1} parent=1 // pred_check_branch
      %107 = sbr.rel (0) target = $region37
    $region36: #{smallnet_forward.1} parent=1 // pred_region
      %109 = vsyncadd [#allocation19], 0
      %s111 = sshll.u32 %s8, 4
      %s112 = int_to_ptr.hbm [resolvable:$true] %s111
      %s113 = sshll.u32 [#allocation18], 4
      %s114 = int_to_ptr.vmem [resolvable:$true] %s113
      %116 = dma.hbm_to_vmem [thread:$0]  %s112, 16, %s114, [#allocation19]
    $region37: #{smallnet_forward.1} parent=1 // pred_fallthru
      _
    // Predicated region
    $region38: #{smallnet_forward.1} parent=1 // pred_check
      _
    $region39: #{smallnet_forward.1} parent=1 // pred_check_branch
      %118 = sbr.rel (0) target = $region41
    $region40: #{smallnet_forward.1} parent=1 // pred_region
      %120 = dma.done [#allocation8], 1280
    $region41: #{smallnet_forward.1} parent=1 // pred_fallthru
      _
    // Predicated region
    $region42: #{smallnet_forward.1} parent=1 // pred_check
      _
    $region43: #{smallnet_forward.1} parent=1 // pred_check_branch
      %122 = sbr.rel (0) target = $region45
    $region44: #{smallnet_forward.1} parent=1 // pred_region
      %124 = dma.done [#allocation10], 16
    $region45: #{smallnet_forward.1} parent=1 // pred_fallthru
      _
    // Predicated region
    $region46: #{smallnet_forward.1} parent=1 // pred_check
      _
    $region47: #{smallnet_forward.1} parent=1 // pred_check_branch
      %126 = sbr.rel (0) target = $region49
    $region48: #{smallnet_forward.1} parent=1 // pred_region
      %128 = dma.done [#allocation10], 5120
    $region49: #{smallnet_forward.1} parent=1 // pred_fallthru
      _
    // Predicated region
    $region50: #{smallnet_forward.1} parent=1 // pred_check
      _
    $region51: #{smallnet_forward.1} parent=1 // pred_check_branch
      %130 = sbr.rel (0) target = $region53
    $region52: #{smallnet_forward.1} parent=1 // pred_region
      %132 = dma.done [#allocation13], 16
    $region53: #{smallnet_forward.1} parent=1 // pred_fallthru
      _
    // Predicated region
    $region54: #{smallnet_forward.1} parent=1 // pred_check
      _
    $region55: #{smallnet_forward.1} parent=1 // pred_check_branch
      %134 = sbr.rel (0) target = $region57
    $region56: #{smallnet_forward.1} parent=1 // pred_region
      %136 = dma.done [#allocation13], 57344
    $region57: #{smallnet_forward.1} parent=1 // pred_fallthru
      _
    // Predicated region
    $region58: #{smallnet_forward.1} parent=1 // pred_check
      _
    $region59: #{smallnet_forward.1} parent=1 // pred_check_branch
      %138 = sbr.rel (0) target = $region61
    $region60: #{smallnet_forward.1} parent=1 // pred_region
      %140 = dma.done [#allocation16], 128
    $region61: #{smallnet_forward.1} parent=1 // pred_fallthru
      _
    // Predicated region
    $region62: #{smallnet_forward.1} parent=1 // pred_check
      _
    $region63: #{smallnet_forward.1} parent=1 // pred_check_branch
      %142 = sbr.rel (0) target = $region65
    $region64: #{smallnet_forward.1} parent=1 // pred_region
      %144 = dma.done [#allocation16], 8192
    $region65: #{smallnet_forward.1} parent=1 // pred_fallthru
      _
    // Predicated region
    $region66: #{smallnet_forward.1} parent=1 // pred_check
      _
    $region67: #{smallnet_forward.1} parent=1 // pred_check_branch
      %146 = sbr.rel (0) target = $region69
    $region68: #{smallnet_forward.1} parent=1 // pred_region
      %148 = dma.done [#allocation19], 16
    $region69: #{smallnet_forward.1} parent=1 // pred_fallthru
      _
    %v150 = vld [vmem:[%s0] sm:$0xf]
    %v151 = vld [vmem:[%s0 + $0x4] sm:$0xf]
    %v152 = vld [vmem:[%s0 + $0x8] sm:$0xf]
    %v153 = vld [vmem:[%s0 + $0xc] sm:$0xf]
    %v154 = vld [vmem:[%s0 + $0x10] sm:$0xf]
    %v155 = vld [vmem:[%s0 + $0x14] sm:$0xf]
    %v156 = vld [vmem:[%s0 + $0x18] sm:$0xf]
    %v157 = vld [vmem:[%s0 + $0x1c] sm:$0xf]
    %v158 = vld [vmem:[%s0 + $0x20] sm:$0xf]
    %v159 = vld [vmem:[%s0 + $0x24] sm:$0xf]
    %v160 = vld [vmem:[%s0 + $0x28] sm:$0xf]
    %v161 = vld [vmem:[%s0 + $0x2c] sm:$0xf]
    %v162 = vld [vmem:[%s0 + $0x30] sm:$0xf]
    %v163 = vld [vmem:[%s0 + $0x34] sm:$0xf]
    %v164 = vld [vmem:[%s0 + $0x38] sm:$0xf]
    %v165 = vld [vmem:[%s0 + $0x3c] sm:$0xf]
    %v166 = vld [vmem:[%s0 + $0x40] sm:$0xf]
    %v167 = vld [vmem:[%s0 + $0x44] sm:$0xf]
    %v168 = vld [vmem:[%s0 + $0x48] sm:$0xf]
    %v169 = vld [vmem:[%s0 + $0x4c] sm:$0xf]
    %v170 = vld [vmem:[%s0 + $0x50] sm:$0xf]
    %v171 = vld [vmem:[%s0 + $0x54] sm:$0xf]
    %v172 = vld [vmem:[%s0 + $0x58] sm:$0xf]
    %v173 = vld [vmem:[%s0 + $0x5c] sm:$0xf]
    %v174 = vld [vmem:[%s0 + $0x60] sm:$0xf]
    %v175 = vld [vmem:[%s0 + $0x64] sm:$0xf]
    %v176 = vld [vmem:[%s0 + $0x68] sm:$0xf]
    %v177 = vld [vmem:[%s0 + $0x6c] sm:$0xf]
    %v178 = vld [vmem:[%s0 + $0x70] sm:$0xf]
    %v179 = vld [vmem:[%s0 + $0x74] sm:$0xf]
    %v180 = vld [vmem:[%s0 + $0x78] sm:$0xf]
    %v181 = vld [vmem:[%s0 + $0x7c] sm:$0xf]
    %v182 = vunpack.c.l.bf16 %v150
    %v183 = vunpack.c.l.bf16 %v151
    %v184 = vunpack.c.l.bf16 %v152
    %v185 = vunpack.c.l.bf16 %v153
    %v186 = vunpack.c.l.bf16 %v154
    %v187 = vunpack.c.l.bf16 %v155
    %v188 = vunpack.c.l.bf16 %v156
    %v189 = vunpack.c.l.bf16 %v157
    %v190 = vunpack.c.l.bf16 %v158
    %v191 = vunpack.c.l.bf16 %v159
    %v192 = vunpack.c.l.bf16 %v160
    %v193 = vunpack.c.l.bf16 %v161
    %v194 = vunpack.c.l.bf16 %v162
    %v195 = vunpack.c.l.bf16 %v163
    %v196 = vunpack.c.l.bf16 %v164
    %v197 = vunpack.c.l.bf16 %v165
    %v198 = vunpack.c.l.bf16 %v166
    %v199 = vunpack.c.l.bf16 %v167
    %v200 = vunpack.c.l.bf16 %v168
    %v201 = vunpack.c.l.bf16 %v169
    %v202 = vunpack.c.l.bf16 %v170
    %v203 = vunpack.c.l.bf16 %v171
    %v204 = vunpack.c.l.bf16 %v172
    %v205 = vunpack.c.l.bf16 %v173
    %v206 = vunpack.c.l.bf16 %v174
    %v207 = vunpack.c.l.bf16 %v175
    %v208 = vunpack.c.l.bf16 %v176
    %v209 = vunpack.c.l.bf16 %v177
    %v210 = vunpack.c.l.bf16 %v178
    %v211 = vunpack.c.l.bf16 %v179
    %v212 = vunpack.c.l.bf16 %v180
    %v213 = vunpack.c.l.bf16 %v181
    %vm214 = vcmask 261120
    %215 = vst.msk [vmem:[#allocation2] sm:$0xff] %vm214, %v182
    %216 = vst.msk [vmem:[#allocation2 + $0x8] sm:$0xff] %vm214, %v183
    %217 = vst.msk [vmem:[#allocation2 + $0x10] sm:$0xff] %vm214, %v184
    %218 = vst.msk [vmem:[#allocation2 + $0x18] sm:$0xff] %vm214, %v185
    %219 = vst.msk [vmem:[#allocation2 + $0x20] sm:$0xff] %vm214, %v186
    %220 = vst.msk [vmem:[#allocation2 + $0x28] sm:$0xff] %vm214, %v187
    %221 = vst.msk [vmem:[#allocation2 + $0x30] sm:$0xff] %vm214, %v188
    %222 = vst.msk [vmem:[#allocation2 + $0x38] sm:$0xff] %vm214, %v189
    %223 = vst.msk [vmem:[#allocation2 + $0x40] sm:$0xff] %vm214, %v190
    %224 = vst.msk [vmem:[#allocation2 + $0x48] sm:$0xff] %vm214, %v191
    %225 = vst.msk [vmem:[#allocation2 + $0x50] sm:$0xff] %vm214, %v192
    %226 = vst.msk [vmem:[#allocation2 + $0x58] sm:$0xff] %vm214, %v193
    %227 = vst.msk [vmem:[#allocation2 + $0x60] sm:$0xff] %vm214, %v194
    %228 = vst.msk [vmem:[#allocation2 + $0x68] sm:$0xff] %vm214, %v195
    %229 = vst.msk [vmem:[#allocation2 + $0x70] sm:$0xff] %vm214, %v196
    %230 = vst.msk [vmem:[#allocation2 + $0x78] sm:$0xff] %vm214, %v197
    %231 = vst.msk [vmem:[#allocation2 + $0x80] sm:$0xff] %vm214, %v198
    %232 = vst.msk [vmem:[#allocation2 + $0x88] sm:$0xff] %vm214, %v199
    %233 = vst.msk [vmem:[#allocation2 + $0x90] sm:$0xff] %vm214, %v200
    %234 = vst.msk [vmem:[#allocation2 + $0x98] sm:$0xff] %vm214, %v201
    %235 = vst.msk [vmem:[#allocation2 + $0xa0] sm:$0xff] %vm214, %v202
    %236 = vst.msk [vmem:[#allocation2 + $0xa8] sm:$0xff] %vm214, %v203
    %237 = vst.msk [vmem:[#allocation2 + $0xb0] sm:$0xff] %vm214, %v204
    %238 = vst.msk [vmem:[#allocation2 + $0xb8] sm:$0xff] %vm214, %v205
    %239 = vst.msk [vmem:[#allocation2 + $0xc0] sm:$0xff] %vm214, %v206
    %240 = vst.msk [vmem:[#allocation2 + $0xc8] sm:$0xff] %vm214, %v207
    %241 = vst.msk [vmem:[#allocation2 + $0xd0] sm:$0xff] %vm214, %v208
    %242 = vst.msk [vmem:[#allocation2 + $0xd8] sm:$0xff] %vm214, %v209
    %243 = vst.msk [vmem:[#allocation2 + $0xe0] sm:$0xff] %vm214, %v210
    %244 = vst.msk [vmem:[#allocation2 + $0xe8] sm:$0xff] %vm214, %v211
    %245 = vst.msk [vmem:[#allocation2 + $0xf0] sm:$0xff] %vm214, %v212
    %246 = vst.msk [vmem:[#allocation2 + $0xf8] sm:$0xff] %vm214, %v213
    %247 = vst.msk [vmem:[#allocation2 + $0x100] sm:$0xff] %vm214, 0.0
    %v248 = vld [vmem:[#allocation2] sm:$0xff]
    %v249 = vld [vmem:[#allocation2 + $0x8] sm:$0xff]
    %v250 = vld [vmem:[#allocation2 + $0x10] sm:$0xff]
    %v251 = vld [vmem:[#allocation2 + $0x18] sm:$0xff]
    %v252 = vld [vmem:[#allocation2 + $0x20] sm:$0xff]
    %v253 = vld [vmem:[#allocation2 + $0x28] sm:$0xff]
    %v254 = vld [vmem:[#allocation2 + $0x30] sm:$0xff]
    %v255 = vld [vmem:[#allocation2 + $0x38] sm:$0xff]
    %v256 = vld [vmem:[#allocation2 + $0x40] sm:$0xff]
    %v257 = vld [vmem:[#allocation2 + $0x48] sm:$0xff]
    %v258 = vld [vmem:[#allocation2 + $0x50] sm:$0xff]
    %v259 = vld [vmem:[#allocation2 + $0x58] sm:$0xff]
    %v260 = vld [vmem:[#allocation2 + $0x60] sm:$0xff]
    %v261 = vld [vmem:[#allocation2 + $0x68] sm:$0xff]
    %v262 = vld [vmem:[#allocation2 + $0x70] sm:$0xff]
    %v263 = vld [vmem:[#allocation2 + $0x78] sm:$0xff]
    %v264 = vld [vmem:[#allocation2 + $0x80] sm:$0xff]
    %v265 = vld [vmem:[#allocation2 + $0x88] sm:$0xff]
    %v266 = vld [vmem:[#allocation2 + $0x90] sm:$0xff]
    %v267 = vld [vmem:[#allocation2 + $0x98] sm:$0xff]
    %v268 = vld [vmem:[#allocation2 + $0xa0] sm:$0xff]
    %v269 = vld [vmem:[#allocation2 + $0xa8] sm:$0xff]
    %v270 = vld [vmem:[#allocation2 + $0xb0] sm:$0xff]
    %v271 = vld [vmem:[#allocation2 + $0xb8] sm:$0xff]
    %v272 = vld [vmem:[#allocation2 + $0xc0] sm:$0xff]
    %v273 = vld [vmem:[#allocation2 + $0xc8] sm:$0xff]
    %v274 = vld [vmem:[#allocation2 + $0xd0] sm:$0xff]
    %v275 = vld [vmem:[#allocation2 + $0xd8] sm:$0xff]
    %v276 = vld [vmem:[#allocation2 + $0xe0] sm:$0xff]
    %v277 = vld [vmem:[#allocation2 + $0xe8] sm:$0xff]
    %v278 = vld [vmem:[#allocation2 + $0xf0] sm:$0xff]
    %v279 = vld [vmem:[#allocation2 + $0xf8] sm:$0xff]
    %v280 = vpack.c.bf16 %v249, %v248
    %v281 = vpack.c.bf16 %v251, %v250
    %v282 = vpack.c.bf16 %v253, %v252
    %v283 = vpack.c.bf16 %v255, %v254
    %v284 = vpack.c.bf16 %v257, %v256
    %v285 = vpack.c.bf16 %v259, %v258
    %v286 = vpack.c.bf16 %v261, %v260
    %v287 = vpack.c.bf16 %v263, %v262
    %v288 = vpack.c.bf16 %v265, %v264
    %v289 = vpack.c.bf16 %v267, %v266
    %v290 = vpack.c.bf16 %v269, %v268
    %v291 = vpack.c.bf16 %v271, %v270
    %v292 = vpack.c.bf16 %v273, %v272
    %v293 = vpack.c.bf16 %v275, %v274
    %v294 = vpack.c.bf16 %v277, %v276
    %v295 = vpack.c.bf16 %v279, %v278
    %v296 = vld [vmem:[#allocation7] sm:$0xf]
    %v297 = vld [vmem:[#allocation7 + $0x4] sm:$0xf]
    %v298 = vld [vmem:[#allocation7 + $0x8] sm:$0xf]
    %v299 = vld [vmem:[#allocation7 + $0xc] sm:$0xf]
    %v300 = vld [vmem:[#allocation2 + $0x1] sm:$0xff]
    %v301 = vld [vmem:[#allocation2 + $0x9] sm:$0xff]
    %v302 = vld [vmem:[#allocation2 + $0x11] sm:$0xff]
    %v303 = vld [vmem:[#allocation2 + $0x19] sm:$0xff]
    %v304 = vld [vmem:[#allocation2 + $0x21] sm:$0xff]
    %v305 = vld [vmem:[#allocation2 + $0x29] sm:$0xff]
    %v306 = vld [vmem:[#allocation2 + $0x31] sm:$0xff]
    %v307 = vld [vmem:[#allocation2 + $0x39] sm:$0xff]
    %v308 = vld [vmem:[#allocation2 + $0x41] sm:$0xff]
    %v309 = vld [vmem:[#allocation2 + $0x49] sm:$0xff]
    %v310 = vld [vmem:[#allocation2 + $0x51] sm:$0xff]
    %v311 = vld [vmem:[#allocation2 + $0x59] sm:$0xff]
    %v312 = vld [vmem:[#allocation2 + $0x61] sm:$0xff]
    %v313 = vld [vmem:[#allocation2 + $0x69] sm:$0xff]
    %v314 = vld [vmem:[#allocation2 + $0x71] sm:$0xff]
    %v315 = vld [vmem:[#allocation2 + $0x79] sm:$0xff]
    %v316 = vld [vmem:[#allocation2 + $0x81] sm:$0xff]
    %v317 = vld [vmem:[#allocation2 + $0x89] sm:$0xff]
    %v318 = vld [vmem:[#allocation2 + $0x91] sm:$0xff]
    %v319 = vld [vmem:[#allocation2 + $0x99] sm:$0xff]
    %v320 = vld [vmem:[#allocation2 + $0xa1] sm:$0xff]
    %v321 = vld [vmem:[#allocation2 + $0xa9] sm:$0xff]
    %v322 = vld [vmem:[#allocation2 + $0xb1] sm:$0xff]
    %v323 = vld [vmem:[#allocation2 + $0xb9] sm:$0xff]
    %v324 = vld [vmem:[#allocation2 + $0xc1] sm:$0xff]
    %v325 = vld [vmem:[#allocation2 + $0xc9] sm:$0xff]
    %v326 = vld [vmem:[#allocation2 + $0xd1] sm:$0xff]
    %v327 = vld [vmem:[#allocation2 + $0xd9] sm:$0xff]
    %v328 = vld [vmem:[#allocation2 + $0xe1] sm:$0xff]
    %v329 = vld [vmem:[#allocation2 + $0xe9] sm:$0xff]
    %v330 = vld [vmem:[#allocation2 + $0xf1] sm:$0xff]
    %v331 = vld [vmem:[#allocation2 + $0xf9] sm:$0xff]
    %v332 = vpack.c.bf16 %v301, %v300
    %v333 = vpack.c.bf16 %v303, %v302
    %v334 = vpack.c.bf16 %v305, %v304
    %v335 = vpack.c.bf16 %v307, %v306
    %v336 = vpack.c.bf16 %v309, %v308
    %v337 = vpack.c.bf16 %v311, %v310
    %v338 = vpack.c.bf16 %v313, %v312
    %v339 = vpack.c.bf16 %v315, %v314
    %v340 = vpack.c.bf16 %v317, %v316
    %v341 = vpack.c.bf16 %v319, %v318
    %v342 = vpack.c.bf16 %v321, %v320
    %v343 = vpack.c.bf16 %v323, %v322
    %v344 = vpack.c.bf16 %v325, %v324
    %v345 = vpack.c.bf16 %v327, %v326
    %v346 = vpack.c.bf16 %v329, %v328
    %v347 = vpack.c.bf16 %v331, %v330
    %s348 = scalar_lea.vmem [#allocation7], 16
    %v349 = vld [vmem:[%s348] sm:$0xf]
    %v350 = vld [vmem:[%s348 + $0x4] sm:$0xf]
    %v351 = vld [vmem:[%s348 + $0x8] sm:$0xf]
    %v352 = vld [vmem:[%s348 + $0xc] sm:$0xf]
    %v357 = vunpack.c.l.b16 %v349
    %v358 = vunpack.c.l.b16 %v350
    %v359 = vunpack.c.l.b16 %v351
    %v360 = vunpack.c.l.b16 %v352
    %v361 = vpack.c.b16 %v358, %v357
    %v362 = vpack.c.b16 %v360, %v359
    %v366 = vsel %vm214, %v332, 0
    %v369 = vsel %vm214, %v333, 0
    %v372 = vsel %vm214, %v334, 0
    %v375 = vsel %vm214, %v335, 0
    %v378 = vsel %vm214, %v336, 0
    %v381 = vsel %vm214, %v337, 0
    %v384 = vsel %vm214, %v338, 0
    %v387 = vsel %vm214, %v339, 0
    %v390 = vsel %vm214, %v340, 0
    %v393 = vsel %vm214, %v341, 0
    %v396 = vsel %vm214, %v342, 0
    %v399 = vsel %vm214, %v343, 0
    %v402 = vsel %vm214, %v344, 0
    %v405 = vsel %vm214, %v345, 0
    %v408 = vsel %vm214, %v346, 0
    %v411 = vsel %vm214, %v347, 0
    %413 = vmatpush.bf16.msra.mxu0 0
    %414 = vmatpush.bf16.msra.mxu0 0
    %415 = vmatpush.bf16.msra.mxu0 0
    %416 = vmatpush.bf16.msra.mxu0 0
    %417 = vmatpush.bf16.msra.mxu0 0
    %418 = vmatpush.bf16.msra.mxu0 0
    %419 = vmatpush.bf16.msra.mxu0 %v362
    %420 = vmatpush.bf16.msra.mxu0 %v361
    %421 = vmatmul.bf16.gmra.mxu0 %v366
    %v422 = vpop.f32.mrf.mxu0
    %v423 = vadd.f32 0.0, %v422
    %v424 = vpop.f32.mrf.mxu0
    %v425 = vadd.f32 0.0, %v424
    %426 = vmatmul.bf16.gmra.mxu0 %v369
    %v427 = vpop.f32.mrf.mxu0
    %v428 = vadd.f32 0.0, %v427
    %v429 = vpop.f32.mrf.mxu0
    %v430 = vadd.f32 0.0, %v429
    %431 = vmatmul.bf16.gmra.mxu0 %v372
    %v432 = vpop.f32.mrf.mxu0
    %v433 = vadd.f32 0.0, %v432
    %v434 = vpop.f32.mrf.mxu0
    %v435 = vadd.f32 0.0, %v434
    %436 = vmatmul.bf16.gmra.mxu0 %v375
    %v437 = vpop.f32.mrf.mxu0
    %v438 = vadd.f32 0.0, %v437
    %v439 = vpop.f32.mrf.mxu0
    %v440 = vadd.f32 0.0, %v439
    %441 = vmatmul.bf16.gmra.mxu0 %v378
    %v442 = vpop.f32.mrf.mxu0
    %v443 = vadd.f32 0.0, %v442
    %v444 = vpop.f32.mrf.mxu0
    %v445 = vadd.f32 0.0, %v444
    %446 = vmatmul.bf16.gmra.mxu0 %v381
    %v447 = vpop.f32.mrf.mxu0
    %v448 = vadd.f32 0.0, %v447
    %v449 = vpop.f32.mrf.mxu0
    %v450 = vadd.f32 0.0, %v449
    %451 = vmatmul.bf16.gmra.mxu0 %v384
    %v452 = vpop.f32.mrf.mxu0
    %v453 = vadd.f32 0.0, %v452
    %v454 = vpop.f32.mrf.mxu0
    %v455 = vadd.f32 0.0, %v454
    %456 = vmatmul.bf16.gmra.mxu0 %v387
    %v457 = vpop.f32.mrf.mxu0
    %v458 = vadd.f32 0.0, %v457
    %v459 = vpop.f32.mrf.mxu0
    %v460 = vadd.f32 0.0, %v459
    %461 = vmatmul.bf16.gmra.mxu0 %v390
    %v462 = vpop.f32.mrf.mxu0
    %v463 = vadd.f32 0.0, %v462
    %v464 = vpop.f32.mrf.mxu0
    %v465 = vadd.f32 0.0, %v464
    %466 = vmatmul.bf16.gmra.mxu0 %v393
    %v467 = vpop.f32.mrf.mxu0
    %v468 = vadd.f32 0.0, %v467
    %v469 = vpop.f32.mrf.mxu0
    %v470 = vadd.f32 0.0, %v469
    %471 = vmatmul.bf16.gmra.mxu0 %v396
    %v472 = vpop.f32.mrf.mxu0
    %v473 = vadd.f32 0.0, %v472
    %v474 = vpop.f32.mrf.mxu0
    %v475 = vadd.f32 0.0, %v474
    %476 = vmatmul.bf16.gmra.mxu0 %v399
    %v477 = vpop.f32.mrf.mxu0
    %v478 = vadd.f32 0.0, %v477
    %v479 = vpop.f32.mrf.mxu0
    %v480 = vadd.f32 0.0, %v479
    %481 = vmatmul.bf16.gmra.mxu0 %v402
    %v482 = vpop.f32.mrf.mxu0
    %v483 = vadd.f32 0.0, %v482
    %v484 = vpop.f32.mrf.mxu0
    %v485 = vadd.f32 0.0, %v484
    %486 = vmatmul.bf16.gmra.mxu0 %v405
    %v487 = vpop.f32.mrf.mxu0
    %v488 = vadd.f32 0.0, %v487
    %v489 = vpop.f32.mrf.mxu0
    %v490 = vadd.f32 0.0, %v489
    %491 = vmatmul.bf16.gmra.mxu0 %v408
    %v492 = vpop.f32.mrf.mxu0
    %v493 = vadd.f32 0.0, %v492
    %v494 = vpop.f32.mrf.mxu0
    %v495 = vadd.f32 0.0, %v494
    %496 = vmatmul.bf16.gmra.mxu0 %v411
    %v497 = vpop.f32.mrf.mxu0
    %v498 = vadd.f32 0.0, %v497
    %v499 = vpop.f32.mrf.mxu0
    %v500 = vadd.f32 0.0, %v499
    %501 = vdwg.mxu0
    %v506 = vunpack.c.l.b16 %v296
    %v507 = vunpack.c.l.b16 %v297
    %v508 = vunpack.c.l.b16 %v298
    %v509 = vunpack.c.l.b16 %v299
    %v510 = vpack.c.b16 %v507, %v506
    %v511 = vpack.c.b16 %v509, %v508
    %v515 = vsel %vm214, %v280, 0
    %v518 = vsel %vm214, %v281, 0
    %v521 = vsel %vm214, %v282, 0
    %v524 = vsel %vm214, %v283, 0
    %v527 = vsel %vm214, %v284, 0
    %v530 = vsel %vm214, %v285, 0
    %v533 = vsel %vm214, %v286, 0
    %v536 = vsel %vm214, %v287, 0
    %v539 = vsel %vm214, %v288, 0
    %v542 = vsel %vm214, %v289, 0
    %v545 = vsel %vm214, %v290, 0
    %v548 = vsel %vm214, %v291, 0
    %v551 = vsel %vm214, %v292, 0
    %v554 = vsel %vm214, %v293, 0
    %v557 = vsel %vm214, %v294, 0
    %v560 = vsel %vm214, %v295, 0
    %562 = vmatpush.bf16.msra.mxu0 0
    %563 = vmatpush.bf16.msra.mxu0 0
    %564 = vmatpush.bf16.msra.mxu0 0
    %565 = vmatpush.bf16.msra.mxu0 0
    %566 = vmatpush.bf16.msra.mxu0 0
    %567 = vmatpush.bf16.msra.mxu0 0
    %568 = vmatpush.bf16.msra.mxu0 %v511
    %569 = vmatpush.bf16.msra.mxu0 %v510
    %570 = vmatmul.bf16.gmra.mxu0 %v515
    %v571 = vpop.f32.mrf.mxu0
    %v572 = vadd.f32 %v423, %v571
    %v573 = vpop.f32.mrf.mxu0
    %v574 = vadd.f32 %v425, %v573
    %575 = vmatmul.bf16.gmra.mxu0 %v518
    %v576 = vpop.f32.mrf.mxu0
    %v577 = vadd.f32 %v428, %v576
    %v578 = vpop.f32.mrf.mxu0
    %v579 = vadd.f32 %v430, %v578
    %580 = vmatmul.bf16.gmra.mxu0 %v521
    %v581 = vpop.f32.mrf.mxu0
    %v582 = vadd.f32 %v433, %v581
    %v583 = vpop.f32.mrf.mxu0
    %v584 = vadd.f32 %v435, %v583
    %585 = vmatmul.bf16.gmra.mxu0 %v524
    %v586 = vpop.f32.mrf.mxu0
    %v587 = vadd.f32 %v438, %v586
    %v588 = vpop.f32.mrf.mxu0
    %v589 = vadd.f32 %v440, %v588
    %590 = vmatmul.bf16.gmra.mxu0 %v527
    %v591 = vpop.f32.mrf.mxu0
    %v592 = vadd.f32 %v443, %v591
    %v593 = vpop.f32.mrf.mxu0
    %v594 = vadd.f32 %v445, %v593
    %595 = vmatmul.bf16.gmra.mxu0 %v530
    %v596 = vpop.f32.mrf.mxu0
    %v597 = vadd.f32 %v448, %v596
    %v598 = vpop.f32.mrf.mxu0
    %v599 = vadd.f32 %v450, %v598
    %600 = vmatmul.bf16.gmra.mxu0 %v533
    %v601 = vpop.f32.mrf.mxu0
    %v602 = vadd.f32 %v453, %v601
    %v603 = vpop.f32.mrf.mxu0
    %v604 = vadd.f32 %v455, %v603
    %605 = vmatmul.bf16.gmra.mxu0 %v536
    %v606 = vpop.f32.mrf.mxu0
    %v607 = vadd.f32 %v458, %v606
    %v608 = vpop.f32.mrf.mxu0
    %v609 = vadd.f32 %v460, %v608
    %610 = vmatmul.bf16.gmra.mxu0 %v539
    %v611 = vpop.f32.mrf.mxu0
    %v612 = vadd.f32 %v463, %v611
    %v613 = vpop.f32.mrf.mxu0
    %v614 = vadd.f32 %v465, %v613
    %615 = vmatmul.bf16.gmra.mxu0 %v542
    %v616 = vpop.f32.mrf.mxu0
    %v617 = vadd.f32 %v468, %v616
    %v618 = vpop.f32.mrf.mxu0
    %v619 = vadd.f32 %v470, %v618
    %620 = vmatmul.bf16.gmra.mxu0 %v545
    %v621 = vpop.f32.mrf.mxu0
    %v622 = vadd.f32 %v473, %v621
    %v623 = vpop.f32.mrf.mxu0
    %v624 = vadd.f32 %v475, %v623
    %625 = vmatmul.bf16.gmra.mxu0 %v548
    %v626 = vpop.f32.mrf.mxu0
    %v627 = vadd.f32 %v478, %v626
    %v628 = vpop.f32.mrf.mxu0
    %v629 = vadd.f32 %v480, %v628
    %630 = vmatmul.bf16.gmra.mxu0 %v551
    %v631 = vpop.f32.mrf.mxu0
    %v632 = vadd.f32 %v483, %v631
    %v633 = vpop.f32.mrf.mxu0
    %v634 = vadd.f32 %v485, %v633
    %635 = vmatmul.bf16.gmra.mxu0 %v554
    %v636 = vpop.f32.mrf.mxu0
    %v637 = vadd.f32 %v488, %v636
    %v638 = vpop.f32.mrf.mxu0
    %v639 = vadd.f32 %v490, %v638
    %640 = vmatmul.bf16.gmra.mxu0 %v557
    %v641 = vpop.f32.mrf.mxu0
    %v642 = vadd.f32 %v493, %v641
    %v643 = vpop.f32.mrf.mxu0
    %v644 = vadd.f32 %v495, %v643
    %645 = vmatmul.bf16.gmra.mxu0 %v560
    %v646 = vpop.f32.mrf.mxu0
    %v647 = vadd.f32 %v498, %v646
    %v648 = vpop.f32.mrf.mxu0
    %v649 = vadd.f32 %v500, %v648
    %650 = vdwg.mxu0
    %v651 = vld [vmem:[#allocation2 + $0x2] sm:$0xff]
    %v652 = vld [vmem:[#allocation2 + $0xa] sm:$0xff]
    %v653 = vld [vmem:[#allocation2 + $0x12] sm:$0xff]
    %v654 = vld [vmem:[#allocation2 + $0x1a] sm:$0xff]
    %v655 = vld [vmem:[#allocation2 + $0x22] sm:$0xff]
    %v656 = vld [vmem:[#allocation2 + $0x2a] sm:$0xff]
    %v657 = vld [vmem:[#allocation2 + $0x32] sm:$0xff]
    %v658 = vld [vmem:[#allocation2 + $0x3a] sm:$0xff]
    %v659 = vld [vmem:[#allocation2 + $0x42] sm:$0xff]
    %v660 = vld [vmem:[#allocation2 + $0x4a] sm:$0xff]
    %v661 = vld [vmem:[#allocation2 + $0x52] sm:$0xff]
    %v662 = vld [vmem:[#allocation2 + $0x5a] sm:$0xff]
    %v663 = vld [vmem:[#allocation2 + $0x62] sm:$0xff]
    %v664 = vld [vmem:[#allocation2 + $0x6a] sm:$0xff]
    %v665 = vld [vmem:[#allocation2 + $0x72] sm:$0xff]
    %v666 = vld [vmem:[#allocation2 + $0x7a] sm:$0xff]
    %v667 = vld [vmem:[#allocation2 + $0x82] sm:$0xff]
    %v668 = vld [vmem:[#allocation2 + $0x8a] sm:$0xff]
    %v669 = vld [vmem:[#allocation2 + $0x92] sm:$0xff]
    %v670 = vld [vmem:[#allocation2 + $0x9a] sm:$0xff]
    %v671 = vld [vmem:[#allocation2 + $0xa2] sm:$0xff]
    %v672 = vld [vmem:[#allocation2 + $0xaa] sm:$0xff]
    %v673 = vld [vmem:[#allocation2 + $0xb2] sm:$0xff]
    %v674 = vld [vmem:[#allocation2 + $0xba] sm:$0xff]
    %v675 = vld [vmem:[#allocation2 + $0xc2] sm:$0xff]
    %v676 = vld [vmem:[#allocation2 + $0xca] sm:$0xff]
    %v677 = vld [vmem:[#allocation2 + $0xd2] sm:$0xff]
    %v678 = vld [vmem:[#allocation2 + $0xda] sm:$0xff]
    %v679 = vld [vmem:[#allocation2 + $0xe2] sm:$0xff]
    %v680 = vld [vmem:[#allocation2 + $0xea] sm:$0xff]
    %v681 = vld [vmem:[#allocation2 + $0xf2] sm:$0xff]
    %v682 = vld [vmem:[#allocation2 + $0xfa] sm:$0xff]
    %v683 = vpack.c.bf16 %v652, %v651
    %v684 = vpack.c.bf16 %v654, %v653
    %v685 = vpack.c.bf16 %v656, %v655
    %v686 = vpack.c.bf16 %v658, %v657
    %v687 = vpack.c.bf16 %v660, %v659
    %v688 = vpack.c.bf16 %v662, %v661
    %v689 = vpack.c.bf16 %v664, %v663
    %v690 = vpack.c.bf16 %v666, %v665
    %v691 = vpack.c.bf16 %v668, %v667
    %v692 = vpack.c.bf16 %v670, %v669
    %v693 = vpack.c.bf16 %v672, %v671
    %v694 = vpack.c.bf16 %v674, %v673
    %v695 = vpack.c.bf16 %v676, %v675
    %v696 = vpack.c.bf16 %v678, %v677
    %v697 = vpack.c.bf16 %v680, %v679
    %v698 = vpack.c.bf16 %v682, %v681
    %s699 = scalar_lea.vmem [#allocation7], 32
    %v700 = vld [vmem:[%s699] sm:$0xf]
    %v701 = vld [vmem:[%s699 + $0x4] sm:$0xf]
    %v702 = vld [vmem:[%s699 + $0x8] sm:$0xf]
    %v703 = vld [vmem:[%s699 + $0xc] sm:$0xf]
    %v708 = vunpack.c.l.b16 %v700
    %v709 = vunpack.c.l.b16 %v701
    %v710 = vunpack.c.l.b16 %v702
    %v711 = vunpack.c.l.b16 %v703
    %v712 = vpack.c.b16 %v709, %v708
    %v713 = vpack.c.b16 %v711, %v710
    %v717 = vsel %vm214, %v683, 0
    %v720 = vsel %vm214, %v684, 0
    %v723 = vsel %vm214, %v685, 0
    %v726 = vsel %vm214, %v686, 0
    %v729 = vsel %vm214, %v687, 0
    %v732 = vsel %vm214, %v688, 0
    %v735 = vsel %vm214, %v689, 0
    %v738 = vsel %vm214, %v690, 0
    %v741 = vsel %vm214, %v691, 0
    %v744 = vsel %vm214, %v692, 0
    %v747 = vsel %vm214, %v693, 0
    %v750 = vsel %vm214, %v694, 0
    %v753 = vsel %vm214, %v695, 0
    %v756 = vsel %vm214, %v696, 0
    %v759 = vsel %vm214, %v697, 0
    %v762 = vsel %vm214, %v698, 0
    %764 = vmatpush.bf16.msra.mxu0 0
    %765 = vmatpush.bf16.msra.mxu0 0
    %766 = vmatpush.bf16.msra.mxu0 0
    %767 = vmatpush.bf16.msra.mxu0 0
    %768 = vmatpush.bf16.msra.mxu0 0
    %769 = vmatpush.bf16.msra.mxu0 0
    %770 = vmatpush.bf16.msra.mxu0 %v713
    %771 = vmatpush.bf16.msra.mxu0 %v712
    %772 = vmatmul.bf16.gmra.mxu0 %v717
    %v773 = vpop.f32.mrf.mxu0
    %v774 = vadd.f32 0.0, %v773
    %v775 = vpop.f32.mrf.mxu0
    %v776 = vadd.f32 0.0, %v775
    %777 = vmatmul.bf16.gmra.mxu0 %v720
    %v778 = vpop.f32.mrf.mxu0
    %v779 = vadd.f32 0.0, %v778
    %v780 = vpop.f32.mrf.mxu0
    %v781 = vadd.f32 0.0, %v780
    %782 = vmatmul.bf16.gmra.mxu0 %v723
    %v783 = vpop.f32.mrf.mxu0
    %v784 = vadd.f32 0.0, %v783
    %v785 = vpop.f32.mrf.mxu0
    %v786 = vadd.f32 0.0, %v785
    %787 = vmatmul.bf16.gmra.mxu0 %v726
    %v788 = vpop.f32.mrf.mxu0
    %v789 = vadd.f32 0.0, %v788
    %v790 = vpop.f32.mrf.mxu0
    %v791 = vadd.f32 0.0, %v790
    %792 = vmatmul.bf16.gmra.mxu0 %v729
    %v793 = vpop.f32.mrf.mxu0
    %v794 = vadd.f32 0.0, %v793
    %v795 = vpop.f32.mrf.mxu0
    %v796 = vadd.f32 0.0, %v795
    %797 = vmatmul.bf16.gmra.mxu0 %v732
    %v798 = vpop.f32.mrf.mxu0
    %v799 = vadd.f32 0.0, %v798
    %v800 = vpop.f32.mrf.mxu0
    %v801 = vadd.f32 0.0, %v800
    %802 = vmatmul.bf16.gmra.mxu0 %v735
    %v803 = vpop.f32.mrf.mxu0
    %v804 = vadd.f32 0.0, %v803
    %v805 = vpop.f32.mrf.mxu0
    %v806 = vadd.f32 0.0, %v805
    %807 = vmatmul.bf16.gmra.mxu0 %v738
    %v808 = vpop.f32.mrf.mxu0
    %v809 = vadd.f32 0.0, %v808
    %v810 = vpop.f32.mrf.mxu0
    %v811 = vadd.f32 0.0, %v810
    %812 = vmatmul.bf16.gmra.mxu0 %v741
    %v813 = vpop.f32.mrf.mxu0
    %v814 = vadd.f32 0.0, %v813
    %v815 = vpop.f32.mrf.mxu0
    %v816 = vadd.f32 0.0, %v815
    %817 = vmatmul.bf16.gmra.mxu0 %v744
    %v818 = vpop.f32.mrf.mxu0
    %v819 = vadd.f32 0.0, %v818
    %v820 = vpop.f32.mrf.mxu0
    %v821 = vadd.f32 0.0, %v820
    %822 = vmatmul.bf16.gmra.mxu0 %v747
    %v823 = vpop.f32.mrf.mxu0
    %v824 = vadd.f32 0.0, %v823
    %v825 = vpop.f32.mrf.mxu0
    %v826 = vadd.f32 0.0, %v825
    %827 = vmatmul.bf16.gmra.mxu0 %v750
    %v828 = vpop.f32.mrf.mxu0
    %v829 = vadd.f32 0.0, %v828
    %v830 = vpop.f32.mrf.mxu0
    %v831 = vadd.f32 0.0, %v830
    %832 = vmatmul.bf16.gmra.mxu0 %v753
    %v833 = vpop.f32.mrf.mxu0
    %v834 = vadd.f32 0.0, %v833
    %v835 = vpop.f32.mrf.mxu0
    %v836 = vadd.f32 0.0, %v835
    %837 = vmatmul.bf16.gmra.mxu0 %v756
    %v838 = vpop.f32.mrf.mxu0
    %v839 = vadd.f32 0.0, %v838
    %v840 = vpop.f32.mrf.mxu0
    %v841 = vadd.f32 0.0, %v840
    %842 = vmatmul.bf16.gmra.mxu0 %v759
    %v843 = vpop.f32.mrf.mxu0
    %v844 = vadd.f32 0.0, %v843
    %v845 = vpop.f32.mrf.mxu0
    %v846 = vadd.f32 0.0, %v845
    %847 = vmatmul.bf16.gmra.mxu0 %v762
    %v848 = vpop.f32.mrf.mxu0
    %v849 = vadd.f32 0.0, %v848
    %v850 = vpop.f32.mrf.mxu0
    %v851 = vadd.f32 0.0, %v850
    %852 = vdwg.mxu0
    %v853 = vadd.f32 %v572, %v774
    %v854 = vadd.f32 %v574, %v776
    %v855 = vadd.f32 %v577, %v779
    %v856 = vadd.f32 %v579, %v781
    %v857 = vadd.f32 %v582, %v784
    %v858 = vadd.f32 %v584, %v786
    %v859 = vadd.f32 %v587, %v789
    %v860 = vadd.f32 %v589, %v791
    %v861 = vadd.f32 %v592, %v794
    %v862 = vadd.f32 %v594, %v796
    %v863 = vadd.f32 %v597, %v799
    %v864 = vadd.f32 %v599, %v801
    %v865 = vadd.f32 %v602, %v804
    %v866 = vadd.f32 %v604, %v806
    %v867 = vadd.f32 %v607, %v809
    %v868 = vadd.f32 %v609, %v811
    %v869 = vadd.f32 %v612, %v814
    %v870 = vadd.f32 %v614, %v816
    %v871 = vadd.f32 %v617, %v819
    %v872 = vadd.f32 %v619, %v821
    %v873 = vadd.f32 %v622, %v824
    %v874 = vadd.f32 %v624, %v826
    %v875 = vadd.f32 %v627, %v829
    %v876 = vadd.f32 %v629, %v831
    %v877 = vadd.f32 %v632, %v834
    %v878 = vadd.f32 %v634, %v836
    %v879 = vadd.f32 %v637, %v839
    %v880 = vadd.f32 %v639, %v841
    %v881 = vadd.f32 %v642, %v844
    %v882 = vadd.f32 %v644, %v846
    %v883 = vadd.f32 %v647, %v849
    %v884 = vadd.f32 %v649, %v851
    %v885 = vld [vmem:[#allocation2 + $0x3] sm:$0xff]
    %v886 = vld [vmem:[#allocation2 + $0xb] sm:$0xff]
    %v887 = vld [vmem:[#allocation2 + $0x13] sm:$0xff]
    %v888 = vld [vmem:[#allocation2 + $0x1b] sm:$0xff]
    %v889 = vld [vmem:[#allocation2 + $0x23] sm:$0xff]
    %v890 = vld [vmem:[#allocation2 + $0x2b] sm:$0xff]
    %v891 = vld [vmem:[#allocation2 + $0x33] sm:$0xff]
    %v892 = vld [vmem:[#allocation2 + $0x3b] sm:$0xff]
    %v893 = vld [vmem:[#allocation2 + $0x43] sm:$0xff]
    %v894 = vld [vmem:[#allocation2 + $0x4b] sm:$0xff]
    %v895 = vld [vmem:[#allocation2 + $0x53] sm:$0xff]
    %v896 = vld [vmem:[#allocation2 + $0x5b] sm:$0xff]
    %v897 = vld [vmem:[#allocation2 + $0x63] sm:$0xff]
    %v898 = vld [vmem:[#allocation2 + $0x6b] sm:$0xff]
    %v899 = vld [vmem:[#allocation2 + $0x73] sm:$0xff]
    %v900 = vld [vmem:[#allocation2 + $0x7b] sm:$0xff]
    %v901 = vld [vmem:[#allocation2 + $0x83] sm:$0xff]
    %v902 = vld [vmem:[#allocation2 + $0x8b] sm:$0xff]
    %v903 = vld [vmem:[#allocation2 + $0x93] sm:$0xff]
    %v904 = vld [vmem:[#allocation2 + $0x9b] sm:$0xff]
    %v905 = vld [vmem:[#allocation2 + $0xa3] sm:$0xff]
    %v906 = vld [vmem:[#allocation2 + $0xab] sm:$0xff]
    %v907 = vld [vmem:[#allocation2 + $0xb3] sm:$0xff]
    %v908 = vld [vmem:[#allocation2 + $0xbb] sm:$0xff]
    %v909 = vld [vmem:[#allocation2 + $0xc3] sm:$0xff]
    %v910 = vld [vmem:[#allocation2 + $0xcb] sm:$0xff]
    %v911 = vld [vmem:[#allocation2 + $0xd3] sm:$0xff]
    %v912 = vld [vmem:[#allocation2 + $0xdb] sm:$0xff]
    %v913 = vld [vmem:[#allocation2 + $0xe3] sm:$0xff]
    %v914 = vld [vmem:[#allocation2 + $0xeb] sm:$0xff]
    %v915 = vld [vmem:[#allocation2 + $0xf3] sm:$0xff]
    %v916 = vld [vmem:[#allocation2 + $0xfb] sm:$0xff]
    %v917 = vpack.c.bf16 %v886, %v885
    %v918 = vpack.c.bf16 %v888, %v887
    %v919 = vpack.c.bf16 %v890, %v889
    %v920 = vpack.c.bf16 %v892, %v891
    %v921 = vpack.c.bf16 %v894, %v893
    %v922 = vpack.c.bf16 %v896, %v895
    %v923 = vpack.c.bf16 %v898, %v897
    %v924 = vpack.c.bf16 %v900, %v899
    %v925 = vpack.c.bf16 %v902, %v901
    %v926 = vpack.c.bf16 %v904, %v903
    %v927 = vpack.c.bf16 %v906, %v905
    %v928 = vpack.c.bf16 %v908, %v907
    %v929 = vpack.c.bf16 %v910, %v909
    %v930 = vpack.c.bf16 %v912, %v911
    %v931 = vpack.c.bf16 %v914, %v913
    %v932 = vpack.c.bf16 %v916, %v915
    %s933 = scalar_lea.vmem [#allocation7], 48
    %v934 = vld [vmem:[%s933] sm:$0xf]
    %v935 = vld [vmem:[%s933 + $0x4] sm:$0xf]
    %v936 = vld [vmem:[%s933 + $0x8] sm:$0xf]
    %v937 = vld [vmem:[%s933 + $0xc] sm:$0xf]
    %v942 = vunpack.c.l.b16 %v934
    %v943 = vunpack.c.l.b16 %v935
    %v944 = vunpack.c.l.b16 %v936
    %v945 = vunpack.c.l.b16 %v937
    %v946 = vpack.c.b16 %v943, %v942
    %v947 = vpack.c.b16 %v945, %v944
    %v951 = vsel %vm214, %v917, 0
    %v954 = vsel %vm214, %v918, 0
    %v957 = vsel %vm214, %v919, 0
    %v960 = vsel %vm214, %v920, 0
    %v963 = vsel %vm214, %v921, 0
    %v966 = vsel %vm214, %v922, 0
    %v969 = vsel %vm214, %v923, 0
    %v972 = vsel %vm214, %v924, 0
    %v975 = vsel %vm214, %v925, 0
    %v978 = vsel %vm214, %v926, 0
    %v981 = vsel %vm214, %v927, 0
    %v984 = vsel %vm214, %v928, 0
    %v987 = vsel %vm214, %v929, 0
    %v990 = vsel %vm214, %v930, 0
    %v993 = vsel %vm214, %v931, 0
    %v996 = vsel %vm214, %v932, 0
    %998 = vmatpush.bf16.msra.mxu0 0
    %999 = vmatpush.bf16.msra.mxu0 0
    %1000 = vmatpush.bf16.msra.mxu0 0
    %1001 = vmatpush.bf16.msra.mxu0 0
    %1002 = vmatpush.bf16.msra.mxu0 0
    %1003 = vmatpush.bf16.msra.mxu0 0
    %1004 = vmatpush.bf16.msra.mxu0 %v947
    %1005 = vmatpush.bf16.msra.mxu0 %v946
    %1006 = vmatmul.bf16.gmra.mxu0 %v951
    %v1007 = vpop.f32.mrf.mxu0
    %v1008 = vadd.f32 0.0, %v1007
    %v1009 = vpop.f32.mrf.mxu0
    %v1010 = vadd.f32 0.0, %v1009
    %1011 = vmatmul.bf16.gmra.mxu0 %v954
    %v1012 = vpop.f32.mrf.mxu0
    %v1013 = vadd.f32 0.0, %v1012
    %v1014 = vpop.f32.mrf.mxu0
    %v1015 = vadd.f32 0.0, %v1014
    %1016 = vmatmul.bf16.gmra.mxu0 %v957
    %v1017 = vpop.f32.mrf.mxu0
    %v1018 = vadd.f32 0.0, %v1017
    %v1019 = vpop.f32.mrf.mxu0
    %v1020 = vadd.f32 0.0, %v1019
    %1021 = vmatmul.bf16.gmra.mxu0 %v960
    %v1022 = vpop.f32.mrf.mxu0
    %v1023 = vadd.f32 0.0, %v1022
    %v1024 = vpop.f32.mrf.mxu0
    %v1025 = vadd.f32 0.0, %v1024
    %1026 = vmatmul.bf16.gmra.mxu0 %v963
    %v1027 = vpop.f32.mrf.mxu0
    %v1028 = vadd.f32 0.0, %v1027
    %v1029 = vpop.f32.mrf.mxu0
    %v1030 = vadd.f32 0.0, %v1029
    %1031 = vmatmul.bf16.gmra.mxu0 %v966
    %v1032 = vpop.f32.mrf.mxu0
    %v1033 = vadd.f32 0.0, %v1032
    %v1034 = vpop.f32.mrf.mxu0
    %v1035 = vadd.f32 0.0, %v1034
    %1036 = vmatmul.bf16.gmra.mxu0 %v969
    %v1037 = vpop.f32.mrf.mxu0
    %v1038 = vadd.f32 0.0, %v1037
    %v1039 = vpop.f32.mrf.mxu0
    %v1040 = vadd.f32 0.0, %v1039
    %1041 = vmatmul.bf16.gmra.mxu0 %v972
    %v1042 = vpop.f32.mrf.mxu0
    %v1043 = vadd.f32 0.0, %v1042
    %v1044 = vpop.f32.mrf.mxu0
    %v1045 = vadd.f32 0.0, %v1044
    %1046 = vmatmul.bf16.gmra.mxu0 %v975
    %v1047 = vpop.f32.mrf.mxu0
    %v1048 = vadd.f32 0.0, %v1047
    %v1049 = vpop.f32.mrf.mxu0
    %v1050 = vadd.f32 0.0, %v1049
    %1051 = vmatmul.bf16.gmra.mxu0 %v978
    %v1052 = vpop.f32.mrf.mxu0
    %v1053 = vadd.f32 0.0, %v1052
    %v1054 = vpop.f32.mrf.mxu0
    %v1055 = vadd.f32 0.0, %v1054
    %1056 = vmatmul.bf16.gmra.mxu0 %v981
    %v1057 = vpop.f32.mrf.mxu0
    %v1058 = vadd.f32 0.0, %v1057
    %v1059 = vpop.f32.mrf.mxu0
    %v1060 = vadd.f32 0.0, %v1059
    %1061 = vmatmul.bf16.gmra.mxu0 %v984
    %v1062 = vpop.f32.mrf.mxu0
    %v1063 = vadd.f32 0.0, %v1062
    %v1064 = vpop.f32.mrf.mxu0
    %v1065 = vadd.f32 0.0, %v1064
    %1066 = vmatmul.bf16.gmra.mxu0 %v987
    %v1067 = vpop.f32.mrf.mxu0
    %v1068 = vadd.f32 0.0, %v1067
    %v1069 = vpop.f32.mrf.mxu0
    %v1070 = vadd.f32 0.0, %v1069
    %1071 = vmatmul.bf16.gmra.mxu0 %v990
    %v1072 = vpop.f32.mrf.mxu0
    %v1073 = vadd.f32 0.0, %v1072
    %v1074 = vpop.f32.mrf.mxu0
    %v1075 = vadd.f32 0.0, %v1074
    %1076 = vmatmul.bf16.gmra.mxu0 %v993
    %v1077 = vpop.f32.mrf.mxu0
    %v1078 = vadd.f32 0.0, %v1077
    %v1079 = vpop.f32.mrf.mxu0
    %v1080 = vadd.f32 0.0, %v1079
    %1081 = vmatmul.bf16.gmra.mxu0 %v996
    %v1082 = vpop.f32.mrf.mxu0
    %v1083 = vadd.f32 0.0, %v1082
    %v1084 = vpop.f32.mrf.mxu0
    %v1085 = vadd.f32 0.0, %v1084
    %1086 = vdwg.mxu0
    %v1087 = vadd.f32 %v853, %v1008
    %v1088 = vadd.f32 %v854, %v1010
    %v1089 = vadd.f32 %v855, %v1013
    %v1090 = vadd.f32 %v856, %v1015
    %v1091 = vadd.f32 %v857, %v1018
    %v1092 = vadd.f32 %v858, %v1020
    %v1093 = vadd.f32 %v859, %v1023
    %v1094 = vadd.f32 %v860, %v1025
    %v1095 = vadd.f32 %v861, %v1028
    %v1096 = vadd.f32 %v862, %v1030
    %v1097 = vadd.f32 %v863, %v1033
    %v1098 = vadd.f32 %v864, %v1035
    %v1099 = vadd.f32 %v865, %v1038
    %v1100 = vadd.f32 %v866, %v1040
    %v1101 = vadd.f32 %v867, %v1043
    %v1102 = vadd.f32 %v868, %v1045
    %v1103 = vadd.f32 %v869, %v1048
    %v1104 = vadd.f32 %v870, %v1050
    %v1105 = vadd.f32 %v871, %v1053
    %v1106 = vadd.f32 %v872, %v1055
    %v1107 = vadd.f32 %v873, %v1058
    %v1108 = vadd.f32 %v874, %v1060
    %v1109 = vadd.f32 %v875, %v1063
    %v1110 = vadd.f32 %v876, %v1065
    %v1111 = vadd.f32 %v877, %v1068
    %v1112 = vadd.f32 %v878, %v1070
    %v1113 = vadd.f32 %v879, %v1073
    %v1114 = vadd.f32 %v880, %v1075
    %v1115 = vadd.f32 %v881, %v1078
    %v1116 = vadd.f32 %v882, %v1080
    %v1117 = vadd.f32 %v883, %v1083
    %v1118 = vadd.f32 %v884, %v1085
    %v1119 = vld [vmem:[#allocation2 + $0x4] sm:$0xff]
    %v1120 = vld [vmem:[#allocation2 + $0xc] sm:$0xff]
    %v1121 = vld [vmem:[#allocation2 + $0x14] sm:$0xff]
    %v1122 = vld [vmem:[#allocation2 + $0x1c] sm:$0xff]
    %v1123 = vld [vmem:[#allocation2 + $0x24] sm:$0xff]
    %v1124 = vld [vmem:[#allocation2 + $0x2c] sm:$0xff]
    %v1125 = vld [vmem:[#allocation2 + $0x34] sm:$0xff]
    %v1126 = vld [vmem:[#allocation2 + $0x3c] sm:$0xff]
    %v1127 = vld [vmem:[#allocation2 + $0x44] sm:$0xff]
    %v1128 = vld [vmem:[#allocation2 + $0x4c] sm:$0xff]
    %v1129 = vld [vmem:[#allocation2 + $0x54] sm:$0xff]
    %v1130 = vld [vmem:[#allocation2 + $0x5c] sm:$0xff]
    %v1131 = vld [vmem:[#allocation2 + $0x64] sm:$0xff]
    %v1132 = vld [vmem:[#allocation2 + $0x6c] sm:$0xff]
    %v1133 = vld [vmem:[#allocation2 + $0x74] sm:$0xff]
    %v1134 = vld [vmem:[#allocation2 + $0x7c] sm:$0xff]
    %v1135 = vld [vmem:[#allocation2 + $0x84] sm:$0xff]
    %v1136 = vld [vmem:[#allocation2 + $0x8c] sm:$0xff]
    %v1137 = vld [vmem:[#allocation2 + $0x94] sm:$0xff]
    %v1138 = vld [vmem:[#allocation2 + $0x9c] sm:$0xff]
    %v1139 = vld [vmem:[#allocation2 + $0xa4] sm:$0xff]
    %v1140 = vld [vmem:[#allocation2 + $0xac] sm:$0xff]
    %v1141 = vld [vmem:[#allocation2 + $0xb4] sm:$0xff]
    %v1142 = vld [vmem:[#allocation2 + $0xbc] sm:$0xff]
    %v1143 = vld [vmem:[#allocation2 + $0xc4] sm:$0xff]
    %v1144 = vld [vmem:[#allocation2 + $0xcc] sm:$0xff]
    %v1145 = vld [vmem:[#allocation2 + $0xd4] sm:$0xff]
    %v1146 = vld [vmem:[#allocation2 + $0xdc] sm:$0xff]
    %v1147 = vld [vmem:[#allocation2 + $0xe4] sm:$0xff]
    %v1148 = vld [vmem:[#allocation2 + $0xec] sm:$0xff]
    %v1149 = vld [vmem:[#allocation2 + $0xf4] sm:$0xff]
    %v1150 = vld [vmem:[#allocation2 + $0xfc] sm:$0xff]
    %v1151 = vpack.c.bf16 %v1120, %v1119
    %v1152 = vpack.c.bf16 %v1122, %v1121
    %v1153 = vpack.c.bf16 %v1124, %v1123
    %v1154 = vpack.c.bf16 %v1126, %v1125
    %v1155 = vpack.c.bf16 %v1128, %v1127
    %v1156 = vpack.c.bf16 %v1130, %v1129
    %v1157 = vpack.c.bf16 %v1132, %v1131
    %v1158 = vpack.c.bf16 %v1134, %v1133
    %v1159 = vpack.c.bf16 %v1136, %v1135
    %v1160 = vpack.c.bf16 %v1138, %v1137
    %v1161 = vpack.c.bf16 %v1140, %v1139
    %v1162 = vpack.c.bf16 %v1142, %v1141
    %v1163 = vpack.c.bf16 %v1144, %v1143
    %v1164 = vpack.c.bf16 %v1146, %v1145
    %v1165 = vpack.c.bf16 %v1148, %v1147
    %v1166 = vpack.c.bf16 %v1150, %v1149
    %s1167 = scalar_lea.vmem [#allocation7], 64
    %v1168 = vld [vmem:[%s1167] sm:$0xf]
    %v1169 = vld [vmem:[%s1167 + $0x4] sm:$0xf]
    %v1170 = vld [vmem:[%s1167 + $0x8] sm:$0xf]
    %v1171 = vld [vmem:[%s1167 + $0xc] sm:$0xf]
    %v1176 = vunpack.c.l.b16 %v1168
    %v1177 = vunpack.c.l.b16 %v1169
    %v1178 = vunpack.c.l.b16 %v1170
    %v1179 = vunpack.c.l.b16 %v1171
    %v1180 = vpack.c.b16 %v1177, %v1176
    %v1181 = vpack.c.b16 %v1179, %v1178
    %v1185 = vsel %vm214, %v1151, 0
    %v1188 = vsel %vm214, %v1152, 0
    %v1191 = vsel %vm214, %v1153, 0
    %v1194 = vsel %vm214, %v1154, 0
    %v1197 = vsel %vm214, %v1155, 0
    %v1200 = vsel %vm214, %v1156, 0
    %v1203 = vsel %vm214, %v1157, 0
    %v1206 = vsel %vm214, %v1158, 0
    %v1209 = vsel %vm214, %v1159, 0
    %v1212 = vsel %vm214, %v1160, 0
    %v1215 = vsel %vm214, %v1161, 0
    %v1218 = vsel %vm214, %v1162, 0
    %v1221 = vsel %vm214, %v1163, 0
    %v1224 = vsel %vm214, %v1164, 0
    %v1227 = vsel %vm214, %v1165, 0
    %v1230 = vsel %vm214, %v1166, 0
    %1232 = vmatpush.bf16.msra.mxu0 0
    %1233 = vmatpush.bf16.msra.mxu0 0
    %1234 = vmatpush.bf16.msra.mxu0 0
    %1235 = vmatpush.bf16.msra.mxu0 0
    %1236 = vmatpush.bf16.msra.mxu0 0
    %1237 = vmatpush.bf16.msra.mxu0 0
    %1238 = vmatpush.bf16.msra.mxu0 %v1181
    %1239 = vmatpush.bf16.msra.mxu0 %v1180
    %1240 = vmatmul.bf16.gmra.mxu0 %v1185
    %v1241 = vpop.f32.mrf.mxu0
    %v1242 = vadd.f32 0.0, %v1241
    %v1243 = vpop.f32.mrf.mxu0
    %v1244 = vadd.f32 0.0, %v1243
    %1245 = vmatmul.bf16.gmra.mxu0 %v1188
    %v1246 = vpop.f32.mrf.mxu0
    %v1247 = vadd.f32 0.0, %v1246
    %v1248 = vpop.f32.mrf.mxu0
    %v1249 = vadd.f32 0.0, %v1248
    %1250 = vmatmul.bf16.gmra.mxu0 %v1191
    %v1251 = vpop.f32.mrf.mxu0
    %v1252 = vadd.f32 0.0, %v1251
    %v1253 = vpop.f32.mrf.mxu0
    %v1254 = vadd.f32 0.0, %v1253
    %1255 = vmatmul.bf16.gmra.mxu0 %v1194
    %v1256 = vpop.f32.mrf.mxu0
    %v1257 = vadd.f32 0.0, %v1256
    %v1258 = vpop.f32.mrf.mxu0
    %v1259 = vadd.f32 0.0, %v1258
    %1260 = vmatmul.bf16.gmra.mxu0 %v1197
    %v1261 = vpop.f32.mrf.mxu0
    %v1262 = vadd.f32 0.0, %v1261
    %v1263 = vpop.f32.mrf.mxu0
    %v1264 = vadd.f32 0.0, %v1263
    %1265 = vmatmul.bf16.gmra.mxu0 %v1200
    %v1266 = vpop.f32.mrf.mxu0
    %v1267 = vadd.f32 0.0, %v1266
    %v1268 = vpop.f32.mrf.mxu0
    %v1269 = vadd.f32 0.0, %v1268
    %1270 = vmatmul.bf16.gmra.mxu0 %v1203
    %v1271 = vpop.f32.mrf.mxu0
    %v1272 = vadd.f32 0.0, %v1271
    %v1273 = vpop.f32.mrf.mxu0
    %v1274 = vadd.f32 0.0, %v1273
    %1275 = vmatmul.bf16.gmra.mxu0 %v1206
    %v1276 = vpop.f32.mrf.mxu0
    %v1277 = vadd.f32 0.0, %v1276
    %v1278 = vpop.f32.mrf.mxu0
    %v1279 = vadd.f32 0.0, %v1278
    %1280 = vmatmul.bf16.gmra.mxu0 %v1209
    %v1281 = vpop.f32.mrf.mxu0
    %v1282 = vadd.f32 0.0, %v1281
    %v1283 = vpop.f32.mrf.mxu0
    %v1284 = vadd.f32 0.0, %v1283
    %1285 = vmatmul.bf16.gmra.mxu0 %v1212
    %v1286 = vpop.f32.mrf.mxu0
    %v1287 = vadd.f32 0.0, %v1286
    %v1288 = vpop.f32.mrf.mxu0
    %v1289 = vadd.f32 0.0, %v1288
    %1290 = vmatmul.bf16.gmra.mxu0 %v1215
    %v1291 = vpop.f32.mrf.mxu0
    %v1292 = vadd.f32 0.0, %v1291
    %v1293 = vpop.f32.mrf.mxu0
    %v1294 = vadd.f32 0.0, %v1293
    %1295 = vmatmul.bf16.gmra.mxu0 %v1218
    %v1296 = vpop.f32.mrf.mxu0
    %v1297 = vadd.f32 0.0, %v1296
    %v1298 = vpop.f32.mrf.mxu0
    %v1299 = vadd.f32 0.0, %v1298
    %1300 = vmatmul.bf16.gmra.mxu0 %v1221
    %v1301 = vpop.f32.mrf.mxu0
    %v1302 = vadd.f32 0.0, %v1301
    %v1303 = vpop.f32.mrf.mxu0
    %v1304 = vadd.f32 0.0, %v1303
    %1305 = vmatmul.bf16.gmra.mxu0 %v1224
    %v1306 = vpop.f32.mrf.mxu0
    %v1307 = vadd.f32 0.0, %v1306
    %v1308 = vpop.f32.mrf.mxu0
    %v1309 = vadd.f32 0.0, %v1308
    %1310 = vmatmul.bf16.gmra.mxu0 %v1227
    %v1311 = vpop.f32.mrf.mxu0
    %v1312 = vadd.f32 0.0, %v1311
    %v1313 = vpop.f32.mrf.mxu0
    %v1314 = vadd.f32 0.0, %v1313
    %1315 = vmatmul.bf16.gmra.mxu0 %v1230
    %v1316 = vpop.f32.mrf.mxu0
    %v1317 = vadd.f32 0.0, %v1316
    %v1318 = vpop.f32.mrf.mxu0
    %v1319 = vadd.f32 0.0, %v1318
    %1320 = vdwg.mxu0
    %v1321 = vadd.f32 %v1087, %v1242
    %v1322 = vadd.f32 %v1088, %v1244
    %v1323 = vadd.f32 %v1089, %v1247
    %v1324 = vadd.f32 %v1090, %v1249
    %v1325 = vadd.f32 %v1091, %v1252
    %v1326 = vadd.f32 %v1092, %v1254
    %v1327 = vadd.f32 %v1093, %v1257
    %v1328 = vadd.f32 %v1094, %v1259
    %v1329 = vadd.f32 %v1095, %v1262
    %v1330 = vadd.f32 %v1096, %v1264
    %v1331 = vadd.f32 %v1097, %v1267
    %v1332 = vadd.f32 %v1098, %v1269
    %v1333 = vadd.f32 %v1099, %v1272
    %v1334 = vadd.f32 %v1100, %v1274
    %v1335 = vadd.f32 %v1101, %v1277
    %v1336 = vadd.f32 %v1102, %v1279
    %v1337 = vadd.f32 %v1103, %v1282
    %v1338 = vadd.f32 %v1104, %v1284
    %v1339 = vadd.f32 %v1105, %v1287
    %v1340 = vadd.f32 %v1106, %v1289
    %v1341 = vadd.f32 %v1107, %v1292
    %v1342 = vadd.f32 %v1108, %v1294
    %v1343 = vadd.f32 %v1109, %v1297
    %v1344 = vadd.f32 %v1110, %v1299
    %v1345 = vadd.f32 %v1111, %v1302
    %v1346 = vadd.f32 %v1112, %v1304
    %v1347 = vadd.f32 %v1113, %v1307
    %v1348 = vadd.f32 %v1114, %v1309
    %v1349 = vadd.f32 %v1115, %v1312
    %v1350 = vadd.f32 %v1116, %v1314
    %v1351 = vadd.f32 %v1117, %v1317
    %v1352 = vadd.f32 %v1118, %v1319
    %v1353 = vld [vmem:[#allocation9] sm:$0x1]
    %v1355 = vperm.slane %v1353, 0
    %v1357 = vadd.f32 %v1321, %v1355
    %v1358 = vadd.f32 %v1322, %v1355
    %v1359 = vadd.f32 %v1323, %v1355
    %v1360 = vadd.f32 %v1324, %v1355
    %v1361 = vadd.f32 %v1325, %v1355
    %v1362 = vadd.f32 %v1326, %v1355
    %v1363 = vadd.f32 %v1327, %v1355
    %v1364 = vadd.f32 %v1328, %v1355
    %v1365 = vadd.f32 %v1329, %v1355
    %v1366 = vadd.f32 %v1330, %v1355
    %v1367 = vadd.f32 %v1331, %v1355
    %v1368 = vadd.f32 %v1332, %v1355
    %v1369 = vadd.f32 %v1333, %v1355
    %v1370 = vadd.f32 %v1334, %v1355
    %v1371 = vadd.f32 %v1335, %v1355
    %v1372 = vadd.f32 %v1336, %v1355
    %v1373 = vadd.f32 %v1337, %v1355
    %v1374 = vadd.f32 %v1338, %v1355
    %v1375 = vadd.f32 %v1339, %v1355
    %v1376 = vadd.f32 %v1340, %v1355
    %v1377 = vadd.f32 %v1341, %v1355
    %v1378 = vadd.f32 %v1342, %v1355
    %v1379 = vadd.f32 %v1343, %v1355
    %v1380 = vadd.f32 %v1344, %v1355
    %v1381 = vadd.f32 %v1345, %v1355
    %v1382 = vadd.f32 %v1346, %v1355
    %v1383 = vadd.f32 %v1347, %v1355
    %v1384 = vadd.f32 %v1348, %v1355
    %v1385 = vadd.f32 %v1349, %v1355
    %v1386 = vadd.f32 %v1350, %v1355
    %v1387 = vadd.f32 %v1351, %v1355
    %v1388 = vadd.f32 %v1352, %v1355
    %v1389 = vmax.f32 %v1357, 0.0
    %v1390 = vmax.f32 %v1358, 0.0
    %v1391 = vmax.f32 %v1359, 0.0
    %v1392 = vmax.f32 %v1360, 0.0
    %v1393 = vmax.f32 %v1361, 0.0
    %v1394 = vmax.f32 %v1362, 0.0
    %v1395 = vmax.f32 %v1363, 0.0
    %v1396 = vmax.f32 %v1364, 0.0
    %v1397 = vmax.f32 %v1365, 0.0
    %v1398 = vmax.f32 %v1366, 0.0
    %v1399 = vmax.f32 %v1367, 0.0
    %v1400 = vmax.f32 %v1368, 0.0
    %v1401 = vmax.f32 %v1369, 0.0
    %v1402 = vmax.f32 %v1370, 0.0
    %v1403 = vmax.f32 %v1371, 0.0
    %v1404 = vmax.f32 %v1372, 0.0
    %v1405 = vmax.f32 %v1373, 0.0
    %v1406 = vmax.f32 %v1374, 0.0
    %v1407 = vmax.f32 %v1375, 0.0
    %v1408 = vmax.f32 %v1376, 0.0
    %v1409 = vmax.f32 %v1377, 0.0
    %v1410 = vmax.f32 %v1378, 0.0
    %v1411 = vmax.f32 %v1379, 0.0
    %v1412 = vmax.f32 %v1380, 0.0
    %v1413 = vmax.f32 %v1381, 0.0
    %v1414 = vmax.f32 %v1382, 0.0
    %v1415 = vmax.f32 %v1383, 0.0
    %v1416 = vmax.f32 %v1384, 0.0
    %v1417 = vmax.f32 %v1385, 0.0
    %v1418 = vmax.f32 %v1386, 0.0
    %v1419 = vmax.f32 %v1387, 0.0
    %v1420 = vmax.f32 %v1388, 0.0
    %1421 = vst [vmem:[#allocation3] sm:$0xff] %v1389
    %1422 = vst [vmem:[#allocation3 + $0x8] sm:$0xff] %v1390
    %1423 = vst [vmem:[#allocation3 + $0x10] sm:$0xff] %v1391
    %1424 = vst [vmem:[#allocation3 + $0x18] sm:$0xff] %v1392
    %1425 = vst [vmem:[#allocation3 + $0x20] sm:$0xff] %v1393
    %1426 = vst [vmem:[#allocation3 + $0x28] sm:$0xff] %v1394
    %1427 = vst [vmem:[#allocation3 + $0x30] sm:$0xff] %v1395
    %1428 = vst [vmem:[#allocation3 + $0x38] sm:$0xff] %v1396
    %1429 = vst [vmem:[#allocation3 + $0x40] sm:$0xff] %v1397
    %1430 = vst [vmem:[#allocation3 + $0x48] sm:$0xff] %v1398
    %1431 = vst [vmem:[#allocation3 + $0x50] sm:$0xff] %v1399
    %1432 = vst [vmem:[#allocation3 + $0x58] sm:$0xff] %v1400
    %1433 = vst [vmem:[#allocation3 + $0x60] sm:$0xff] %v1401
    %1434 = vst [vmem:[#allocation3 + $0x68] sm:$0xff] %v1402
    %1435 = vst [vmem:[#allocation3 + $0x70] sm:$0xff] %v1403
    %1436 = vst [vmem:[#allocation3 + $0x78] sm:$0xff] %v1404
    %1437 = vst [vmem:[#allocation3 + $0x80] sm:$0xff] %v1405
    %1438 = vst [vmem:[#allocation3 + $0x88] sm:$0xff] %v1406
    %1439 = vst [vmem:[#allocation3 + $0x90] sm:$0xff] %v1407
    %1440 = vst [vmem:[#allocation3 + $0x98] sm:$0xff] %v1408
    %1441 = vst [vmem:[#allocation3 + $0xa0] sm:$0xff] %v1409
    %1442 = vst [vmem:[#allocation3 + $0xa8] sm:$0xff] %v1410
    %1443 = vst [vmem:[#allocation3 + $0xb0] sm:$0xff] %v1411
    %1444 = vst [vmem:[#allocation3 + $0xb8] sm:$0xff] %v1412
    %1445 = vst [vmem:[#allocation3 + $0xc0] sm:$0xff] %v1413
    %1446 = vst [vmem:[#allocation3 + $0xc8] sm:$0xff] %v1414
    %1447 = vst [vmem:[#allocation3 + $0xd0] sm:$0xff] %v1415
    %1448 = vst [vmem:[#allocation3 + $0xd8] sm:$0xff] %v1416
    %1449 = vst [vmem:[#allocation3 + $0xe0] sm:$0xff] %v1417
    %1450 = vst [vmem:[#allocation3 + $0xe8] sm:$0xff] %v1418
    %1451 = vst [vmem:[#allocation3 + $0xf0] sm:$0xff] %v1419
    %1452 = vst [vmem:[#allocation3 + $0xf8] sm:$0xff] %v1420
    %v1453 = vld [vmem:[#allocation3] ss:$2 sm:$0xff]
    %s1454 = scalar_lea.vmem [#allocation3], 16
    %v1455 = vld [vmem:[%s1454] ss:$2 sm:$0xff]
    %s1456 = scalar_lea.vmem [#allocation3], 32
    %v1457 = vld [vmem:[%s1456] ss:$2 sm:$0xff]
    %s1458 = scalar_lea.vmem [#allocation3], 48
    %v1459 = vld [vmem:[%s1458] ss:$2 sm:$0xff]
    %s1460 = scalar_lea.vmem [#allocation3], 64
    %v1461 = vld [vmem:[%s1460] ss:$2 sm:$0xff]
    %s1462 = scalar_lea.vmem [#allocation3], 80
    %v1463 = vld [vmem:[%s1462] ss:$2 sm:$0xff]
    %s1464 = scalar_lea.vmem [#allocation3], 96
    %v1465 = vld [vmem:[%s1464] ss:$2 sm:$0xff]
    %s1466 = scalar_lea.vmem [#allocation3], 112
    %v1467 = vld [vmem:[%s1466] ss:$2 sm:$0xff]
    %s1468 = scalar_lea.vmem [#allocation3], 128
    %v1469 = vld [vmem:[%s1468] ss:$2 sm:$0xff]
    %s1470 = scalar_lea.vmem [#allocation3], 144
    %v1471 = vld [vmem:[%s1470] ss:$2 sm:$0xff]
    %s1472 = scalar_lea.vmem [#allocation3], 160
    %v1473 = vld [vmem:[%s1472] ss:$2 sm:$0xff]
    %s1474 = scalar_lea.vmem [#allocation3], 176
    %v1475 = vld [vmem:[%s1474] ss:$2 sm:$0xff]
    %s1476 = scalar_lea.vmem [#allocation3], 192
    %v1477 = vld [vmem:[%s1476] ss:$2 sm:$0xff]
    %s1478 = scalar_lea.vmem [#allocation3], 208
    %v1479 = vld [vmem:[%s1478] ss:$2 sm:$0xff]
    %s1480 = scalar_lea.vmem [#allocation3], 224
    %v1481 = vld [vmem:[%s1480] ss:$2 sm:$0xff]
    %s1482 = scalar_lea.vmem [#allocation3], 240
    %v1483 = vld [vmem:[%s1482] ss:$2 sm:$0xff]
    %s1484 = scalar_lea.vmem [#allocation3], 1
    %v1485 = vld [vmem:[%s1484] ss:$2 sm:$0xff]
    %s1486 = scalar_lea.vmem [#allocation3], 17
    %v1487 = vld [vmem:[%s1486] ss:$2 sm:$0xff]
    %s1488 = scalar_lea.vmem [#allocation3], 33
    %v1489 = vld [vmem:[%s1488] ss:$2 sm:$0xff]
    %s1490 = scalar_lea.vmem [#allocation3], 49
    %v1491 = vld [vmem:[%s1490] ss:$2 sm:$0xff]
    %s1492 = scalar_lea.vmem [#allocation3], 65
    %v1493 = vld [vmem:[%s1492] ss:$2 sm:$0xff]
    %s1494 = scalar_lea.vmem [#allocation3], 81
    %v1495 = vld [vmem:[%s1494] ss:$2 sm:$0xff]
    %s1496 = scalar_lea.vmem [#allocation3], 97
    %v1497 = vld [vmem:[%s1496] ss:$2 sm:$0xff]
    %s1498 = scalar_lea.vmem [#allocation3], 113
    %v1499 = vld [vmem:[%s1498] ss:$2 sm:$0xff]
    %s1500 = scalar_lea.vmem [#allocation3], 129
    %v1501 = vld [vmem:[%s1500] ss:$2 sm:$0xff]
    %s1502 = scalar_lea.vmem [#allocation3], 145
    %v1503 = vld [vmem:[%s1502] ss:$2 sm:$0xff]
    %s1504 = scalar_lea.vmem [#allocation3], 161
    %v1505 = vld [vmem:[%s1504] ss:$2 sm:$0xff]
    %s1506 = scalar_lea.vmem [#allocation3], 177
    %v1507 = vld [vmem:[%s1506] ss:$2 sm:$0xff]
    %s1508 = scalar_lea.vmem [#allocation3], 193
    %v1509 = vld [vmem:[%s1508] ss:$2 sm:$0xff]
    %s1510 = scalar_lea.vmem [#allocation3], 209
    %v1511 = vld [vmem:[%s1510] ss:$2 sm:$0xff]
    %s1512 = scalar_lea.vmem [#allocation3], 225
    %v1513 = vld [vmem:[%s1512] ss:$2 sm:$0xff]
    %s1514 = scalar_lea.vmem [#allocation3], 241
    %v1515 = vld [vmem:[%s1514] ss:$2 sm:$0xff]
    %v1516 = vmax.f32 %v1453, %v1485
    %v1517 = vmax.f32 %v1455, %v1487
    %v1518 = vmax.f32 %v1457, %v1489
    %v1519 = vmax.f32 %v1459, %v1491
    %v1520 = vmax.f32 %v1461, %v1493
    %v1521 = vmax.f32 %v1463, %v1495
    %v1522 = vmax.f32 %v1465, %v1497
    %v1523 = vmax.f32 %v1467, %v1499
    %v1524 = vmax.f32 %v1469, %v1501
    %v1525 = vmax.f32 %v1471, %v1503
    %v1526 = vmax.f32 %v1473, %v1505
    %v1527 = vmax.f32 %v1475, %v1507
    %v1528 = vmax.f32 %v1477, %v1509
    %v1529 = vmax.f32 %v1479, %v1511
    %v1530 = vmax.f32 %v1481, %v1513
    %v1531 = vmax.f32 %v1483, %v1515
    %1532 = vrot.lane.b32.xlu0 %v1516, 124
    %v1533 = vpop.permute.xlu0 %1532
    %1534 = vrot.lane.b32.xlu0 %v1517, 124
    %v1535 = vpop.permute.xlu0 %1534
    %1536 = vrot.lane.b32.xlu0 %v1518, 124
    %v1537 = vpop.permute.xlu0 %1536
    %1538 = vrot.lane.b32.xlu0 %v1519, 124
    %v1539 = vpop.permute.xlu0 %1538
    %1540 = vrot.lane.b32.xlu0 %v1520, 124
    %v1541 = vpop.permute.xlu0 %1540
    %1542 = vrot.lane.b32.xlu0 %v1521, 124
    %v1543 = vpop.permute.xlu0 %1542
    %1544 = vrot.lane.b32.xlu0 %v1522, 124
    %v1545 = vpop.permute.xlu0 %1544
    %1546 = vrot.lane.b32.xlu0 %v1523, 124
    %v1547 = vpop.permute.xlu0 %1546
    %1548 = vrot.lane.b32.xlu0 %v1524, 124
    %v1549 = vpop.permute.xlu0 %1548
    %1550 = vrot.lane.b32.xlu0 %v1525, 124
    %v1551 = vpop.permute.xlu0 %1550
    %1552 = vrot.lane.b32.xlu0 %v1526, 124
    %v1553 = vpop.permute.xlu0 %1552
    %1554 = vrot.lane.b32.xlu0 %v1527, 124
    %v1555 = vpop.permute.xlu0 %1554
    %1556 = vrot.lane.b32.xlu0 %v1528, 124
    %v1557 = vpop.permute.xlu0 %1556
    %1558 = vrot.lane.b32.xlu0 %v1529, 124
    %v1559 = vpop.permute.xlu0 %1558
    %1560 = vrot.lane.b32.xlu0 %v1530, 124
    %v1561 = vpop.permute.xlu0 %1560
    %1562 = vrot.lane.b32.xlu0 %v1531, 124
    %v1563 = vpop.permute.xlu0 %1562
    %v1564 = vmax.f32 %v1516, %v1533
    %v1565 = vmax.f32 %v1517, %v1535
    %v1566 = vmax.f32 %v1518, %v1537
    %v1567 = vmax.f32 %v1519, %v1539
    %v1568 = vmax.f32 %v1520, %v1541
    %v1569 = vmax.f32 %v1521, %v1543
    %v1570 = vmax.f32 %v1522, %v1545
    %v1571 = vmax.f32 %v1523, %v1547
    %v1572 = vmax.f32 %v1524, %v1549
    %v1573 = vmax.f32 %v1525, %v1551
    %v1574 = vmax.f32 %v1526, %v1553
    %v1575 = vmax.f32 %v1527, %v1555
    %v1576 = vmax.f32 %v1528, %v1557
    %v1577 = vmax.f32 %v1529, %v1559
    %v1578 = vmax.f32 %v1530, %v1561
    %v1579 = vmax.f32 %v1531, %v1563
    %v1580 = vlaneseq
    %v1581 = vshrl.u32 %v1580, 7
    %v1582 = vadd.s32 %v1581, 8
    %v1583 = vadd.s32 %v1581, 16
    %v1584 = vadd.s32 %v1581, 24
    %v1585 = vadd.s32 %v1581, 32
    %v1586 = vadd.s32 %v1581, 40
    %v1587 = vadd.s32 %v1581, 48
    %v1588 = vadd.s32 %v1581, 56
    %v1589 = vadd.s32 %v1581, 64
    %v1590 = vadd.s32 %v1581, 72
    %v1591 = vadd.s32 %v1581, 80
    %v1592 = vadd.s32 %v1581, 88
    %v1593 = vadd.s32 %v1581, 96
    %v1594 = vadd.s32 %v1581, 104
    %v1595 = vadd.s32 %v1581, 112
    %v1596 = vadd.s32 %v1581, 120
    %v1597 = vand.u32 %v1581, 15
    %v1598 = vand.u32 %v1582, 15
    %v1599 = vand.u32 %v1583, 15
    %v1600 = vand.u32 %v1584, 15
    %v1601 = vand.u32 %v1585, 15
    %v1602 = vand.u32 %v1586, 15
    %v1603 = vand.u32 %v1587, 15
    %v1604 = vand.u32 %v1588, 15
    %v1605 = vand.u32 %v1589, 15
    %v1606 = vand.u32 %v1590, 15
    %v1607 = vand.u32 %v1591, 15
    %v1608 = vand.u32 %v1592, 15
    %v1609 = vand.u32 %v1593, 15
    %v1610 = vand.u32 %v1594, 15
    %v1611 = vand.u32 %v1595, 15
    %v1612 = vand.u32 %v1596, 15
    %vm1613 = vcmp.lt.s32.totalorder %v1597, 14
    %vm1614 = vcmp.lt.s32.totalorder %v1598, 14
    %vm1615 = vcmp.lt.s32.totalorder %v1599, 14
    %vm1616 = vcmp.lt.s32.totalorder %v1600, 14
    %vm1617 = vcmp.lt.s32.totalorder %v1601, 14
    %vm1618 = vcmp.lt.s32.totalorder %v1602, 14
    %vm1619 = vcmp.lt.s32.totalorder %v1603, 14
    %vm1620 = vcmp.lt.s32.totalorder %v1604, 14
    %vm1621 = vcmp.lt.s32.totalorder %v1605, 14
    %vm1622 = vcmp.lt.s32.totalorder %v1606, 14
    %vm1623 = vcmp.lt.s32.totalorder %v1607, 14
    %vm1624 = vcmp.lt.s32.totalorder %v1608, 14
    %vm1625 = vcmp.lt.s32.totalorder %v1609, 14
    %vm1626 = vcmp.lt.s32.totalorder %v1610, 14
    %vm1627 = vcmp.lt.s32.totalorder %v1611, 14
    %vm1628 = vcmp.lt.s32.totalorder %v1612, 14
    %v1629 = vsel %vm1613, %v1564, 0.0
    %v1630 = vsel %vm1614, %v1565, 0.0
    %v1631 = vsel %vm1615, %v1566, 0.0
    %v1632 = vsel %vm1616, %v1567, 0.0
    %v1633 = vsel %vm1617, %v1568, 0.0
    %v1634 = vsel %vm1618, %v1569, 0.0
    %v1635 = vsel %vm1619, %v1570, 0.0
    %v1636 = vsel %vm1620, %v1571, 0.0
    %v1637 = vsel %vm1621, %v1572, 0.0
    %v1638 = vsel %vm1622, %v1573, 0.0
    %v1639 = vsel %vm1623, %v1574, 0.0
    %v1640 = vsel %vm1624, %v1575, 0.0
    %v1641 = vsel %vm1625, %v1576, 0.0
    %v1642 = vsel %vm1626, %v1577, 0.0
    %v1643 = vsel %vm1627, %v1578, 0.0
    %v1644 = vsel %vm1628, %v1579, 0.0
    %1645 = vst [vmem:[#allocation4] sm:$0x3] 0.0
    %1646 = vst [vmem:[#allocation4 + $0x2] sm:$0xff] %v1629
    %1647 = vst [vmem:[#allocation4 + $0xa] sm:$0xff] %v1630
    %1648 = vst [vmem:[#allocation4 + $0x12] sm:$0xff] %v1631
    %1649 = vst [vmem:[#allocation4 + $0x1a] sm:$0xff] %v1632
    %1650 = vst [vmem:[#allocation4 + $0x22] sm:$0xff] %v1633
    %1651 = vst [vmem:[#allocation4 + $0x2a] sm:$0xff] %v1634
    %1652 = vst [vmem:[#allocation4 + $0x32] sm:$0xff] %v1635
    %1653 = vst [vmem:[#allocation4 + $0x3a] sm:$0xff] %v1636
    %1654 = vst [vmem:[#allocation4 + $0x42] sm:$0xff] %v1637
    %1655 = vst [vmem:[#allocation4 + $0x4a] sm:$0xff] %v1638
    %1656 = vst [vmem:[#allocation4 + $0x52] sm:$0xff] %v1639
    %1657 = vst [vmem:[#allocation4 + $0x5a] sm:$0xff] %v1640
    %1658 = vst [vmem:[#allocation4 + $0x62] sm:$0xff] %v1641
    %1659 = vst [vmem:[#allocation4 + $0x6a] sm:$0xff] %v1642
    %1660 = vst [vmem:[#allocation4 + $0x72] sm:$0xff] %v1643
    %1661 = vst [vmem:[#allocation4 + $0x7a] sm:$0xff] %v1644
    %1662 = vst [vmem:[#allocation4 + $0x82] sm:$0x3f] 0.0
    %v1663 = vld [vmem:[#allocation4] sm:$0xff]
    %v1664 = vld [vmem:[#allocation4 + $0x8] sm:$0xff]
    %v1665 = vld [vmem:[#allocation4 + $0x10] sm:$0xff]
    %v1666 = vld [vmem:[#allocation4 + $0x18] sm:$0xff]
    %v1667 = vld [vmem:[#allocation4 + $0x20] sm:$0xff]
    %v1668 = vld [vmem:[#allocation4 + $0x28] sm:$0xff]
    %v1669 = vld [vmem:[#allocation4 + $0x30] sm:$0xff]
    %v1670 = vld [vmem:[#allocation4 + $0x38] sm:$0xff]
    %v1671 = vld [vmem:[#allocation4 + $0x40] sm:$0xff]
    %v1672 = vld [vmem:[#allocation4 + $0x48] sm:$0xff]
    %v1673 = vld [vmem:[#allocation4 + $0x50] sm:$0xff]
    %v1674 = vld [vmem:[#allocation4 + $0x58] sm:$0xff]
    %v1675 = vld [vmem:[#allocation4 + $0x60] sm:$0xff]
    %v1676 = vld [vmem:[#allocation4 + $0x68] sm:$0xff]
    %v1677 = vld [vmem:[#allocation4 + $0x70] sm:$0xff]
    %v1678 = vld [vmem:[#allocation4 + $0x78] sm:$0xff]
    %v1679 = vpack.c.bf16 %v1664, %v1663
    %v1680 = vpack.c.bf16 %v1666, %v1665
    %v1681 = vpack.c.bf16 %v1668, %v1667
    %v1682 = vpack.c.bf16 %v1670, %v1669
    %v1683 = vpack.c.bf16 %v1672, %v1671
    %v1684 = vpack.c.bf16 %v1674, %v1673
    %v1685 = vpack.c.bf16 %v1676, %v1675
    %v1686 = vpack.c.bf16 %v1678, %v1677
    %v1687 = vld [vmem:[#allocation11] sm:$0xf]
    %v1688 = vld [vmem:[#allocation11 + $0x4] sm:$0xf]
    %v1689 = vld [vmem:[#allocation11 + $0x8] sm:$0xf]
    %v1690 = vld [vmem:[#allocation11 + $0xc] sm:$0xf]
    %v1691 = vld [vmem:[#allocation11 + $0x10] sm:$0xf]
    %v1692 = vld [vmem:[#allocation11 + $0x14] sm:$0xf]
    %v1693 = vld [vmem:[#allocation11 + $0x18] sm:$0xf]
    %v1694 = vld [vmem:[#allocation11 + $0x1c] sm:$0xf]
    %v1695 = vld [vmem:[#allocation11 + $0x20] sm:$0xf]
    %v1696 = vld [vmem:[#allocation11 + $0x24] sm:$0xf]
    %v1697 = vld [vmem:[#allocation11 + $0x28] sm:$0xf]
    %v1698 = vld [vmem:[#allocation11 + $0x2c] sm:$0xf]
    %v1699 = vld [vmem:[#allocation11 + $0x30] sm:$0xf]
    %v1700 = vld [vmem:[#allocation11 + $0x34] sm:$0xf]
    %v1701 = vld [vmem:[#allocation11 + $0x38] sm:$0xf]
    %v1702 = vld [vmem:[#allocation11 + $0x3c] sm:$0xf]
    %v1703 = vld [vmem:[#allocation4 + $0x1] sm:$0xff]
    %v1704 = vld [vmem:[#allocation4 + $0x9] sm:$0xff]
    %v1705 = vld [vmem:[#allocation4 + $0x11] sm:$0xff]
    %v1706 = vld [vmem:[#allocation4 + $0x19] sm:$0xff]
    %v1707 = vld [vmem:[#allocation4 + $0x21] sm:$0xff]
    %v1708 = vld [vmem:[#allocation4 + $0x29] sm:$0xff]
    %v1709 = vld [vmem:[#allocation4 + $0x31] sm:$0xff]
    %v1710 = vld [vmem:[#allocation4 + $0x39] sm:$0xff]
    %v1711 = vld [vmem:[#allocation4 + $0x41] sm:$0xff]
    %v1712 = vld [vmem:[#allocation4 + $0x49] sm:$0xff]
    %v1713 = vld [vmem:[#allocation4 + $0x51] sm:$0xff]
    %v1714 = vld [vmem:[#allocation4 + $0x59] sm:$0xff]
    %v1715 = vld [vmem:[#allocation4 + $0x61] sm:$0xff]
    %v1716 = vld [vmem:[#allocation4 + $0x69] sm:$0xff]
    %v1717 = vld [vmem:[#allocation4 + $0x71] sm:$0xff]
    %v1718 = vld [vmem:[#allocation4 + $0x79] sm:$0xff]
    %v1719 = vpack.c.bf16 %v1704, %v1703
    %v1720 = vpack.c.bf16 %v1706, %v1705
    %v1721 = vpack.c.bf16 %v1708, %v1707
    %v1722 = vpack.c.bf16 %v1710, %v1709
    %v1723 = vpack.c.bf16 %v1712, %v1711
    %v1724 = vpack.c.bf16 %v1714, %v1713
    %v1725 = vpack.c.bf16 %v1716, %v1715
    %v1726 = vpack.c.bf16 %v1718, %v1717
    %s1727 = scalar_lea.vmem [#allocation11], 64
    %v1728 = vld [vmem:[%s1727] sm:$0xf]
    %v1729 = vld [vmem:[%s1727 + $0x4] sm:$0xf]
    %v1730 = vld [vmem:[%s1727 + $0x8] sm:$0xf]
    %v1731 = vld [vmem:[%s1727 + $0xc] sm:$0xf]
    %v1732 = vld [vmem:[%s1727 + $0x10] sm:$0xf]
    %v1733 = vld [vmem:[%s1727 + $0x14] sm:$0xf]
    %v1734 = vld [vmem:[%s1727 + $0x18] sm:$0xf]
    %v1735 = vld [vmem:[%s1727 + $0x1c] sm:$0xf]
    %v1736 = vld [vmem:[%s1727 + $0x20] sm:$0xf]
    %v1737 = vld [vmem:[%s1727 + $0x24] sm:$0xf]
    %v1738 = vld [vmem:[%s1727 + $0x28] sm:$0xf]
    %v1739 = vld [vmem:[%s1727 + $0x2c] sm:$0xf]
    %v1740 = vld [vmem:[%s1727 + $0x30] sm:$0xf]
    %v1741 = vld [vmem:[%s1727 + $0x34] sm:$0xf]
    %v1742 = vld [vmem:[%s1727 + $0x38] sm:$0xf]
    %v1743 = vld [vmem:[%s1727 + $0x3c] sm:$0xf]
    %v1760 = vunpack.c.l.b16 %v1728
    %v1761 = vunpack.c.l.b16 %v1729
    %v1762 = vunpack.c.l.b16 %v1730
    %v1763 = vunpack.c.l.b16 %v1731
    %v1764 = vunpack.c.l.b16 %v1732
    %v1765 = vunpack.c.l.b16 %v1733
    %v1766 = vunpack.c.l.b16 %v1734
    %v1767 = vunpack.c.l.b16 %v1735
    %v1768 = vunpack.c.l.b16 %v1736
    %v1769 = vunpack.c.l.b16 %v1737
    %v1770 = vunpack.c.l.b16 %v1738
    %v1771 = vunpack.c.l.b16 %v1739
    %v1772 = vunpack.c.l.b16 %v1740
    %v1773 = vunpack.c.l.b16 %v1741
    %v1774 = vunpack.c.l.b16 %v1742
    %v1775 = vunpack.c.l.b16 %v1743
    %v1776 = vpack.c.b16 %v1761, %v1760
    %v1777 = vpack.c.b16 %v1763, %v1762
    %v1778 = vpack.c.b16 %v1765, %v1764
    %v1779 = vpack.c.b16 %v1767, %v1766
    %v1780 = vpack.c.b16 %v1769, %v1768
    %v1781 = vpack.c.b16 %v1771, %v1770
    %v1782 = vpack.c.b16 %v1773, %v1772
    %v1783 = vpack.c.b16 %v1775, %v1774
    %1792 = vmatpush.bf16.msra.mxu0 %v1783
    %1793 = vmatpush.bf16.msra.mxu0 %v1782
    %1794 = vmatpush.bf16.msra.mxu0 %v1781
    %1795 = vmatpush.bf16.msra.mxu0 %v1780
    %1796 = vmatpush.bf16.msra.mxu0 %v1779
    %1797 = vmatpush.bf16.msra.mxu0 %v1778
    %1798 = vmatpush.bf16.msra.mxu0 %v1777
    %1799 = vmatpush.bf16.msra.mxu0 %v1776
    %1800 = vmatmul.bf16.gmra.mxu0 %v1719
    %v1801 = vpop.f32.mrf.mxu0
    %v1802 = vadd.f32 0.0, %v1801
    %v1803 = vpop.f32.mrf.mxu0
    %v1804 = vadd.f32 0.0, %v1803
    %1805 = vmatmul.bf16.gmra.mxu0 %v1720
    %v1806 = vpop.f32.mrf.mxu0
    %v1807 = vadd.f32 0.0, %v1806
    %v1808 = vpop.f32.mrf.mxu0
    %v1809 = vadd.f32 0.0, %v1808
    %1810 = vmatmul.bf16.gmra.mxu0 %v1721
    %v1811 = vpop.f32.mrf.mxu0
    %v1812 = vadd.f32 0.0, %v1811
    %v1813 = vpop.f32.mrf.mxu0
    %v1814 = vadd.f32 0.0, %v1813
    %1815 = vmatmul.bf16.gmra.mxu0 %v1722
    %v1816 = vpop.f32.mrf.mxu0
    %v1817 = vadd.f32 0.0, %v1816
    %v1818 = vpop.f32.mrf.mxu0
    %v1819 = vadd.f32 0.0, %v1818
    %1820 = vmatmul.bf16.gmra.mxu0 %v1723
    %v1821 = vpop.f32.mrf.mxu0
    %v1822 = vadd.f32 0.0, %v1821
    %v1823 = vpop.f32.mrf.mxu0
    %v1824 = vadd.f32 0.0, %v1823
    %1825 = vmatmul.bf16.gmra.mxu0 %v1724
    %v1826 = vpop.f32.mrf.mxu0
    %v1827 = vadd.f32 0.0, %v1826
    %v1828 = vpop.f32.mrf.mxu0
    %v1829 = vadd.f32 0.0, %v1828
    %1830 = vmatmul.bf16.gmra.mxu0 %v1725
    %v1831 = vpop.f32.mrf.mxu0
    %v1832 = vadd.f32 0.0, %v1831
    %v1833 = vpop.f32.mrf.mxu0
    %v1834 = vadd.f32 0.0, %v1833
    %1835 = vmatmul.bf16.gmra.mxu0 %v1726
    %v1836 = vpop.f32.mrf.mxu0
    %v1837 = vadd.f32 0.0, %v1836
    %v1838 = vpop.f32.mrf.mxu0
    %v1839 = vadd.f32 0.0, %v1838
    %1840 = vdwg.mxu0
    %v1857 = vunpack.c.l.b16 %v1687
    %v1858 = vunpack.c.l.b16 %v1688
    %v1859 = vunpack.c.l.b16 %v1689
    %v1860 = vunpack.c.l.b16 %v1690
    %v1861 = vunpack.c.l.b16 %v1691
    %v1862 = vunpack.c.l.b16 %v1692
    %v1863 = vunpack.c.l.b16 %v1693
    %v1864 = vunpack.c.l.b16 %v1694
    %v1865 = vunpack.c.l.b16 %v1695
    %v1866 = vunpack.c.l.b16 %v1696
    %v1867 = vunpack.c.l.b16 %v1697
    %v1868 = vunpack.c.l.b16 %v1698
    %v1869 = vunpack.c.l.b16 %v1699
    %v1870 = vunpack.c.l.b16 %v1700
    %v1871 = vunpack.c.l.b16 %v1701
    %v1872 = vunpack.c.l.b16 %v1702
    %v1873 = vpack.c.b16 %v1858, %v1857
    %v1874 = vpack.c.b16 %v1860, %v1859
    %v1875 = vpack.c.b16 %v1862, %v1861
    %v1876 = vpack.c.b16 %v1864, %v1863
    %v1877 = vpack.c.b16 %v1866, %v1865
    %v1878 = vpack.c.b16 %v1868, %v1867
    %v1879 = vpack.c.b16 %v1870, %v1869
    %v1880 = vpack.c.b16 %v1872, %v1871
    %1889 = vmatpush.bf16.msra.mxu0 %v1880
    %1890 = vmatpush.bf16.msra.mxu0 %v1879
    %1891 = vmatpush.bf16.msra.mxu0 %v1878
    %1892 = vmatpush.bf16.msra.mxu0 %v1877
    %1893 = vmatpush.bf16.msra.mxu0 %v1876
    %1894 = vmatpush.bf16.msra.mxu0 %v1875
    %1895 = vmatpush.bf16.msra.mxu0 %v1874
    %1896 = vmatpush.bf16.msra.mxu0 %v1873
    %1897 = vmatmul.bf16.gmra.mxu0 %v1679
    %v1898 = vpop.f32.mrf.mxu0
    %v1899 = vadd.f32 %v1802, %v1898
    %v1900 = vpop.f32.mrf.mxu0
    %v1901 = vadd.f32 %v1804, %v1900
    %1902 = vmatmul.bf16.gmra.mxu0 %v1680
    %v1903 = vpop.f32.mrf.mxu0
    %v1904 = vadd.f32 %v1807, %v1903
    %v1905 = vpop.f32.mrf.mxu0
    %v1906 = vadd.f32 %v1809, %v1905
    %1907 = vmatmul.bf16.gmra.mxu0 %v1681
    %v1908 = vpop.f32.mrf.mxu0
    %v1909 = vadd.f32 %v1812, %v1908
    %v1910 = vpop.f32.mrf.mxu0
    %v1911 = vadd.f32 %v1814, %v1910
    %1912 = vmatmul.bf16.gmra.mxu0 %v1682
    %v1913 = vpop.f32.mrf.mxu0
    %v1914 = vadd.f32 %v1817, %v1913
    %v1915 = vpop.f32.mrf.mxu0
    %v1916 = vadd.f32 %v1819, %v1915
    %1917 = vmatmul.bf16.gmra.mxu0 %v1683
    %v1918 = vpop.f32.mrf.mxu0
    %v1919 = vadd.f32 %v1822, %v1918
    %v1920 = vpop.f32.mrf.mxu0
    %v1921 = vadd.f32 %v1824, %v1920
    %1922 = vmatmul.bf16.gmra.mxu0 %v1684
    %v1923 = vpop.f32.mrf.mxu0
    %v1924 = vadd.f32 %v1827, %v1923
    %v1925 = vpop.f32.mrf.mxu0
    %v1926 = vadd.f32 %v1829, %v1925
    %1927 = vmatmul.bf16.gmra.mxu0 %v1685
    %v1928 = vpop.f32.mrf.mxu0
    %v1929 = vadd.f32 %v1832, %v1928
    %v1930 = vpop.f32.mrf.mxu0
    %v1931 = vadd.f32 %v1834, %v1930
    %1932 = vmatmul.bf16.gmra.mxu0 %v1686
    %v1933 = vpop.f32.mrf.mxu0
    %v1934 = vadd.f32 %v1837, %v1933
    %v1935 = vpop.f32.mrf.mxu0
    %v1936 = vadd.f32 %v1839, %v1935
    %1937 = vdwg.mxu0
    %v1938 = vld [vmem:[#allocation4 + $0x2] sm:$0xff]
    %v1939 = vld [vmem:[#allocation4 + $0xa] sm:$0xff]
    %v1940 = vld [vmem:[#allocation4 + $0x12] sm:$0xff]
    %v1941 = vld [vmem:[#allocation4 + $0x1a] sm:$0xff]
    %v1942 = vld [vmem:[#allocation4 + $0x22] sm:$0xff]
    %v1943 = vld [vmem:[#allocation4 + $0x2a] sm:$0xff]
    %v1944 = vld [vmem:[#allocation4 + $0x32] sm:$0xff]
    %v1945 = vld [vmem:[#allocation4 + $0x3a] sm:$0xff]
    %v1946 = vld [vmem:[#allocation4 + $0x42] sm:$0xff]
    %v1947 = vld [vmem:[#allocation4 + $0x4a] sm:$0xff]
    %v1948 = vld [vmem:[#allocation4 + $0x52] sm:$0xff]
    %v1949 = vld [vmem:[#allocation4 + $0x5a] sm:$0xff]
    %v1950 = vld [vmem:[#allocation4 + $0x62] sm:$0xff]
    %v1951 = vld [vmem:[#allocation4 + $0x6a] sm:$0xff]
    %v1952 = vld [vmem:[#allocation4 + $0x72] sm:$0xff]
    %v1953 = vld [vmem:[#allocation4 + $0x7a] sm:$0xff]
    %v1954 = vpack.c.bf16 %v1939, %v1938
    %v1955 = vpack.c.bf16 %v1941, %v1940
    %v1956 = vpack.c.bf16 %v1943, %v1942
    %v1957 = vpack.c.bf16 %v1945, %v1944
    %v1958 = vpack.c.bf16 %v1947, %v1946
    %v1959 = vpack.c.bf16 %v1949, %v1948
    %v1960 = vpack.c.bf16 %v1951, %v1950
    %v1961 = vpack.c.bf16 %v1953, %v1952
    %s1962 = scalar_lea.vmem [#allocation11], 128
    %v1963 = vld [vmem:[%s1962] sm:$0xf]
    %v1964 = vld [vmem:[%s1962 + $0x4] sm:$0xf]
    %v1965 = vld [vmem:[%s1962 + $0x8] sm:$0xf]
    %v1966 = vld [vmem:[%s1962 + $0xc] sm:$0xf]
    %v1967 = vld [vmem:[%s1962 + $0x10] sm:$0xf]
    %v1968 = vld [vmem:[%s1962 + $0x14] sm:$0xf]
    %v1969 = vld [vmem:[%s1962 + $0x18] sm:$0xf]
    %v1970 = vld [vmem:[%s1962 + $0x1c] sm:$0xf]
    %v1971 = vld [vmem:[%s1962 + $0x20] sm:$0xf]
    %v1972 = vld [vmem:[%s1962 + $0x24] sm:$0xf]
    %v1973 = vld [vmem:[%s1962 + $0x28] sm:$0xf]
    %v1974 = vld [vmem:[%s1962 + $0x2c] sm:$0xf]
    %v1975 = vld [vmem:[%s1962 + $0x30] sm:$0xf]
    %v1976 = vld [vmem:[%s1962 + $0x34] sm:$0xf]
    %v1977 = vld [vmem:[%s1962 + $0x38] sm:$0xf]
    %v1978 = vld [vmem:[%s1962 + $0x3c] sm:$0xf]
    %v1995 = vunpack.c.l.b16 %v1963
    %v1996 = vunpack.c.l.b16 %v1964
    %v1997 = vunpack.c.l.b16 %v1965
    %v1998 = vunpack.c.l.b16 %v1966
    %v1999 = vunpack.c.l.b16 %v1967
    %v2000 = vunpack.c.l.b16 %v1968
    %v2001 = vunpack.c.l.b16 %v1969
    %v2002 = vunpack.c.l.b16 %v1970
    %v2003 = vunpack.c.l.b16 %v1971
    %v2004 = vunpack.c.l.b16 %v1972
    %v2005 = vunpack.c.l.b16 %v1973
    %v2006 = vunpack.c.l.b16 %v1974
    %v2007 = vunpack.c.l.b16 %v1975
    %v2008 = vunpack.c.l.b16 %v1976
    %v2009 = vunpack.c.l.b16 %v1977
    %v2010 = vunpack.c.l.b16 %v1978
    %v2011 = vpack.c.b16 %v1996, %v1995
    %v2012 = vpack.c.b16 %v1998, %v1997
    %v2013 = vpack.c.b16 %v2000, %v1999
    %v2014 = vpack.c.b16 %v2002, %v2001
    %v2015 = vpack.c.b16 %v2004, %v2003
    %v2016 = vpack.c.b16 %v2006, %v2005
    %v2017 = vpack.c.b16 %v2008, %v2007
    %v2018 = vpack.c.b16 %v2010, %v2009
    %2027 = vmatpush.bf16.msra.mxu0 %v2018
    %2028 = vmatpush.bf16.msra.mxu0 %v2017
    %2029 = vmatpush.bf16.msra.mxu0 %v2016
    %2030 = vmatpush.bf16.msra.mxu0 %v2015
    %2031 = vmatpush.bf16.msra.mxu0 %v2014
    %2032 = vmatpush.bf16.msra.mxu0 %v2013
    %2033 = vmatpush.bf16.msra.mxu0 %v2012
    %2034 = vmatpush.bf16.msra.mxu0 %v2011
    %2035 = vmatmul.bf16.gmra.mxu0 %v1954
    %v2036 = vpop.f32.mrf.mxu0
    %v2037 = vadd.f32 0.0, %v2036
    %v2038 = vpop.f32.mrf.mxu0
    %v2039 = vadd.f32 0.0, %v2038
    %2040 = vmatmul.bf16.gmra.mxu0 %v1955
    %v2041 = vpop.f32.mrf.mxu0
    %v2042 = vadd.f32 0.0, %v2041
    %v2043 = vpop.f32.mrf.mxu0
    %v2044 = vadd.f32 0.0, %v2043
    %2045 = vmatmul.bf16.gmra.mxu0 %v1956
    %v2046 = vpop.f32.mrf.mxu0
    %v2047 = vadd.f32 0.0, %v2046
    %v2048 = vpop.f32.mrf.mxu0
    %v2049 = vadd.f32 0.0, %v2048
    %2050 = vmatmul.bf16.gmra.mxu0 %v1957
    %v2051 = vpop.f32.mrf.mxu0
    %v2052 = vadd.f32 0.0, %v2051
    %v2053 = vpop.f32.mrf.mxu0
    %v2054 = vadd.f32 0.0, %v2053
    %2055 = vmatmul.bf16.gmra.mxu0 %v1958
    %v2056 = vpop.f32.mrf.mxu0
    %v2057 = vadd.f32 0.0, %v2056
    %v2058 = vpop.f32.mrf.mxu0
    %v2059 = vadd.f32 0.0, %v2058
    %2060 = vmatmul.bf16.gmra.mxu0 %v1959
    %v2061 = vpop.f32.mrf.mxu0
    %v2062 = vadd.f32 0.0, %v2061
    %v2063 = vpop.f32.mrf.mxu0
    %v2064 = vadd.f32 0.0, %v2063
    %2065 = vmatmul.bf16.gmra.mxu0 %v1960
    %v2066 = vpop.f32.mrf.mxu0
    %v2067 = vadd.f32 0.0, %v2066
    %v2068 = vpop.f32.mrf.mxu0
    %v2069 = vadd.f32 0.0, %v2068
    %2070 = vmatmul.bf16.gmra.mxu0 %v1961
    %v2071 = vpop.f32.mrf.mxu0
    %v2072 = vadd.f32 0.0, %v2071
    %v2073 = vpop.f32.mrf.mxu0
    %v2074 = vadd.f32 0.0, %v2073
    %2075 = vdwg.mxu0
    %v2076 = vadd.f32 %v1899, %v2037
    %v2077 = vadd.f32 %v1901, %v2039
    %v2078 = vadd.f32 %v1904, %v2042
    %v2079 = vadd.f32 %v1906, %v2044
    %v2080 = vadd.f32 %v1909, %v2047
    %v2081 = vadd.f32 %v1911, %v2049
    %v2082 = vadd.f32 %v1914, %v2052
    %v2083 = vadd.f32 %v1916, %v2054
    %v2084 = vadd.f32 %v1919, %v2057
    %v2085 = vadd.f32 %v1921, %v2059
    %v2086 = vadd.f32 %v1924, %v2062
    %v2087 = vadd.f32 %v1926, %v2064
    %v2088 = vadd.f32 %v1929, %v2067
    %v2089 = vadd.f32 %v1931, %v2069
    %v2090 = vadd.f32 %v1934, %v2072
    %v2091 = vadd.f32 %v1936, %v2074
    %v2092 = vld [vmem:[#allocation4 + $0x3] sm:$0xff]
    %v2093 = vld [vmem:[#allocation4 + $0xb] sm:$0xff]
    %v2094 = vld [vmem:[#allocation4 + $0x13] sm:$0xff]
    %v2095 = vld [vmem:[#allocation4 + $0x1b] sm:$0xff]
    %v2096 = vld [vmem:[#allocation4 + $0x23] sm:$0xff]
    %v2097 = vld [vmem:[#allocation4 + $0x2b] sm:$0xff]
    %v2098 = vld [vmem:[#allocation4 + $0x33] sm:$0xff]
    %v2099 = vld [vmem:[#allocation4 + $0x3b] sm:$0xff]
    %v2100 = vld [vmem:[#allocation4 + $0x43] sm:$0xff]
    %v2101 = vld [vmem:[#allocation4 + $0x4b] sm:$0xff]
    %v2102 = vld [vmem:[#allocation4 + $0x53] sm:$0xff]
    %v2103 = vld [vmem:[#allocation4 + $0x5b] sm:$0xff]
    %v2104 = vld [vmem:[#allocation4 + $0x63] sm:$0xff]
    %v2105 = vld [vmem:[#allocation4 + $0x6b] sm:$0xff]
    %v2106 = vld [vmem:[#allocation4 + $0x73] sm:$0xff]
    %v2107 = vld [vmem:[#allocation4 + $0x7b] sm:$0xff]
    %v2108 = vpack.c.bf16 %v2093, %v2092
    %v2109 = vpack.c.bf16 %v2095, %v2094
    %v2110 = vpack.c.bf16 %v2097, %v2096
    %v2111 = vpack.c.bf16 %v2099, %v2098
    %v2112 = vpack.c.bf16 %v2101, %v2100
    %v2113 = vpack.c.bf16 %v2103, %v2102
    %v2114 = vpack.c.bf16 %v2105, %v2104
    %v2115 = vpack.c.bf16 %v2107, %v2106
    %s2116 = scalar_lea.vmem [#allocation11], 192
    %v2117 = vld [vmem:[%s2116] sm:$0xf]
    %v2118 = vld [vmem:[%s2116 + $0x4] sm:$0xf]
    %v2119 = vld [vmem:[%s2116 + $0x8] sm:$0xf]
    %v2120 = vld [vmem:[%s2116 + $0xc] sm:$0xf]
    %v2121 = vld [vmem:[%s2116 + $0x10] sm:$0xf]
    %v2122 = vld [vmem:[%s2116 + $0x14] sm:$0xf]
    %v2123 = vld [vmem:[%s2116 + $0x18] sm:$0xf]
    %v2124 = vld [vmem:[%s2116 + $0x1c] sm:$0xf]
    %v2125 = vld [vmem:[%s2116 + $0x20] sm:$0xf]
    %v2126 = vld [vmem:[%s2116 + $0x24] sm:$0xf]
    %v2127 = vld [vmem:[%s2116 + $0x28] sm:$0xf]
    %v2128 = vld [vmem:[%s2116 + $0x2c] sm:$0xf]
    %v2129 = vld [vmem:[%s2116 + $0x30] sm:$0xf]
    %v2130 = vld [vmem:[%s2116 + $0x34] sm:$0xf]
    %v2131 = vld [vmem:[%s2116 + $0x38] sm:$0xf]
    %v2132 = vld [vmem:[%s2116 + $0x3c] sm:$0xf]
    %v2149 = vunpack.c.l.b16 %v2117
    %v2150 = vunpack.c.l.b16 %v2118
    %v2151 = vunpack.c.l.b16 %v2119
    %v2152 = vunpack.c.l.b16 %v2120
    %v2153 = vunpack.c.l.b16 %v2121
    %v2154 = vunpack.c.l.b16 %v2122
    %v2155 = vunpack.c.l.b16 %v2123
    %v2156 = vunpack.c.l.b16 %v2124
    %v2157 = vunpack.c.l.b16 %v2125
    %v2158 = vunpack.c.l.b16 %v2126
    %v2159 = vunpack.c.l.b16 %v2127
    %v2160 = vunpack.c.l.b16 %v2128
    %v2161 = vunpack.c.l.b16 %v2129
    %v2162 = vunpack.c.l.b16 %v2130
    %v2163 = vunpack.c.l.b16 %v2131
    %v2164 = vunpack.c.l.b16 %v2132
    %v2165 = vpack.c.b16 %v2150, %v2149
    %v2166 = vpack.c.b16 %v2152, %v2151
    %v2167 = vpack.c.b16 %v2154, %v2153
    %v2168 = vpack.c.b16 %v2156, %v2155
    %v2169 = vpack.c.b16 %v2158, %v2157
    %v2170 = vpack.c.b16 %v2160, %v2159
    %v2171 = vpack.c.b16 %v2162, %v2161
    %v2172 = vpack.c.b16 %v2164, %v2163
    %2181 = vmatpush.bf16.msra.mxu0 %v2172
    %2182 = vmatpush.bf16.msra.mxu0 %v2171
    %2183 = vmatpush.bf16.msra.mxu0 %v2170
    %2184 = vmatpush.bf16.msra.mxu0 %v2169
    %2185 = vmatpush.bf16.msra.mxu0 %v2168
    %2186 = vmatpush.bf16.msra.mxu0 %v2167
    %2187 = vmatpush.bf16.msra.mxu0 %v2166
    %2188 = vmatpush.bf16.msra.mxu0 %v2165
    %2189 = vmatmul.bf16.gmra.mxu0 %v2108
    %v2190 = vpop.f32.mrf.mxu0
    %v2191 = vadd.f32 0.0, %v2190
    %v2192 = vpop.f32.mrf.mxu0
    %v2193 = vadd.f32 0.0, %v2192
    %2194 = vmatmul.bf16.gmra.mxu0 %v2109
    %v2195 = vpop.f32.mrf.mxu0
    %v2196 = vadd.f32 0.0, %v2195
    %v2197 = vpop.f32.mrf.mxu0
    %v2198 = vadd.f32 0.0, %v2197
    %2199 = vmatmul.bf16.gmra.mxu0 %v2110
    %v2200 = vpop.f32.mrf.mxu0
    %v2201 = vadd.f32 0.0, %v2200
    %v2202 = vpop.f32.mrf.mxu0
    %v2203 = vadd.f32 0.0, %v2202
    %2204 = vmatmul.bf16.gmra.mxu0 %v2111
    %v2205 = vpop.f32.mrf.mxu0
    %v2206 = vadd.f32 0.0, %v2205
    %v2207 = vpop.f32.mrf.mxu0
    %v2208 = vadd.f32 0.0, %v2207
    %2209 = vmatmul.bf16.gmra.mxu0 %v2112
    %v2210 = vpop.f32.mrf.mxu0
    %v2211 = vadd.f32 0.0, %v2210
    %v2212 = vpop.f32.mrf.mxu0
    %v2213 = vadd.f32 0.0, %v2212
    %2214 = vmatmul.bf16.gmra.mxu0 %v2113
    %v2215 = vpop.f32.mrf.mxu0
    %v2216 = vadd.f32 0.0, %v2215
    %v2217 = vpop.f32.mrf.mxu0
    %v2218 = vadd.f32 0.0, %v2217
    %2219 = vmatmul.bf16.gmra.mxu0 %v2114
    %v2220 = vpop.f32.mrf.mxu0
    %v2221 = vadd.f32 0.0, %v2220
    %v2222 = vpop.f32.mrf.mxu0
    %v2223 = vadd.f32 0.0, %v2222
    %2224 = vmatmul.bf16.gmra.mxu0 %v2115
    %v2225 = vpop.f32.mrf.mxu0
    %v2226 = vadd.f32 0.0, %v2225
    %v2227 = vpop.f32.mrf.mxu0
    %v2228 = vadd.f32 0.0, %v2227
    %2229 = vdwg.mxu0
    %v2230 = vadd.f32 %v2076, %v2191
    %v2231 = vadd.f32 %v2077, %v2193
    %v2232 = vadd.f32 %v2078, %v2196
    %v2233 = vadd.f32 %v2079, %v2198
    %v2234 = vadd.f32 %v2080, %v2201
    %v2235 = vadd.f32 %v2081, %v2203
    %v2236 = vadd.f32 %v2082, %v2206
    %v2237 = vadd.f32 %v2083, %v2208
    %v2238 = vadd.f32 %v2084, %v2211
    %v2239 = vadd.f32 %v2085, %v2213
    %v2240 = vadd.f32 %v2086, %v2216
    %v2241 = vadd.f32 %v2087, %v2218
    %v2242 = vadd.f32 %v2088, %v2221
    %v2243 = vadd.f32 %v2089, %v2223
    %v2244 = vadd.f32 %v2090, %v2226
    %v2245 = vadd.f32 %v2091, %v2228
    %v2246 = vld [vmem:[#allocation4 + $0x4] sm:$0xff]
    %v2247 = vld [vmem:[#allocation4 + $0xc] sm:$0xff]
    %v2248 = vld [vmem:[#allocation4 + $0x14] sm:$0xff]
    %v2249 = vld [vmem:[#allocation4 + $0x1c] sm:$0xff]
    %v2250 = vld [vmem:[#allocation4 + $0x24] sm:$0xff]
    %v2251 = vld [vmem:[#allocation4 + $0x2c] sm:$0xff]
    %v2252 = vld [vmem:[#allocation4 + $0x34] sm:$0xff]
    %v2253 = vld [vmem:[#allocation4 + $0x3c] sm:$0xff]
    %v2254 = vld [vmem:[#allocation4 + $0x44] sm:$0xff]
    %v2255 = vld [vmem:[#allocation4 + $0x4c] sm:$0xff]
    %v2256 = vld [vmem:[#allocation4 + $0x54] sm:$0xff]
    %v2257 = vld [vmem:[#allocation4 + $0x5c] sm:$0xff]
    %v2258 = vld [vmem:[#allocation4 + $0x64] sm:$0xff]
    %v2259 = vld [vmem:[#allocation4 + $0x6c] sm:$0xff]
    %v2260 = vld [vmem:[#allocation4 + $0x74] sm:$0xff]
    %v2261 = vld [vmem:[#allocation4 + $0x7c] sm:$0xff]
    %v2262 = vpack.c.bf16 %v2247, %v2246
    %v2263 = vpack.c.bf16 %v2249, %v2248
    %v2264 = vpack.c.bf16 %v2251, %v2250
    %v2265 = vpack.c.bf16 %v2253, %v2252
    %v2266 = vpack.c.bf16 %v2255, %v2254
    %v2267 = vpack.c.bf16 %v2257, %v2256
    %v2268 = vpack.c.bf16 %v2259, %v2258
    %v2269 = vpack.c.bf16 %v2261, %v2260
    %s2270 = scalar_lea.vmem [#allocation11], 256
    %v2271 = vld [vmem:[%s2270] sm:$0xf]
    %v2272 = vld [vmem:[%s2270 + $0x4] sm:$0xf]
    %v2273 = vld [vmem:[%s2270 + $0x8] sm:$0xf]
    %v2274 = vld [vmem:[%s2270 + $0xc] sm:$0xf]
    %v2275 = vld [vmem:[%s2270 + $0x10] sm:$0xf]
    %v2276 = vld [vmem:[%s2270 + $0x14] sm:$0xf]
    %v2277 = vld [vmem:[%s2270 + $0x18] sm:$0xf]
    %v2278 = vld [vmem:[%s2270 + $0x1c] sm:$0xf]
    %v2279 = vld [vmem:[%s2270 + $0x20] sm:$0xf]
    %v2280 = vld [vmem:[%s2270 + $0x24] sm:$0xf]
    %v2281 = vld [vmem:[%s2270 + $0x28] sm:$0xf]
    %v2282 = vld [vmem:[%s2270 + $0x2c] sm:$0xf]
    %v2283 = vld [vmem:[%s2270 + $0x30] sm:$0xf]
    %v2284 = vld [vmem:[%s2270 + $0x34] sm:$0xf]
    %v2285 = vld [vmem:[%s2270 + $0x38] sm:$0xf]
    %v2286 = vld [vmem:[%s2270 + $0x3c] sm:$0xf]
    %v2303 = vunpack.c.l.b16 %v2271
    %v2304 = vunpack.c.l.b16 %v2272
    %v2305 = vunpack.c.l.b16 %v2273
    %v2306 = vunpack.c.l.b16 %v2274
    %v2307 = vunpack.c.l.b16 %v2275
    %v2308 = vunpack.c.l.b16 %v2276
    %v2309 = vunpack.c.l.b16 %v2277
    %v2310 = vunpack.c.l.b16 %v2278
    %v2311 = vunpack.c.l.b16 %v2279
    %v2312 = vunpack.c.l.b16 %v2280
    %v2313 = vunpack.c.l.b16 %v2281
    %v2314 = vunpack.c.l.b16 %v2282
    %v2315 = vunpack.c.l.b16 %v2283
    %v2316 = vunpack.c.l.b16 %v2284
    %v2317 = vunpack.c.l.b16 %v2285
    %v2318 = vunpack.c.l.b16 %v2286
    %v2319 = vpack.c.b16 %v2304, %v2303
    %v2320 = vpack.c.b16 %v2306, %v2305
    %v2321 = vpack.c.b16 %v2308, %v2307
    %v2322 = vpack.c.b16 %v2310, %v2309
    %v2323 = vpack.c.b16 %v2312, %v2311
    %v2324 = vpack.c.b16 %v2314, %v2313
    %v2325 = vpack.c.b16 %v2316, %v2315
    %v2326 = vpack.c.b16 %v2318, %v2317
    %2335 = vmatpush.bf16.msra.mxu0 %v2326
    %2336 = vmatpush.bf16.msra.mxu0 %v2325
    %2337 = vmatpush.bf16.msra.mxu0 %v2324
    %2338 = vmatpush.bf16.msra.mxu0 %v2323
    %2339 = vmatpush.bf16.msra.mxu0 %v2322
    %2340 = vmatpush.bf16.msra.mxu0 %v2321
    %2341 = vmatpush.bf16.msra.mxu0 %v2320
    %2342 = vmatpush.bf16.msra.mxu0 %v2319
    %2343 = vmatmul.bf16.gmra.mxu0 %v2262
    %v2344 = vpop.f32.mrf.mxu0
    %v2345 = vadd.f32 0.0, %v2344
    %v2346 = vpop.f32.mrf.mxu0
    %v2347 = vadd.f32 0.0, %v2346
    %2348 = vmatmul.bf16.gmra.mxu0 %v2263
    %v2349 = vpop.f32.mrf.mxu0
    %v2350 = vadd.f32 0.0, %v2349
    %v2351 = vpop.f32.mrf.mxu0
    %v2352 = vadd.f32 0.0, %v2351
    %2353 = vmatmul.bf16.gmra.mxu0 %v2264
    %v2354 = vpop.f32.mrf.mxu0
    %v2355 = vadd.f32 0.0, %v2354
    %v2356 = vpop.f32.mrf.mxu0
    %v2357 = vadd.f32 0.0, %v2356
    %2358 = vmatmul.bf16.gmra.mxu0 %v2265
    %v2359 = vpop.f32.mrf.mxu0
    %v2360 = vadd.f32 0.0, %v2359
    %v2361 = vpop.f32.mrf.mxu0
    %v2362 = vadd.f32 0.0, %v2361
    %2363 = vmatmul.bf16.gmra.mxu0 %v2266
    %v2364 = vpop.f32.mrf.mxu0
    %v2365 = vadd.f32 0.0, %v2364
    %v2366 = vpop.f32.mrf.mxu0
    %v2367 = vadd.f32 0.0, %v2366
    %2368 = vmatmul.bf16.gmra.mxu0 %v2267
    %v2369 = vpop.f32.mrf.mxu0
    %v2370 = vadd.f32 0.0, %v2369
    %v2371 = vpop.f32.mrf.mxu0
    %v2372 = vadd.f32 0.0, %v2371
    %2373 = vmatmul.bf16.gmra.mxu0 %v2268
    %v2374 = vpop.f32.mrf.mxu0
    %v2375 = vadd.f32 0.0, %v2374
    %v2376 = vpop.f32.mrf.mxu0
    %v2377 = vadd.f32 0.0, %v2376
    %2378 = vmatmul.bf16.gmra.mxu0 %v2269
    %v2379 = vpop.f32.mrf.mxu0
    %v2380 = vadd.f32 0.0, %v2379
    %v2381 = vpop.f32.mrf.mxu0
    %v2382 = vadd.f32 0.0, %v2381
    %2383 = vdwg.mxu0
    %v2384 = vadd.f32 %v2230, %v2345
    %v2385 = vadd.f32 %v2231, %v2347
    %v2386 = vadd.f32 %v2232, %v2350
    %v2387 = vadd.f32 %v2233, %v2352
    %v2388 = vadd.f32 %v2234, %v2355
    %v2389 = vadd.f32 %v2235, %v2357
    %v2390 = vadd.f32 %v2236, %v2360
    %v2391 = vadd.f32 %v2237, %v2362
    %v2392 = vadd.f32 %v2238, %v2365
    %v2393 = vadd.f32 %v2239, %v2367
    %v2394 = vadd.f32 %v2240, %v2370
    %v2395 = vadd.f32 %v2241, %v2372
    %v2396 = vadd.f32 %v2242, %v2375
    %v2397 = vadd.f32 %v2243, %v2377
    %v2398 = vadd.f32 %v2244, %v2380
    %v2399 = vadd.f32 %v2245, %v2382
    %v2400 = vld [vmem:[#allocation12] sm:$0x1]
    %v2402 = vperm.slane %v2400, 0
    %v2404 = vadd.f32 %v2384, %v2402
    %v2405 = vadd.f32 %v2385, %v2402
    %v2406 = vadd.f32 %v2386, %v2402
    %v2407 = vadd.f32 %v2387, %v2402
    %v2408 = vadd.f32 %v2388, %v2402
    %v2409 = vadd.f32 %v2389, %v2402
    %v2410 = vadd.f32 %v2390, %v2402
    %v2411 = vadd.f32 %v2391, %v2402
    %v2412 = vadd.f32 %v2392, %v2402
    %v2413 = vadd.f32 %v2393, %v2402
    %v2414 = vadd.f32 %v2394, %v2402
    %v2415 = vadd.f32 %v2395, %v2402
    %v2416 = vadd.f32 %v2396, %v2402
    %v2417 = vadd.f32 %v2397, %v2402
    %v2418 = vadd.f32 %v2398, %v2402
    %v2419 = vadd.f32 %v2399, %v2402
    %v2420 = vmax.f32 %v2404, 0.0
    %v2421 = vmax.f32 %v2405, 0.0
    %v2422 = vmax.f32 %v2406, 0.0
    %v2423 = vmax.f32 %v2407, 0.0
    %v2424 = vmax.f32 %v2408, 0.0
    %v2425 = vmax.f32 %v2409, 0.0
    %v2426 = vmax.f32 %v2410, 0.0
    %v2427 = vmax.f32 %v2411, 0.0
    %v2428 = vmax.f32 %v2412, 0.0
    %v2429 = vmax.f32 %v2413, 0.0
    %v2430 = vmax.f32 %v2414, 0.0
    %v2431 = vmax.f32 %v2415, 0.0
    %v2432 = vmax.f32 %v2416, 0.0
    %v2433 = vmax.f32 %v2417, 0.0
    %v2434 = vmax.f32 %v2418, 0.0
    %v2435 = vmax.f32 %v2419, 0.0
    %2436 = vst [vmem:[#allocation5] sm:$0xff] %v2420
    %2437 = vst [vmem:[#allocation5 + $0x8] sm:$0xff] %v2421
    %2438 = vst [vmem:[#allocation5 + $0x10] sm:$0xff] %v2422
    %2439 = vst [vmem:[#allocation5 + $0x18] sm:$0xff] %v2423
    %2440 = vst [vmem:[#allocation5 + $0x20] sm:$0xff] %v2424
    %2441 = vst [vmem:[#allocation5 + $0x28] sm:$0xff] %v2425
    %2442 = vst [vmem:[#allocation5 + $0x30] sm:$0xff] %v2426
    %2443 = vst [vmem:[#allocation5 + $0x38] sm:$0xff] %v2427
    %2444 = vst [vmem:[#allocation5 + $0x40] sm:$0xff] %v2428
    %2445 = vst [vmem:[#allocation5 + $0x48] sm:$0xff] %v2429
    %2446 = vst [vmem:[#allocation5 + $0x50] sm:$0xff] %v2430
    %2447 = vst [vmem:[#allocation5 + $0x58] sm:$0xff] %v2431
    %2448 = vst [vmem:[#allocation5 + $0x60] sm:$0xff] %v2432
    %2449 = vst [vmem:[#allocation5 + $0x68] sm:$0xff] %v2433
    %2450 = vst [vmem:[#allocation5 + $0x70] sm:$0xff] %v2434
    %2451 = vst [vmem:[#allocation5 + $0x78] sm:$0xff] %v2435
    %v2452 = vld [vmem:[#allocation5] ss:$2 sm:$0xff]
    %s2453 = scalar_lea.vmem [#allocation5], 16
    %v2454 = vld [vmem:[%s2453] ss:$2 sm:$0xff]
    %s2455 = scalar_lea.vmem [#allocation5], 32
    %v2456 = vld [vmem:[%s2455] ss:$2 sm:$0xff]
    %s2457 = scalar_lea.vmem [#allocation5], 48
    %v2458 = vld [vmem:[%s2457] ss:$2 sm:$0xff]
    %s2459 = scalar_lea.vmem [#allocation5], 64
    %v2460 = vld [vmem:[%s2459] ss:$2 sm:$0xff]
    %s2461 = scalar_lea.vmem [#allocation5], 80
    %v2462 = vld [vmem:[%s2461] ss:$2 sm:$0xff]
    %s2463 = scalar_lea.vmem [#allocation5], 96
    %v2464 = vld [vmem:[%s2463] ss:$2 sm:$0xff]
    %s2465 = scalar_lea.vmem [#allocation5], 112
    %v2466 = vld [vmem:[%s2465] ss:$2 sm:$0xff]
    %s2467 = scalar_lea.vmem [#allocation5], 1
    %v2468 = vld [vmem:[%s2467] ss:$2 sm:$0xff]
    %s2469 = scalar_lea.vmem [#allocation5], 17
    %v2470 = vld [vmem:[%s2469] ss:$2 sm:$0xff]
    %s2471 = scalar_lea.vmem [#allocation5], 33
    %v2472 = vld [vmem:[%s2471] ss:$2 sm:$0xff]
    %s2473 = scalar_lea.vmem [#allocation5], 49
    %v2474 = vld [vmem:[%s2473] ss:$2 sm:$0xff]
    %s2475 = scalar_lea.vmem [#allocation5], 65
    %v2476 = vld [vmem:[%s2475] ss:$2 sm:$0xff]
    %s2477 = scalar_lea.vmem [#allocation5], 81
    %v2478 = vld [vmem:[%s2477] ss:$2 sm:$0xff]
    %s2479 = scalar_lea.vmem [#allocation5], 97
    %v2480 = vld [vmem:[%s2479] ss:$2 sm:$0xff]
    %s2481 = scalar_lea.vmem [#allocation5], 113
    %v2482 = vld [vmem:[%s2481] ss:$2 sm:$0xff]
    %v2483 = vmax.f32 %v2452, %v2468
    %v2484 = vmax.f32 %v2454, %v2470
    %v2485 = vmax.f32 %v2456, %v2472
    %v2486 = vmax.f32 %v2458, %v2474
    %v2487 = vmax.f32 %v2460, %v2476
    %v2488 = vmax.f32 %v2462, %v2478
    %v2489 = vmax.f32 %v2464, %v2480
    %v2490 = vmax.f32 %v2466, %v2482
    %2491 = vrot.lane.b32.xlu0 %v2483, 120
    %v2492 = vpop.permute.xlu0 %2491
    %2493 = vrot.lane.b32.xlu0 %v2484, 120
    %v2494 = vpop.permute.xlu0 %2493
    %2495 = vrot.lane.b32.xlu0 %v2485, 120
    %v2496 = vpop.permute.xlu0 %2495
    %2497 = vrot.lane.b32.xlu0 %v2486, 120
    %v2498 = vpop.permute.xlu0 %2497
    %2499 = vrot.lane.b32.xlu0 %v2487, 120
    %v2500 = vpop.permute.xlu0 %2499
    %2501 = vrot.lane.b32.xlu0 %v2488, 120
    %v2502 = vpop.permute.xlu0 %2501
    %2503 = vrot.lane.b32.xlu0 %v2489, 120
    %v2504 = vpop.permute.xlu0 %2503
    %2505 = vrot.lane.b32.xlu0 %v2490, 120
    %v2506 = vpop.permute.xlu0 %2505
    %v2507 = vmax.f32 %v2483, %v2492
    %v2508 = vmax.f32 %v2484, %v2494
    %v2509 = vmax.f32 %v2485, %v2496
    %v2510 = vmax.f32 %v2486, %v2498
    %v2511 = vmax.f32 %v2487, %v2500
    %v2512 = vmax.f32 %v2488, %v2502
    %v2513 = vmax.f32 %v2489, %v2504
    %v2514 = vmax.f32 %v2490, %v2506
    %2515 = vst [vmem:[#allocation6] sm:$0xff] %v2507
    %2516 = vst [vmem:[#allocation6 + $0x8] sm:$0xff] %v2508
    %2517 = vst [vmem:[#allocation6 + $0x10] sm:$0xff] %v2509
    %2518 = vst [vmem:[#allocation6 + $0x18] sm:$0xff] %v2510
    %2519 = vst [vmem:[#allocation6 + $0x20] sm:$0xff] %v2511
    %2520 = vst [vmem:[#allocation6 + $0x28] sm:$0xff] %v2512
    %2521 = vst [vmem:[#allocation6 + $0x30] sm:$0xff] %v2513
    %2522 = vst [vmem:[#allocation6 + $0x38] sm:$0xff] %v2514
    %v2523 = vld [vmem:[#allocation6] ss:$8 sm:$0xf]
    %v2524 = vld [vmem:[#allocation6] ss:$8 sm:$0xf0]
    %v2525 = vor.u32 %v2523, %v2524
    %v2526 = vpack.c.bf16 %v2525, %v2525
    %v2527 = vld [vmem:[#allocation14] sm:$0xff]
    %v2528 = vld [vmem:[#allocation14 + $0x8] sm:$0xff]
    %v2529 = vld [vmem:[#allocation14 + $0x10] sm:$0xff]
    %v2530 = vld [vmem:[#allocation14 + $0x18] sm:$0xff]
    %v2531 = vld [vmem:[#allocation14 + $0x20] sm:$0xff]
    %v2532 = vld [vmem:[#allocation14 + $0x28] sm:$0xff]
    %v2533 = vld [vmem:[#allocation14 + $0x30] sm:$0xff]
    %v2534 = vld [vmem:[#allocation14 + $0x38] sm:$0xff]
    %v2535 = vld [vmem:[#allocation14 + $0x40] sm:$0xff]
    %v2536 = vld [vmem:[#allocation14 + $0x48] sm:$0xff]
    %v2537 = vld [vmem:[#allocation14 + $0x50] sm:$0xff]
    %v2538 = vld [vmem:[#allocation14 + $0x58] sm:$0xff]
    %v2539 = vld [vmem:[#allocation14 + $0x60] sm:$0xff]
    %v2540 = vld [vmem:[#allocation14 + $0x68] sm:$0xff]
    %v2541 = vld [vmem:[#allocation14 + $0x70] sm:$0xff]
    %v2542 = vld [vmem:[#allocation14 + $0x78] sm:$0xff]
    %v2543 = vld [vmem:[#allocation14 + $0x80] sm:$0xff]
    %v2544 = vld [vmem:[#allocation14 + $0x88] sm:$0xff]
    %v2545 = vld [vmem:[#allocation14 + $0x90] sm:$0xff]
    %v2546 = vld [vmem:[#allocation14 + $0x98] sm:$0xff]
    %v2547 = vld [vmem:[#allocation14 + $0xa0] sm:$0xff]
    %v2548 = vld [vmem:[#allocation14 + $0xa8] sm:$0xff]
    %v2549 = vld [vmem:[#allocation14 + $0xb0] sm:$0xff]
    %v2550 = vld [vmem:[#allocation14 + $0xb8] sm:$0xff]
    %v2551 = vld [vmem:[#allocation14 + $0xc0] sm:$0xff]
    %v2552 = vld [vmem:[#allocation14 + $0xc8] sm:$0xff]
    %v2553 = vld [vmem:[#allocation14 + $0xd0] sm:$0xff]
    %v2554 = vld [vmem:[#allocation14 + $0xd8] sm:$0xff]
    %v2555 = vld [vmem:[#allocation14 + $0xe0] sm:$0xff]
    %v2556 = vld [vmem:[#allocation14 + $0xe8] sm:$0xff]
    %v2557 = vld [vmem:[#allocation14 + $0xf0] sm:$0xff]
    %v2558 = vld [vmem:[#allocation14 + $0xf8] sm:$0xff]
    %v2559 = vld [vmem:[#allocation14 + $0x100] sm:$0xff]
    %v2560 = vld [vmem:[#allocation14 + $0x108] sm:$0xff]
    %v2561 = vld [vmem:[#allocation14 + $0x110] sm:$0xff]
    %v2562 = vld [vmem:[#allocation14 + $0x118] sm:$0xff]
    %v2563 = vld [vmem:[#allocation14 + $0x120] sm:$0xff]
    %v2564 = vld [vmem:[#allocation14 + $0x128] sm:$0xff]
    %v2565 = vld [vmem:[#allocation14 + $0x130] sm:$0xff]
    %v2566 = vld [vmem:[#allocation14 + $0x138] sm:$0xff]
    %v2567 = vld [vmem:[#allocation14 + $0x140] sm:$0xff]
    %v2568 = vld [vmem:[#allocation14 + $0x148] sm:$0xff]
    %v2569 = vld [vmem:[#allocation14 + $0x150] sm:$0xff]
    %v2570 = vld [vmem:[#allocation14 + $0x158] sm:$0xff]
    %v2571 = vld [vmem:[#allocation14 + $0x160] sm:$0xff]
    %v2572 = vld [vmem:[#allocation14 + $0x168] sm:$0xff]
    %v2573 = vld [vmem:[#allocation14 + $0x170] sm:$0xff]
    %v2574 = vld [vmem:[#allocation14 + $0x178] sm:$0xff]
    %v2575 = vld [vmem:[#allocation14 + $0x180] sm:$0xff]
    %v2576 = vld [vmem:[#allocation14 + $0x188] sm:$0xff]
    %v2577 = vld [vmem:[#allocation14 + $0x190] sm:$0xff]
    %v2578 = vld [vmem:[#allocation14 + $0x198] sm:$0xff]
    %v2579 = vld [vmem:[#allocation14 + $0x1a0] sm:$0xff]
    %v2580 = vld [vmem:[#allocation14 + $0x1a8] sm:$0xff]
    %v2581 = vld [vmem:[#allocation14 + $0x1b0] sm:$0xff]
    %v2582 = vld [vmem:[#allocation14 + $0x1b8] sm:$0xff]
    %v2583 = vld [vmem:[#allocation14 + $0x1c0] sm:$0xff]
    %v2584 = vld [vmem:[#allocation14 + $0x1c8] sm:$0xff]
    %v2585 = vld [vmem:[#allocation14 + $0x1d0] sm:$0xff]
    %v2586 = vld [vmem:[#allocation14 + $0x1d8] sm:$0xff]
    %v2587 = vld [vmem:[#allocation14 + $0x1e0] sm:$0xff]
    %v2588 = vld [vmem:[#allocation14 + $0x1e8] sm:$0xff]
    %v2589 = vld [vmem:[#allocation14 + $0x1f0] sm:$0xff]
    %v2590 = vld [vmem:[#allocation14 + $0x1f8] sm:$0xff]
    %s2591 = scalar_lea.vmem [#allocation6], 1
    %v2592 = vld [vmem:[%s2591] ss:$8 sm:$0xf]
    %v2593 = vld [vmem:[%s2591] ss:$8 sm:$0xf0]
    %v2594 = vor.u32 %v2592, %v2593
    %v2595 = vpack.c.bf16 %v2594, %v2594
    %s2596 = scalar_lea.vmem [#allocation14], 512
    %v2597 = vld [vmem:[%s2596] sm:$0xff]
    %v2598 = vld [vmem:[%s2596 + $0x8] sm:$0xff]
    %v2599 = vld [vmem:[%s2596 + $0x10] sm:$0xff]
    %v2600 = vld [vmem:[%s2596 + $0x18] sm:$0xff]
    %v2601 = vld [vmem:[%s2596 + $0x20] sm:$0xff]
    %v2602 = vld [vmem:[%s2596 + $0x28] sm:$0xff]
    %v2603 = vld [vmem:[%s2596 + $0x30] sm:$0xff]
    %v2604 = vld [vmem:[%s2596 + $0x38] sm:$0xff]
    %v2605 = vld [vmem:[%s2596 + $0x40] sm:$0xff]
    %v2606 = vld [vmem:[%s2596 + $0x48] sm:$0xff]
    %v2607 = vld [vmem:[%s2596 + $0x50] sm:$0xff]
    %v2608 = vld [vmem:[%s2596 + $0x58] sm:$0xff]
    %v2609 = vld [vmem:[%s2596 + $0x60] sm:$0xff]
    %v2610 = vld [vmem:[%s2596 + $0x68] sm:$0xff]
    %v2611 = vld [vmem:[%s2596 + $0x70] sm:$0xff]
    %v2612 = vld [vmem:[%s2596 + $0x78] sm:$0xff]
    %v2613 = vld [vmem:[%s2596 + $0x80] sm:$0xff]
    %v2614 = vld [vmem:[%s2596 + $0x88] sm:$0xff]
    %v2615 = vld [vmem:[%s2596 + $0x90] sm:$0xff]
    %v2616 = vld [vmem:[%s2596 + $0x98] sm:$0xff]
    %v2617 = vld [vmem:[%s2596 + $0xa0] sm:$0xff]
    %v2618 = vld [vmem:[%s2596 + $0xa8] sm:$0xff]
    %v2619 = vld [vmem:[%s2596 + $0xb0] sm:$0xff]
    %v2620 = vld [vmem:[%s2596 + $0xb8] sm:$0xff]
    %v2621 = vld [vmem:[%s2596 + $0xc0] sm:$0xff]
    %v2622 = vld [vmem:[%s2596 + $0xc8] sm:$0xff]
    %v2623 = vld [vmem:[%s2596 + $0xd0] sm:$0xff]
    %v2624 = vld [vmem:[%s2596 + $0xd8] sm:$0xff]
    %v2625 = vld [vmem:[%s2596 + $0xe0] sm:$0xff]
    %v2626 = vld [vmem:[%s2596 + $0xe8] sm:$0xff]
    %v2627 = vld [vmem:[%s2596 + $0xf0] sm:$0xff]
    %v2628 = vld [vmem:[%s2596 + $0xf8] sm:$0xff]
    %v2629 = vld [vmem:[%s2596 + $0x100] sm:$0xff]
    %v2630 = vld [vmem:[%s2596 + $0x108] sm:$0xff]
    %v2631 = vld [vmem:[%s2596 + $0x110] sm:$0xff]
    %v2632 = vld [vmem:[%s2596 + $0x118] sm:$0xff]
    %v2633 = vld [vmem:[%s2596 + $0x120] sm:$0xff]
    %v2634 = vld [vmem:[%s2596 + $0x128] sm:$0xff]
    %v2635 = vld [vmem:[%s2596 + $0x130] sm:$0xff]
    %v2636 = vld [vmem:[%s2596 + $0x138] sm:$0xff]
    %v2637 = vld [vmem:[%s2596 + $0x140] sm:$0xff]
    %v2638 = vld [vmem:[%s2596 + $0x148] sm:$0xff]
    %v2639 = vld [vmem:[%s2596 + $0x150] sm:$0xff]
    %v2640 = vld [vmem:[%s2596 + $0x158] sm:$0xff]
    %v2641 = vld [vmem:[%s2596 + $0x160] sm:$0xff]
    %v2642 = vld [vmem:[%s2596 + $0x168] sm:$0xff]
    %v2643 = vld [vmem:[%s2596 + $0x170] sm:$0xff]
    %v2644 = vld [vmem:[%s2596 + $0x178] sm:$0xff]
    %v2645 = vld [vmem:[%s2596 + $0x180] sm:$0xff]
    %v2646 = vld [vmem:[%s2596 + $0x188] sm:$0xff]
    %v2647 = vld [vmem:[%s2596 + $0x190] sm:$0xff]
    %v2648 = vld [vmem:[%s2596 + $0x198] sm:$0xff]
    %v2649 = vld [vmem:[%s2596 + $0x1a0] sm:$0xff]
    %v2650 = vld [vmem:[%s2596 + $0x1a8] sm:$0xff]
    %v2651 = vld [vmem:[%s2596 + $0x1b0] sm:$0xff]
    %v2652 = vld [vmem:[%s2596 + $0x1b8] sm:$0xff]
    %v2653 = vld [vmem:[%s2596 + $0x1c0] sm:$0xff]
    %v2654 = vld [vmem:[%s2596 + $0x1c8] sm:$0xff]
    %v2655 = vld [vmem:[%s2596 + $0x1d0] sm:$0xff]
    %v2656 = vld [vmem:[%s2596 + $0x1d8] sm:$0xff]
    %v2657 = vld [vmem:[%s2596 + $0x1e0] sm:$0xff]
    %v2658 = vld [vmem:[%s2596 + $0x1e8] sm:$0xff]
    %v2659 = vld [vmem:[%s2596 + $0x1f0] sm:$0xff]
    %v2660 = vld [vmem:[%s2596 + $0x1f8] sm:$0xff]
    %v2725 = vunpack.c.l.b16 %v2597
    %v2726 = vunpack.c.h.b16 %v2597
    %v2727 = vunpack.c.l.b16 %v2598
    %v2728 = vunpack.c.h.b16 %v2598
    %v2729 = vunpack.c.l.b16 %v2599
    %v2730 = vunpack.c.h.b16 %v2599
    %v2731 = vunpack.c.l.b16 %v2600
    %v2732 = vunpack.c.h.b16 %v2600
    %v2733 = vunpack.c.l.b16 %v2601
    %v2734 = vunpack.c.h.b16 %v2601
    %v2735 = vunpack.c.l.b16 %v2602
    %v2736 = vunpack.c.h.b16 %v2602
    %v2737 = vunpack.c.l.b16 %v2603
    %v2738 = vunpack.c.h.b16 %v2603
    %v2739 = vunpack.c.l.b16 %v2604
    %v2740 = vunpack.c.h.b16 %v2604
    %v2741 = vunpack.c.l.b16 %v2605
    %v2742 = vunpack.c.h.b16 %v2605
    %v2743 = vunpack.c.l.b16 %v2606
    %v2744 = vunpack.c.h.b16 %v2606
    %v2745 = vunpack.c.l.b16 %v2607
    %v2746 = vunpack.c.h.b16 %v2607
    %v2747 = vunpack.c.l.b16 %v2608
    %v2748 = vunpack.c.h.b16 %v2608
    %v2749 = vunpack.c.l.b16 %v2609
    %v2750 = vunpack.c.h.b16 %v2609
    %v2751 = vunpack.c.l.b16 %v2610
    %v2752 = vunpack.c.h.b16 %v2610
    %v2753 = vunpack.c.l.b16 %v2611
    %v2754 = vunpack.c.h.b16 %v2611
    %v2755 = vunpack.c.l.b16 %v2612
    %v2756 = vunpack.c.h.b16 %v2612
    %v2757 = vunpack.c.l.b16 %v2613
    %v2758 = vunpack.c.h.b16 %v2613
    %v2759 = vunpack.c.l.b16 %v2614
    %v2760 = vunpack.c.h.b16 %v2614
    %v2761 = vunpack.c.l.b16 %v2615
    %v2762 = vunpack.c.h.b16 %v2615
    %v2763 = vunpack.c.l.b16 %v2616
    %v2764 = vunpack.c.h.b16 %v2616
    %v2765 = vunpack.c.l.b16 %v2617
    %v2766 = vunpack.c.h.b16 %v2617
    %v2767 = vunpack.c.l.b16 %v2618
    %v2768 = vunpack.c.h.b16 %v2618
    %v2769 = vunpack.c.l.b16 %v2619
    %v2770 = vunpack.c.h.b16 %v2619
    %v2771 = vunpack.c.l.b16 %v2620
    %v2772 = vunpack.c.h.b16 %v2620
    %v2773 = vunpack.c.l.b16 %v2621
    %v2774 = vunpack.c.h.b16 %v2621
    %v2775 = vunpack.c.l.b16 %v2622
    %v2776 = vunpack.c.h.b16 %v2622
    %v2777 = vunpack.c.l.b16 %v2623
    %v2778 = vunpack.c.h.b16 %v2623
    %v2779 = vunpack.c.l.b16 %v2624
    %v2780 = vunpack.c.h.b16 %v2624
    %v2781 = vunpack.c.l.b16 %v2625
    %v2782 = vunpack.c.h.b16 %v2625
    %v2783 = vunpack.c.l.b16 %v2626
    %v2784 = vunpack.c.h.b16 %v2626
    %v2785 = vunpack.c.l.b16 %v2627
    %v2786 = vunpack.c.h.b16 %v2627
    %v2787 = vunpack.c.l.b16 %v2628
    %v2788 = vunpack.c.h.b16 %v2628
    %v2789 = vunpack.c.l.b16 %v2629
    %v2790 = vunpack.c.h.b16 %v2629
    %v2791 = vunpack.c.l.b16 %v2630
    %v2792 = vunpack.c.h.b16 %v2630
    %v2793 = vunpack.c.l.b16 %v2631
    %v2794 = vunpack.c.h.b16 %v2631
    %v2795 = vunpack.c.l.b16 %v2632
    %v2796 = vunpack.c.h.b16 %v2632
    %v2797 = vunpack.c.l.b16 %v2633
    %v2798 = vunpack.c.h.b16 %v2633
    %v2799 = vunpack.c.l.b16 %v2634
    %v2800 = vunpack.c.h.b16 %v2634
    %v2801 = vunpack.c.l.b16 %v2635
    %v2802 = vunpack.c.h.b16 %v2635
    %v2803 = vunpack.c.l.b16 %v2636
    %v2804 = vunpack.c.h.b16 %v2636
    %v2805 = vunpack.c.l.b16 %v2637
    %v2806 = vunpack.c.h.b16 %v2637
    %v2807 = vunpack.c.l.b16 %v2638
    %v2808 = vunpack.c.h.b16 %v2638
    %v2809 = vunpack.c.l.b16 %v2639
    %v2810 = vunpack.c.h.b16 %v2639
    %v2811 = vunpack.c.l.b16 %v2640
    %v2812 = vunpack.c.h.b16 %v2640
    %v2813 = vunpack.c.l.b16 %v2641
    %v2814 = vunpack.c.h.b16 %v2641
    %v2815 = vunpack.c.l.b16 %v2642
    %v2816 = vunpack.c.h.b16 %v2642
    %v2817 = vunpack.c.l.b16 %v2643
    %v2818 = vunpack.c.h.b16 %v2643
    %v2819 = vunpack.c.l.b16 %v2644
    %v2820 = vunpack.c.h.b16 %v2644
    %v2821 = vunpack.c.l.b16 %v2645
    %v2822 = vunpack.c.h.b16 %v2645
    %v2823 = vunpack.c.l.b16 %v2646
    %v2824 = vunpack.c.h.b16 %v2646
    %v2825 = vunpack.c.l.b16 %v2647
    %v2826 = vunpack.c.h.b16 %v2647
    %v2827 = vunpack.c.l.b16 %v2648
    %v2828 = vunpack.c.h.b16 %v2648
    %v2829 = vunpack.c.l.b16 %v2649
    %v2830 = vunpack.c.h.b16 %v2649
    %v2831 = vunpack.c.l.b16 %v2650
    %v2832 = vunpack.c.h.b16 %v2650
    %v2833 = vunpack.c.l.b16 %v2651
    %v2834 = vunpack.c.h.b16 %v2651
    %v2835 = vunpack.c.l.b16 %v2652
    %v2836 = vunpack.c.h.b16 %v2652
    %v2837 = vunpack.c.l.b16 %v2653
    %v2838 = vunpack.c.h.b16 %v2653
    %v2839 = vunpack.c.l.b16 %v2654
    %v2840 = vunpack.c.h.b16 %v2654
    %v2841 = vunpack.c.l.b16 %v2655
    %v2842 = vunpack.c.h.b16 %v2655
    %v2843 = vunpack.c.l.b16 %v2656
    %v2844 = vunpack.c.h.b16 %v2656
    %v2845 = vunpack.c.l.b16 %v2657
    %v2846 = vunpack.c.h.b16 %v2657
    %v2847 = vunpack.c.l.b16 %v2658
    %v2848 = vunpack.c.h.b16 %v2658
    %v2849 = vunpack.c.l.b16 %v2659
    %v2850 = vunpack.c.h.b16 %v2659
    %v2851 = vunpack.c.l.b16 %v2660
    %v2852 = vunpack.c.h.b16 %v2660
    %v2853 = vpack.c.b16 %v2733, %v2725
    %v2854 = vpack.c.b16 %v2734, %v2726
    %v2855 = vpack.c.b16 %v2735, %v2727
    %v2856 = vpack.c.b16 %v2736, %v2728
    %v2857 = vpack.c.b16 %v2737, %v2729
    %v2858 = vpack.c.b16 %v2738, %v2730
    %v2859 = vpack.c.b16 %v2739, %v2731
    %v2860 = vpack.c.b16 %v2740, %v2732
    %v2861 = vpack.c.b16 %v2749, %v2741
    %v2862 = vpack.c.b16 %v2750, %v2742
    %v2863 = vpack.c.b16 %v2751, %v2743
    %v2864 = vpack.c.b16 %v2752, %v2744
    %v2865 = vpack.c.b16 %v2753, %v2745
    %v2866 = vpack.c.b16 %v2754, %v2746
    %v2867 = vpack.c.b16 %v2755, %v2747
    %v2868 = vpack.c.b16 %v2756, %v2748
    %v2869 = vpack.c.b16 %v2765, %v2757
    %v2870 = vpack.c.b16 %v2766, %v2758
    %v2871 = vpack.c.b16 %v2767, %v2759
    %v2872 = vpack.c.b16 %v2768, %v2760
    %v2873 = vpack.c.b16 %v2769, %v2761
    %v2874 = vpack.c.b16 %v2770, %v2762
    %v2875 = vpack.c.b16 %v2771, %v2763
    %v2876 = vpack.c.b16 %v2772, %v2764
    %v2877 = vpack.c.b16 %v2781, %v2773
    %v2878 = vpack.c.b16 %v2782, %v2774
    %v2879 = vpack.c.b16 %v2783, %v2775
    %v2880 = vpack.c.b16 %v2784, %v2776
    %v2881 = vpack.c.b16 %v2785, %v2777
    %v2882 = vpack.c.b16 %v2786, %v2778
    %v2883 = vpack.c.b16 %v2787, %v2779
    %v2884 = vpack.c.b16 %v2788, %v2780
    %v2885 = vpack.c.b16 %v2797, %v2789
    %v2886 = vpack.c.b16 %v2798, %v2790
    %v2887 = vpack.c.b16 %v2799, %v2791
    %v2888 = vpack.c.b16 %v2800, %v2792
    %v2889 = vpack.c.b16 %v2801, %v2793
    %v2890 = vpack.c.b16 %v2802, %v2794
    %v2891 = vpack.c.b16 %v2803, %v2795
    %v2892 = vpack.c.b16 %v2804, %v2796
    %v2893 = vpack.c.b16 %v2813, %v2805
    %v2894 = vpack.c.b16 %v2814, %v2806
    %v2895 = vpack.c.b16 %v2815, %v2807
    %v2896 = vpack.c.b16 %v2816, %v2808
    %v2897 = vpack.c.b16 %v2817, %v2809
    %v2898 = vpack.c.b16 %v2818, %v2810
    %v2899 = vpack.c.b16 %v2819, %v2811
    %v2900 = vpack.c.b16 %v2820, %v2812
    %v2901 = vpack.c.b16 %v2829, %v2821
    %v2902 = vpack.c.b16 %v2830, %v2822
    %v2903 = vpack.c.b16 %v2831, %v2823
    %v2904 = vpack.c.b16 %v2832, %v2824
    %v2905 = vpack.c.b16 %v2833, %v2825
    %v2906 = vpack.c.b16 %v2834, %v2826
    %v2907 = vpack.c.b16 %v2835, %v2827
    %v2908 = vpack.c.b16 %v2836, %v2828
    %v2909 = vpack.c.b16 %v2845, %v2837
    %v2910 = vpack.c.b16 %v2846, %v2838
    %v2911 = vpack.c.b16 %v2847, %v2839
    %v2912 = vpack.c.b16 %v2848, %v2840
    %v2913 = vpack.c.b16 %v2849, %v2841
    %v2914 = vpack.c.b16 %v2850, %v2842
    %v2915 = vpack.c.b16 %v2851, %v2843
    %v2916 = vpack.c.b16 %v2852, %v2844
    %2981 = vmatpush.bf16.msra.mxu0 %v2909
    %2982 = vmatpush.bf16.msra.mxu0 %v2901
    %2983 = vmatpush.bf16.msra.mxu0 %v2893
    %2984 = vmatpush.bf16.msra.mxu0 %v2885
    %2985 = vmatpush.bf16.msra.mxu0 %v2877
    %2986 = vmatpush.bf16.msra.mxu0 %v2869
    %2987 = vmatpush.bf16.msra.mxu0 %v2861
    %2988 = vmatpush.bf16.msra.mxu0 %v2853
    %2989 = vmatmul.bf16.gmra.mxu0 %v2595
    %v2990 = vpop.f32.mrf.mxu0
    %v2991 = vadd.f32 0.0, %v2990
    %v2992 = vpop.f32.mrf.mxu0
    %2993 = vdwg.mxu0
    %2994 = vmatpush.bf16.msra.mxu0 %v2910
    %2995 = vmatpush.bf16.msra.mxu0 %v2902
    %2996 = vmatpush.bf16.msra.mxu0 %v2894
    %2997 = vmatpush.bf16.msra.mxu0 %v2886
    %2998 = vmatpush.bf16.msra.mxu0 %v2878
    %2999 = vmatpush.bf16.msra.mxu0 %v2870
    %3000 = vmatpush.bf16.msra.mxu0 %v2862
    %3001 = vmatpush.bf16.msra.mxu0 %v2854
    %3002 = vmatmul.bf16.gmra.mxu0 %v2595
    %v3003 = vpop.f32.mrf.mxu0
    %v3004 = vadd.f32 0.0, %v3003
    %v3005 = vpop.f32.mrf.mxu0
    %3006 = vdwg.mxu0
    %3007 = vmatpush.bf16.msra.mxu0 %v2911
    %3008 = vmatpush.bf16.msra.mxu0 %v2903
    %3009 = vmatpush.bf16.msra.mxu0 %v2895
    %3010 = vmatpush.bf16.msra.mxu0 %v2887
    %3011 = vmatpush.bf16.msra.mxu0 %v2879
    %3012 = vmatpush.bf16.msra.mxu0 %v2871
    %3013 = vmatpush.bf16.msra.mxu0 %v2863
    %3014 = vmatpush.bf16.msra.mxu0 %v2855
    %3015 = vmatmul.bf16.gmra.mxu0 %v2595
    %v3016 = vpop.f32.mrf.mxu0
    %v3017 = vadd.f32 0.0, %v3016
    %v3018 = vpop.f32.mrf.mxu0
    %3019 = vdwg.mxu0
    %3020 = vmatpush.bf16.msra.mxu0 %v2912
    %3021 = vmatpush.bf16.msra.mxu0 %v2904
    %3022 = vmatpush.bf16.msra.mxu0 %v2896
    %3023 = vmatpush.bf16.msra.mxu0 %v2888
    %3024 = vmatpush.bf16.msra.mxu0 %v2880
    %3025 = vmatpush.bf16.msra.mxu0 %v2872
    %3026 = vmatpush.bf16.msra.mxu0 %v2864
    %3027 = vmatpush.bf16.msra.mxu0 %v2856
    %3028 = vmatmul.bf16.gmra.mxu0 %v2595
    %v3029 = vpop.f32.mrf.mxu0
    %v3030 = vadd.f32 0.0, %v3029
    %v3031 = vpop.f32.mrf.mxu0
    %3032 = vdwg.mxu0
    %3033 = vmatpush.bf16.msra.mxu0 %v2913
    %3034 = vmatpush.bf16.msra.mxu0 %v2905
    %3035 = vmatpush.bf16.msra.mxu0 %v2897
    %3036 = vmatpush.bf16.msra.mxu0 %v2889
    %3037 = vmatpush.bf16.msra.mxu0 %v2881
    %3038 = vmatpush.bf16.msra.mxu0 %v2873
    %3039 = vmatpush.bf16.msra.mxu0 %v2865
    %3040 = vmatpush.bf16.msra.mxu0 %v2857
    %3041 = vmatmul.bf16.gmra.mxu0 %v2595
    %v3042 = vpop.f32.mrf.mxu0
    %v3043 = vadd.f32 0.0, %v3042
    %v3044 = vpop.f32.mrf.mxu0
    %3045 = vdwg.mxu0
    %3046 = vmatpush.bf16.msra.mxu0 %v2914
    %3047 = vmatpush.bf16.msra.mxu0 %v2906
    %3048 = vmatpush.bf16.msra.mxu0 %v2898
    %3049 = vmatpush.bf16.msra.mxu0 %v2890
    %3050 = vmatpush.bf16.msra.mxu0 %v2882
    %3051 = vmatpush.bf16.msra.mxu0 %v2874
    %3052 = vmatpush.bf16.msra.mxu0 %v2866
    %3053 = vmatpush.bf16.msra.mxu0 %v2858
    %3054 = vmatmul.bf16.gmra.mxu0 %v2595
    %v3055 = vpop.f32.mrf.mxu0
    %v3056 = vadd.f32 0.0, %v3055
    %v3057 = vpop.f32.mrf.mxu0
    %3058 = vdwg.mxu0
    %3059 = vmatpush.bf16.msra.mxu0 %v2915
    %3060 = vmatpush.bf16.msra.mxu0 %v2907
    %3061 = vmatpush.bf16.msra.mxu0 %v2899
    %3062 = vmatpush.bf16.msra.mxu0 %v2891
    %3063 = vmatpush.bf16.msra.mxu0 %v2883
    %3064 = vmatpush.bf16.msra.mxu0 %v2875
    %3065 = vmatpush.bf16.msra.mxu0 %v2867
    %3066 = vmatpush.bf16.msra.mxu0 %v2859
    %3067 = vmatmul.bf16.gmra.mxu0 %v2595
    %v3068 = vpop.f32.mrf.mxu0
    %v3069 = vadd.f32 0.0, %v3068
    %v3070 = vpop.f32.mrf.mxu0
    %3071 = vdwg.mxu0
    %3072 = vmatpush.bf16.msra.mxu0 %v2916
    %3073 = vmatpush.bf16.msra.mxu0 %v2908
    %3074 = vmatpush.bf16.msra.mxu0 %v2900
    %3075 = vmatpush.bf16.msra.mxu0 %v2892
    %3076 = vmatpush.bf16.msra.mxu0 %v2884
    %3077 = vmatpush.bf16.msra.mxu0 %v2876
    %3078 = vmatpush.bf16.msra.mxu0 %v2868
    %3079 = vmatpush.bf16.msra.mxu0 %v2860
    %3080 = vmatmul.bf16.gmra.mxu0 %v2595
    %v3081 = vpop.f32.mrf.mxu0
    %v3082 = vadd.f32 0.0, %v3081
    %v3083 = vpop.f32.mrf.mxu0
    %3084 = vdwg.mxu0
    %v3149 = vunpack.c.l.b16 %v2527
    %v3150 = vunpack.c.h.b16 %v2527
    %v3151 = vunpack.c.l.b16 %v2528
    %v3152 = vunpack.c.h.b16 %v2528
    %v3153 = vunpack.c.l.b16 %v2529
    %v3154 = vunpack.c.h.b16 %v2529
    %v3155 = vunpack.c.l.b16 %v2530
    %v3156 = vunpack.c.h.b16 %v2530
    %v3157 = vunpack.c.l.b16 %v2531
    %v3158 = vunpack.c.h.b16 %v2531
    %v3159 = vunpack.c.l.b16 %v2532
    %v3160 = vunpack.c.h.b16 %v2532
    %v3161 = vunpack.c.l.b16 %v2533
    %v3162 = vunpack.c.h.b16 %v2533
    %v3163 = vunpack.c.l.b16 %v2534
    %v3164 = vunpack.c.h.b16 %v2534
    %v3165 = vunpack.c.l.b16 %v2535
    %v3166 = vunpack.c.h.b16 %v2535
    %v3167 = vunpack.c.l.b16 %v2536
    %v3168 = vunpack.c.h.b16 %v2536
    %v3169 = vunpack.c.l.b16 %v2537
    %v3170 = vunpack.c.h.b16 %v2537
    %v3171 = vunpack.c.l.b16 %v2538
    %v3172 = vunpack.c.h.b16 %v2538
    %v3173 = vunpack.c.l.b16 %v2539
    %v3174 = vunpack.c.h.b16 %v2539
    %v3175 = vunpack.c.l.b16 %v2540
    %v3176 = vunpack.c.h.b16 %v2540
    %v3177 = vunpack.c.l.b16 %v2541
    %v3178 = vunpack.c.h.b16 %v2541
    %v3179 = vunpack.c.l.b16 %v2542
    %v3180 = vunpack.c.h.b16 %v2542
    %v3181 = vunpack.c.l.b16 %v2543
    %v3182 = vunpack.c.h.b16 %v2543
    %v3183 = vunpack.c.l.b16 %v2544
    %v3184 = vunpack.c.h.b16 %v2544
    %v3185 = vunpack.c.l.b16 %v2545
    %v3186 = vunpack.c.h.b16 %v2545
    %v3187 = vunpack.c.l.b16 %v2546
    %v3188 = vunpack.c.h.b16 %v2546
    %v3189 = vunpack.c.l.b16 %v2547
    %v3190 = vunpack.c.h.b16 %v2547
    %v3191 = vunpack.c.l.b16 %v2548
    %v3192 = vunpack.c.h.b16 %v2548
    %v3193 = vunpack.c.l.b16 %v2549
    %v3194 = vunpack.c.h.b16 %v2549
    %v3195 = vunpack.c.l.b16 %v2550
    %v3196 = vunpack.c.h.b16 %v2550
    %v3197 = vunpack.c.l.b16 %v2551
    %v3198 = vunpack.c.h.b16 %v2551
    %v3199 = vunpack.c.l.b16 %v2552
    %v3200 = vunpack.c.h.b16 %v2552
    %v3201 = vunpack.c.l.b16 %v2553
    %v3202 = vunpack.c.h.b16 %v2553
    %v3203 = vunpack.c.l.b16 %v2554
    %v3204 = vunpack.c.h.b16 %v2554
    %v3205 = vunpack.c.l.b16 %v2555
    %v3206 = vunpack.c.h.b16 %v2555
    %v3207 = vunpack.c.l.b16 %v2556
    %v3208 = vunpack.c.h.b16 %v2556
    %v3209 = vunpack.c.l.b16 %v2557
    %v3210 = vunpack.c.h.b16 %v2557
    %v3211 = vunpack.c.l.b16 %v2558
    %v3212 = vunpack.c.h.b16 %v2558
    %v3213 = vunpack.c.l.b16 %v2559
    %v3214 = vunpack.c.h.b16 %v2559
    %v3215 = vunpack.c.l.b16 %v2560
    %v3216 = vunpack.c.h.b16 %v2560
    %v3217 = vunpack.c.l.b16 %v2561
    %v3218 = vunpack.c.h.b16 %v2561
    %v3219 = vunpack.c.l.b16 %v2562
    %v3220 = vunpack.c.h.b16 %v2562
    %v3221 = vunpack.c.l.b16 %v2563
    %v3222 = vunpack.c.h.b16 %v2563
    %v3223 = vunpack.c.l.b16 %v2564
    %v3224 = vunpack.c.h.b16 %v2564
    %v3225 = vunpack.c.l.b16 %v2565
    %v3226 = vunpack.c.h.b16 %v2565
    %v3227 = vunpack.c.l.b16 %v2566
    %v3228 = vunpack.c.h.b16 %v2566
    %v3229 = vunpack.c.l.b16 %v2567
    %v3230 = vunpack.c.h.b16 %v2567
    %v3231 = vunpack.c.l.b16 %v2568
    %v3232 = vunpack.c.h.b16 %v2568
    %v3233 = vunpack.c.l.b16 %v2569
    %v3234 = vunpack.c.h.b16 %v2569
    %v3235 = vunpack.c.l.b16 %v2570
    %v3236 = vunpack.c.h.b16 %v2570
    %v3237 = vunpack.c.l.b16 %v2571
    %v3238 = vunpack.c.h.b16 %v2571
    %v3239 = vunpack.c.l.b16 %v2572
    %v3240 = vunpack.c.h.b16 %v2572
    %v3241 = vunpack.c.l.b16 %v2573
    %v3242 = vunpack.c.h.b16 %v2573
    %v3243 = vunpack.c.l.b16 %v2574
    %v3244 = vunpack.c.h.b16 %v2574
    %v3245 = vunpack.c.l.b16 %v2575
    %v3246 = vunpack.c.h.b16 %v2575
    %v3247 = vunpack.c.l.b16 %v2576
    %v3248 = vunpack.c.h.b16 %v2576
    %v3249 = vunpack.c.l.b16 %v2577
    %v3250 = vunpack.c.h.b16 %v2577
    %v3251 = vunpack.c.l.b16 %v2578
    %v3252 = vunpack.c.h.b16 %v2578
    %v3253 = vunpack.c.l.b16 %v2579
    %v3254 = vunpack.c.h.b16 %v2579
    %v3255 = vunpack.c.l.b16 %v2580
    %v3256 = vunpack.c.h.b16 %v2580
    %v3257 = vunpack.c.l.b16 %v2581
    %v3258 = vunpack.c.h.b16 %v2581
    %v3259 = vunpack.c.l.b16 %v2582
    %v3260 = vunpack.c.h.b16 %v2582
    %v3261 = vunpack.c.l.b16 %v2583
    %v3262 = vunpack.c.h.b16 %v2583
    %v3263 = vunpack.c.l.b16 %v2584
    %v3264 = vunpack.c.h.b16 %v2584
    %v3265 = vunpack.c.l.b16 %v2585
    %v3266 = vunpack.c.h.b16 %v2585
    %v3267 = vunpack.c.l.b16 %v2586
    %v3268 = vunpack.c.h.b16 %v2586
    %v3269 = vunpack.c.l.b16 %v2587
    %v3270 = vunpack.c.h.b16 %v2587
    %v3271 = vunpack.c.l.b16 %v2588
    %v3272 = vunpack.c.h.b16 %v2588
    %v3273 = vunpack.c.l.b16 %v2589
    %v3274 = vunpack.c.h.b16 %v2589
    %v3275 = vunpack.c.l.b16 %v2590
    %v3276 = vunpack.c.h.b16 %v2590
    %v3277 = vpack.c.b16 %v3157, %v3149
    %v3278 = vpack.c.b16 %v3158, %v3150
    %v3279 = vpack.c.b16 %v3159, %v3151
    %v3280 = vpack.c.b16 %v3160, %v3152
    %v3281 = vpack.c.b16 %v3161, %v3153
    %v3282 = vpack.c.b16 %v3162, %v3154
    %v3283 = vpack.c.b16 %v3163, %v3155
    %v3284 = vpack.c.b16 %v3164, %v3156
    %v3285 = vpack.c.b16 %v3173, %v3165
    %v3286 = vpack.c.b16 %v3174, %v3166
    %v3287 = vpack.c.b16 %v3175, %v3167
    %v3288 = vpack.c.b16 %v3176, %v3168
    %v3289 = vpack.c.b16 %v3177, %v3169
    %v3290 = vpack.c.b16 %v3178, %v3170
    %v3291 = vpack.c.b16 %v3179, %v3171
    %v3292 = vpack.c.b16 %v3180, %v3172
    %v3293 = vpack.c.b16 %v3189, %v3181
    %v3294 = vpack.c.b16 %v3190, %v3182
    %v3295 = vpack.c.b16 %v3191, %v3183
    %v3296 = vpack.c.b16 %v3192, %v3184
    %v3297 = vpack.c.b16 %v3193, %v3185
    %v3298 = vpack.c.b16 %v3194, %v3186
    %v3299 = vpack.c.b16 %v3195, %v3187
    %v3300 = vpack.c.b16 %v3196, %v3188
    %v3301 = vpack.c.b16 %v3205, %v3197
    %v3302 = vpack.c.b16 %v3206, %v3198
    %v3303 = vpack.c.b16 %v3207, %v3199
    %v3304 = vpack.c.b16 %v3208, %v3200
    %v3305 = vpack.c.b16 %v3209, %v3201
    %v3306 = vpack.c.b16 %v3210, %v3202
    %v3307 = vpack.c.b16 %v3211, %v3203
    %v3308 = vpack.c.b16 %v3212, %v3204
    %v3309 = vpack.c.b16 %v3221, %v3213
    %v3310 = vpack.c.b16 %v3222, %v3214
    %v3311 = vpack.c.b16 %v3223, %v3215
    %v3312 = vpack.c.b16 %v3224, %v3216
    %v3313 = vpack.c.b16 %v3225, %v3217
    %v3314 = vpack.c.b16 %v3226, %v3218
    %v3315 = vpack.c.b16 %v3227, %v3219
    %v3316 = vpack.c.b16 %v3228, %v3220
    %v3317 = vpack.c.b16 %v3237, %v3229
    %v3318 = vpack.c.b16 %v3238, %v3230
    %v3319 = vpack.c.b16 %v3239, %v3231
    %v3320 = vpack.c.b16 %v3240, %v3232
    %v3321 = vpack.c.b16 %v3241, %v3233
    %v3322 = vpack.c.b16 %v3242, %v3234
    %v3323 = vpack.c.b16 %v3243, %v3235
    %v3324 = vpack.c.b16 %v3244, %v3236
    %v3325 = vpack.c.b16 %v3253, %v3245
    %v3326 = vpack.c.b16 %v3254, %v3246
    %v3327 = vpack.c.b16 %v3255, %v3247
    %v3328 = vpack.c.b16 %v3256, %v3248
    %v3329 = vpack.c.b16 %v3257, %v3249
    %v3330 = vpack.c.b16 %v3258, %v3250
    %v3331 = vpack.c.b16 %v3259, %v3251
    %v3332 = vpack.c.b16 %v3260, %v3252
    %v3333 = vpack.c.b16 %v3269, %v3261
    %v3334 = vpack.c.b16 %v3270, %v3262
    %v3335 = vpack.c.b16 %v3271, %v3263
    %v3336 = vpack.c.b16 %v3272, %v3264
    %v3337 = vpack.c.b16 %v3273, %v3265
    %v3338 = vpack.c.b16 %v3274, %v3266
    %v3339 = vpack.c.b16 %v3275, %v3267
    %v3340 = vpack.c.b16 %v3276, %v3268
    %3405 = vmatpush.bf16.msra.mxu0 %v3333
    %3406 = vmatpush.bf16.msra.mxu0 %v3325
    %3407 = vmatpush.bf16.msra.mxu0 %v3317
    %3408 = vmatpush.bf16.msra.mxu0 %v3309
    %3409 = vmatpush.bf16.msra.mxu0 %v3301
    %3410 = vmatpush.bf16.msra.mxu0 %v3293
    %3411 = vmatpush.bf16.msra.mxu0 %v3285
    %3412 = vmatpush.bf16.msra.mxu0 %v3277
    %3413 = vmatmul.bf16.gmra.mxu0 %v2526
    %v3414 = vpop.f32.mrf.mxu0
    %v3415 = vadd.f32 %v2991, %v3414
    %v3416 = vpop.f32.mrf.mxu0
    %3417 = vdwg.mxu0
    %3418 = vmatpush.bf16.msra.mxu0 %v3334
    %3419 = vmatpush.bf16.msra.mxu0 %v3326
    %3420 = vmatpush.bf16.msra.mxu0 %v3318
    %3421 = vmatpush.bf16.msra.mxu0 %v3310
    %3422 = vmatpush.bf16.msra.mxu0 %v3302
    %3423 = vmatpush.bf16.msra.mxu0 %v3294
    %3424 = vmatpush.bf16.msra.mxu0 %v3286
    %3425 = vmatpush.bf16.msra.mxu0 %v3278
    %3426 = vmatmul.bf16.gmra.mxu0 %v2526
    %v3427 = vpop.f32.mrf.mxu0
    %v3428 = vadd.f32 %v3004, %v3427
    %v3429 = vpop.f32.mrf.mxu0
    %3430 = vdwg.mxu0
    %3431 = vmatpush.bf16.msra.mxu0 %v3335
    %3432 = vmatpush.bf16.msra.mxu0 %v3327
    %3433 = vmatpush.bf16.msra.mxu0 %v3319
    %3434 = vmatpush.bf16.msra.mxu0 %v3311
    %3435 = vmatpush.bf16.msra.mxu0 %v3303
    %3436 = vmatpush.bf16.msra.mxu0 %v3295
    %3437 = vmatpush.bf16.msra.mxu0 %v3287
    %3438 = vmatpush.bf16.msra.mxu0 %v3279
    %3439 = vmatmul.bf16.gmra.mxu0 %v2526
    %v3440 = vpop.f32.mrf.mxu0
    %v3441 = vadd.f32 %v3017, %v3440
    %v3442 = vpop.f32.mrf.mxu0
    %3443 = vdwg.mxu0
    %3444 = vmatpush.bf16.msra.mxu0 %v3336
    %3445 = vmatpush.bf16.msra.mxu0 %v3328
    %3446 = vmatpush.bf16.msra.mxu0 %v3320
    %3447 = vmatpush.bf16.msra.mxu0 %v3312
    %3448 = vmatpush.bf16.msra.mxu0 %v3304
    %3449 = vmatpush.bf16.msra.mxu0 %v3296
    %3450 = vmatpush.bf16.msra.mxu0 %v3288
    %3451 = vmatpush.bf16.msra.mxu0 %v3280
    %3452 = vmatmul.bf16.gmra.mxu0 %v2526
    %v3453 = vpop.f32.mrf.mxu0
    %v3454 = vadd.f32 %v3030, %v3453
    %v3455 = vpop.f32.mrf.mxu0
    %3456 = vdwg.mxu0
    %3457 = vmatpush.bf16.msra.mxu0 %v3337
    %3458 = vmatpush.bf16.msra.mxu0 %v3329
    %3459 = vmatpush.bf16.msra.mxu0 %v3321
    %3460 = vmatpush.bf16.msra.mxu0 %v3313
    %3461 = vmatpush.bf16.msra.mxu0 %v3305
    %3462 = vmatpush.bf16.msra.mxu0 %v3297
    %3463 = vmatpush.bf16.msra.mxu0 %v3289
    %3464 = vmatpush.bf16.msra.mxu0 %v3281
    %3465 = vmatmul.bf16.gmra.mxu0 %v2526
    %v3466 = vpop.f32.mrf.mxu0
    %v3467 = vadd.f32 %v3043, %v3466
    %v3468 = vpop.f32.mrf.mxu0
    %3469 = vdwg.mxu0
    %3470 = vmatpush.bf16.msra.mxu0 %v3338
    %3471 = vmatpush.bf16.msra.mxu0 %v3330
    %3472 = vmatpush.bf16.msra.mxu0 %v3322
    %3473 = vmatpush.bf16.msra.mxu0 %v3314
    %3474 = vmatpush.bf16.msra.mxu0 %v3306
    %3475 = vmatpush.bf16.msra.mxu0 %v3298
    %3476 = vmatpush.bf16.msra.mxu0 %v3290
    %3477 = vmatpush.bf16.msra.mxu0 %v3282
    %3478 = vmatmul.bf16.gmra.mxu0 %v2526
    %v3479 = vpop.f32.mrf.mxu0
    %v3480 = vadd.f32 %v3056, %v3479
    %v3481 = vpop.f32.mrf.mxu0
    %3482 = vdwg.mxu0
    %3483 = vmatpush.bf16.msra.mxu0 %v3339
    %3484 = vmatpush.bf16.msra.mxu0 %v3331
    %3485 = vmatpush.bf16.msra.mxu0 %v3323
    %3486 = vmatpush.bf16.msra.mxu0 %v3315
    %3487 = vmatpush.bf16.msra.mxu0 %v3307
    %3488 = vmatpush.bf16.msra.mxu0 %v3299
    %3489 = vmatpush.bf16.msra.mxu0 %v3291
    %3490 = vmatpush.bf16.msra.mxu0 %v3283
    %3491 = vmatmul.bf16.gmra.mxu0 %v2526
    %v3492 = vpop.f32.mrf.mxu0
    %v3493 = vadd.f32 %v3069, %v3492
    %v3494 = vpop.f32.mrf.mxu0
    %3495 = vdwg.mxu0
    %3496 = vmatpush.bf16.msra.mxu0 %v3340
    %3497 = vmatpush.bf16.msra.mxu0 %v3332
    %3498 = vmatpush.bf16.msra.mxu0 %v3324
    %3499 = vmatpush.bf16.msra.mxu0 %v3316
    %3500 = vmatpush.bf16.msra.mxu0 %v3308
    %3501 = vmatpush.bf16.msra.mxu0 %v3300
    %3502 = vmatpush.bf16.msra.mxu0 %v3292
    %3503 = vmatpush.bf16.msra.mxu0 %v3284
    %3504 = vmatmul.bf16.gmra.mxu0 %v2526
    %v3505 = vpop.f32.mrf.mxu0
    %v3506 = vadd.f32 %v3082, %v3505
    %v3507 = vpop.f32.mrf.mxu0
    %3508 = vdwg.mxu0
    %s3509 = scalar_lea.vmem [#allocation6], 2
    %v3510 = vld [vmem:[%s3509] ss:$8 sm:$0xf]
    %v3511 = vld [vmem:[%s3509] ss:$8 sm:$0xf0]
    %v3512 = vor.u32 %v3510, %v3511
    %v3513 = vpack.c.bf16 %v3512, %v3512
    %s3514 = scalar_lea.vmem [#allocation14], 1024
    %v3515 = vld [vmem:[%s3514] sm:$0xff]
    %v3516 = vld [vmem:[%s3514 + $0x8] sm:$0xff]
    %v3517 = vld [vmem:[%s3514 + $0x10] sm:$0xff]
    %v3518 = vld [vmem:[%s3514 + $0x18] sm:$0xff]
    %v3519 = vld [vmem:[%s3514 + $0x20] sm:$0xff]
    %v3520 = vld [vmem:[%s3514 + $0x28] sm:$0xff]
    %v3521 = vld [vmem:[%s3514 + $0x30] sm:$0xff]
    %v3522 = vld [vmem:[%s3514 + $0x38] sm:$0xff]
    %v3523 = vld [vmem:[%s3514 + $0x40] sm:$0xff]
    %v3524 = vld [vmem:[%s3514 + $0x48] sm:$0xff]
    %v3525 = vld [vmem:[%s3514 + $0x50] sm:$0xff]
    %v3526 = vld [vmem:[%s3514 + $0x58] sm:$0xff]
    %v3527 = vld [vmem:[%s3514 + $0x60] sm:$0xff]
    %v3528 = vld [vmem:[%s3514 + $0x68] sm:$0xff]
    %v3529 = vld [vmem:[%s3514 + $0x70] sm:$0xff]
    %v3530 = vld [vmem:[%s3514 + $0x78] sm:$0xff]
    %v3531 = vld [vmem:[%s3514 + $0x80] sm:$0xff]
    %v3532 = vld [vmem:[%s3514 + $0x88] sm:$0xff]
    %v3533 = vld [vmem:[%s3514 + $0x90] sm:$0xff]
    %v3534 = vld [vmem:[%s3514 + $0x98] sm:$0xff]
    %v3535 = vld [vmem:[%s3514 + $0xa0] sm:$0xff]
    %v3536 = vld [vmem:[%s3514 + $0xa8] sm:$0xff]
    %v3537 = vld [vmem:[%s3514 + $0xb0] sm:$0xff]
    %v3538 = vld [vmem:[%s3514 + $0xb8] sm:$0xff]
    %v3539 = vld [vmem:[%s3514 + $0xc0] sm:$0xff]
    %v3540 = vld [vmem:[%s3514 + $0xc8] sm:$0xff]
    %v3541 = vld [vmem:[%s3514 + $0xd0] sm:$0xff]
    %v3542 = vld [vmem:[%s3514 + $0xd8] sm:$0xff]
    %v3543 = vld [vmem:[%s3514 + $0xe0] sm:$0xff]
    %v3544 = vld [vmem:[%s3514 + $0xe8] sm:$0xff]
    %v3545 = vld [vmem:[%s3514 + $0xf0] sm:$0xff]
    %v3546 = vld [vmem:[%s3514 + $0xf8] sm:$0xff]
    %v3547 = vld [vmem:[%s3514 + $0x100] sm:$0xff]
    %v3548 = vld [vmem:[%s3514 + $0x108] sm:$0xff]
    %v3549 = vld [vmem:[%s3514 + $0x110] sm:$0xff]
    %v3550 = vld [vmem:[%s3514 + $0x118] sm:$0xff]
    %v3551 = vld [vmem:[%s3514 + $0x120] sm:$0xff]
    %v3552 = vld [vmem:[%s3514 + $0x128] sm:$0xff]
    %v3553 = vld [vmem:[%s3514 + $0x130] sm:$0xff]
    %v3554 = vld [vmem:[%s3514 + $0x138] sm:$0xff]
    %v3555 = vld [vmem:[%s3514 + $0x140] sm:$0xff]
    %v3556 = vld [vmem:[%s3514 + $0x148] sm:$0xff]
    %v3557 = vld [vmem:[%s3514 + $0x150] sm:$0xff]
    %v3558 = vld [vmem:[%s3514 + $0x158] sm:$0xff]
    %v3559 = vld [vmem:[%s3514 + $0x160] sm:$0xff]
    %v3560 = vld [vmem:[%s3514 + $0x168] sm:$0xff]
    %v3561 = vld [vmem:[%s3514 + $0x170] sm:$0xff]
    %v3562 = vld [vmem:[%s3514 + $0x178] sm:$0xff]
    %v3563 = vld [vmem:[%s3514 + $0x180] sm:$0xff]
    %v3564 = vld [vmem:[%s3514 + $0x188] sm:$0xff]
    %v3565 = vld [vmem:[%s3514 + $0x190] sm:$0xff]
    %v3566 = vld [vmem:[%s3514 + $0x198] sm:$0xff]
    %v3567 = vld [vmem:[%s3514 + $0x1a0] sm:$0xff]
    %v3568 = vld [vmem:[%s3514 + $0x1a8] sm:$0xff]
    %v3569 = vld [vmem:[%s3514 + $0x1b0] sm:$0xff]
    %v3570 = vld [vmem:[%s3514 + $0x1b8] sm:$0xff]
    %v3571 = vld [vmem:[%s3514 + $0x1c0] sm:$0xff]
    %v3572 = vld [vmem:[%s3514 + $0x1c8] sm:$0xff]
    %v3573 = vld [vmem:[%s3514 + $0x1d0] sm:$0xff]
    %v3574 = vld [vmem:[%s3514 + $0x1d8] sm:$0xff]
    %v3575 = vld [vmem:[%s3514 + $0x1e0] sm:$0xff]
    %v3576 = vld [vmem:[%s3514 + $0x1e8] sm:$0xff]
    %v3577 = vld [vmem:[%s3514 + $0x1f0] sm:$0xff]
    %v3578 = vld [vmem:[%s3514 + $0x1f8] sm:$0xff]
    %v3643 = vunpack.c.l.b16 %v3515
    %v3644 = vunpack.c.h.b16 %v3515
    %v3645 = vunpack.c.l.b16 %v3516
    %v3646 = vunpack.c.h.b16 %v3516
    %v3647 = vunpack.c.l.b16 %v3517
    %v3648 = vunpack.c.h.b16 %v3517
    %v3649 = vunpack.c.l.b16 %v3518
    %v3650 = vunpack.c.h.b16 %v3518
    %v3651 = vunpack.c.l.b16 %v3519
    %v3652 = vunpack.c.h.b16 %v3519
    %v3653 = vunpack.c.l.b16 %v3520
    %v3654 = vunpack.c.h.b16 %v3520
    %v3655 = vunpack.c.l.b16 %v3521
    %v3656 = vunpack.c.h.b16 %v3521
    %v3657 = vunpack.c.l.b16 %v3522
    %v3658 = vunpack.c.h.b16 %v3522
    %v3659 = vunpack.c.l.b16 %v3523
    %v3660 = vunpack.c.h.b16 %v3523
    %v3661 = vunpack.c.l.b16 %v3524
    %v3662 = vunpack.c.h.b16 %v3524
    %v3663 = vunpack.c.l.b16 %v3525
    %v3664 = vunpack.c.h.b16 %v3525
    %v3665 = vunpack.c.l.b16 %v3526
    %v3666 = vunpack.c.h.b16 %v3526
    %v3667 = vunpack.c.l.b16 %v3527
    %v3668 = vunpack.c.h.b16 %v3527
    %v3669 = vunpack.c.l.b16 %v3528
    %v3670 = vunpack.c.h.b16 %v3528
    %v3671 = vunpack.c.l.b16 %v3529
    %v3672 = vunpack.c.h.b16 %v3529
    %v3673 = vunpack.c.l.b16 %v3530
    %v3674 = vunpack.c.h.b16 %v3530
    %v3675 = vunpack.c.l.b16 %v3531
    %v3676 = vunpack.c.h.b16 %v3531
    %v3677 = vunpack.c.l.b16 %v3532
    %v3678 = vunpack.c.h.b16 %v3532
    %v3679 = vunpack.c.l.b16 %v3533
    %v3680 = vunpack.c.h.b16 %v3533
    %v3681 = vunpack.c.l.b16 %v3534
    %v3682 = vunpack.c.h.b16 %v3534
    %v3683 = vunpack.c.l.b16 %v3535
    %v3684 = vunpack.c.h.b16 %v3535
    %v3685 = vunpack.c.l.b16 %v3536
    %v3686 = vunpack.c.h.b16 %v3536
    %v3687 = vunpack.c.l.b16 %v3537
    %v3688 = vunpack.c.h.b16 %v3537
    %v3689 = vunpack.c.l.b16 %v3538
    %v3690 = vunpack.c.h.b16 %v3538
    %v3691 = vunpack.c.l.b16 %v3539
    %v3692 = vunpack.c.h.b16 %v3539
    %v3693 = vunpack.c.l.b16 %v3540
    %v3694 = vunpack.c.h.b16 %v3540
    %v3695 = vunpack.c.l.b16 %v3541
    %v3696 = vunpack.c.h.b16 %v3541
    %v3697 = vunpack.c.l.b16 %v3542
    %v3698 = vunpack.c.h.b16 %v3542
    %v3699 = vunpack.c.l.b16 %v3543
    %v3700 = vunpack.c.h.b16 %v3543
    %v3701 = vunpack.c.l.b16 %v3544
    %v3702 = vunpack.c.h.b16 %v3544
    %v3703 = vunpack.c.l.b16 %v3545
    %v3704 = vunpack.c.h.b16 %v3545
    %v3705 = vunpack.c.l.b16 %v3546
    %v3706 = vunpack.c.h.b16 %v3546
    %v3707 = vunpack.c.l.b16 %v3547
    %v3708 = vunpack.c.h.b16 %v3547
    %v3709 = vunpack.c.l.b16 %v3548
    %v3710 = vunpack.c.h.b16 %v3548
    %v3711 = vunpack.c.l.b16 %v3549
    %v3712 = vunpack.c.h.b16 %v3549
    %v3713 = vunpack.c.l.b16 %v3550
    %v3714 = vunpack.c.h.b16 %v3550
    %v3715 = vunpack.c.l.b16 %v3551
    %v3716 = vunpack.c.h.b16 %v3551
    %v3717 = vunpack.c.l.b16 %v3552
    %v3718 = vunpack.c.h.b16 %v3552
    %v3719 = vunpack.c.l.b16 %v3553
    %v3720 = vunpack.c.h.b16 %v3553
    %v3721 = vunpack.c.l.b16 %v3554
    %v3722 = vunpack.c.h.b16 %v3554
    %v3723 = vunpack.c.l.b16 %v3555
    %v3724 = vunpack.c.h.b16 %v3555
    %v3725 = vunpack.c.l.b16 %v3556
    %v3726 = vunpack.c.h.b16 %v3556
    %v3727 = vunpack.c.l.b16 %v3557
    %v3728 = vunpack.c.h.b16 %v3557
    %v3729 = vunpack.c.l.b16 %v3558
    %v3730 = vunpack.c.h.b16 %v3558
    %v3731 = vunpack.c.l.b16 %v3559
    %v3732 = vunpack.c.h.b16 %v3559
    %v3733 = vunpack.c.l.b16 %v3560
    %v3734 = vunpack.c.h.b16 %v3560
    %v3735 = vunpack.c.l.b16 %v3561
    %v3736 = vunpack.c.h.b16 %v3561
    %v3737 = vunpack.c.l.b16 %v3562
    %v3738 = vunpack.c.h.b16 %v3562
    %v3739 = vunpack.c.l.b16 %v3563
    %v3740 = vunpack.c.h.b16 %v3563
    %v3741 = vunpack.c.l.b16 %v3564
    %v3742 = vunpack.c.h.b16 %v3564
    %v3743 = vunpack.c.l.b16 %v3565
    %v3744 = vunpack.c.h.b16 %v3565
    %v3745 = vunpack.c.l.b16 %v3566
    %v3746 = vunpack.c.h.b16 %v3566
    %v3747 = vunpack.c.l.b16 %v3567
    %v3748 = vunpack.c.h.b16 %v3567
    %v3749 = vunpack.c.l.b16 %v3568
    %v3750 = vunpack.c.h.b16 %v3568
    %v3751 = vunpack.c.l.b16 %v3569
    %v3752 = vunpack.c.h.b16 %v3569
    %v3753 = vunpack.c.l.b16 %v3570
    %v3754 = vunpack.c.h.b16 %v3570
    %v3755 = vunpack.c.l.b16 %v3571
    %v3756 = vunpack.c.h.b16 %v3571
    %v3757 = vunpack.c.l.b16 %v3572
    %v3758 = vunpack.c.h.b16 %v3572
    %v3759 = vunpack.c.l.b16 %v3573
    %v3760 = vunpack.c.h.b16 %v3573
    %v3761 = vunpack.c.l.b16 %v3574
    %v3762 = vunpack.c.h.b16 %v3574
    %v3763 = vunpack.c.l.b16 %v3575
    %v3764 = vunpack.c.h.b16 %v3575
    %v3765 = vunpack.c.l.b16 %v3576
    %v3766 = vunpack.c.h.b16 %v3576
    %v3767 = vunpack.c.l.b16 %v3577
    %v3768 = vunpack.c.h.b16 %v3577
    %v3769 = vunpack.c.l.b16 %v3578
    %v3770 = vunpack.c.h.b16 %v3578
    %v3771 = vpack.c.b16 %v3651, %v3643
    %v3772 = vpack.c.b16 %v3652, %v3644
    %v3773 = vpack.c.b16 %v3653, %v3645
    %v3774 = vpack.c.b16 %v3654, %v3646
    %v3775 = vpack.c.b16 %v3655, %v3647
    %v3776 = vpack.c.b16 %v3656, %v3648
    %v3777 = vpack.c.b16 %v3657, %v3649
    %v3778 = vpack.c.b16 %v3658, %v3650
    %v3779 = vpack.c.b16 %v3667, %v3659
    %v3780 = vpack.c.b16 %v3668, %v3660
    %v3781 = vpack.c.b16 %v3669, %v3661
    %v3782 = vpack.c.b16 %v3670, %v3662
    %v3783 = vpack.c.b16 %v3671, %v3663
    %v3784 = vpack.c.b16 %v3672, %v3664
    %v3785 = vpack.c.b16 %v3673, %v3665
    %v3786 = vpack.c.b16 %v3674, %v3666
    %v3787 = vpack.c.b16 %v3683, %v3675
    %v3788 = vpack.c.b16 %v3684, %v3676
    %v3789 = vpack.c.b16 %v3685, %v3677
    %v3790 = vpack.c.b16 %v3686, %v3678
    %v3791 = vpack.c.b16 %v3687, %v3679
    %v3792 = vpack.c.b16 %v3688, %v3680
    %v3793 = vpack.c.b16 %v3689, %v3681
    %v3794 = vpack.c.b16 %v3690, %v3682
    %v3795 = vpack.c.b16 %v3699, %v3691
    %v3796 = vpack.c.b16 %v3700, %v3692
    %v3797 = vpack.c.b16 %v3701, %v3693
    %v3798 = vpack.c.b16 %v3702, %v3694
    %v3799 = vpack.c.b16 %v3703, %v3695
    %v3800 = vpack.c.b16 %v3704, %v3696
    %v3801 = vpack.c.b16 %v3705, %v3697
    %v3802 = vpack.c.b16 %v3706, %v3698
    %v3803 = vpack.c.b16 %v3715, %v3707
    %v3804 = vpack.c.b16 %v3716, %v3708
    %v3805 = vpack.c.b16 %v3717, %v3709
    %v3806 = vpack.c.b16 %v3718, %v3710
    %v3807 = vpack.c.b16 %v3719, %v3711
    %v3808 = vpack.c.b16 %v3720, %v3712
    %v3809 = vpack.c.b16 %v3721, %v3713
    %v3810 = vpack.c.b16 %v3722, %v3714
    %v3811 = vpack.c.b16 %v3731, %v3723
    %v3812 = vpack.c.b16 %v3732, %v3724
    %v3813 = vpack.c.b16 %v3733, %v3725
    %v3814 = vpack.c.b16 %v3734, %v3726
    %v3815 = vpack.c.b16 %v3735, %v3727
    %v3816 = vpack.c.b16 %v3736, %v3728
    %v3817 = vpack.c.b16 %v3737, %v3729
    %v3818 = vpack.c.b16 %v3738, %v3730
    %v3819 = vpack.c.b16 %v3747, %v3739
    %v3820 = vpack.c.b16 %v3748, %v3740
    %v3821 = vpack.c.b16 %v3749, %v3741
    %v3822 = vpack.c.b16 %v3750, %v3742
    %v3823 = vpack.c.b16 %v3751, %v3743
    %v3824 = vpack.c.b16 %v3752, %v3744
    %v3825 = vpack.c.b16 %v3753, %v3745
    %v3826 = vpack.c.b16 %v3754, %v3746
    %v3827 = vpack.c.b16 %v3763, %v3755
    %v3828 = vpack.c.b16 %v3764, %v3756
    %v3829 = vpack.c.b16 %v3765, %v3757
    %v3830 = vpack.c.b16 %v3766, %v3758
    %v3831 = vpack.c.b16 %v3767, %v3759
    %v3832 = vpack.c.b16 %v3768, %v3760
    %v3833 = vpack.c.b16 %v3769, %v3761
    %v3834 = vpack.c.b16 %v3770, %v3762
    %3899 = vmatpush.bf16.msra.mxu0 %v3827
    %3900 = vmatpush.bf16.msra.mxu0 %v3819
    %3901 = vmatpush.bf16.msra.mxu0 %v3811
    %3902 = vmatpush.bf16.msra.mxu0 %v3803
    %3903 = vmatpush.bf16.msra.mxu0 %v3795
    %3904 = vmatpush.bf16.msra.mxu0 %v3787
    %3905 = vmatpush.bf16.msra.mxu0 %v3779
    %3906 = vmatpush.bf16.msra.mxu0 %v3771
    %3907 = vmatmul.bf16.gmra.mxu0 %v3513
    %v3908 = vpop.f32.mrf.mxu0
    %v3909 = vadd.f32 0.0, %v3908
    %v3910 = vpop.f32.mrf.mxu0
    %3911 = vdwg.mxu0
    %3912 = vmatpush.bf16.msra.mxu0 %v3828
    %3913 = vmatpush.bf16.msra.mxu0 %v3820
    %3914 = vmatpush.bf16.msra.mxu0 %v3812
    %3915 = vmatpush.bf16.msra.mxu0 %v3804
    %3916 = vmatpush.bf16.msra.mxu0 %v3796
    %3917 = vmatpush.bf16.msra.mxu0 %v3788
    %3918 = vmatpush.bf16.msra.mxu0 %v3780
    %3919 = vmatpush.bf16.msra.mxu0 %v3772
    %3920 = vmatmul.bf16.gmra.mxu0 %v3513
    %v3921 = vpop.f32.mrf.mxu0
    %v3922 = vadd.f32 0.0, %v3921
    %v3923 = vpop.f32.mrf.mxu0
    %3924 = vdwg.mxu0
    %3925 = vmatpush.bf16.msra.mxu0 %v3829
    %3926 = vmatpush.bf16.msra.mxu0 %v3821
    %3927 = vmatpush.bf16.msra.mxu0 %v3813
    %3928 = vmatpush.bf16.msra.mxu0 %v3805
    %3929 = vmatpush.bf16.msra.mxu0 %v3797
    %3930 = vmatpush.bf16.msra.mxu0 %v3789
    %3931 = vmatpush.bf16.msra.mxu0 %v3781
    %3932 = vmatpush.bf16.msra.mxu0 %v3773
    %3933 = vmatmul.bf16.gmra.mxu0 %v3513
    %v3934 = vpop.f32.mrf.mxu0
    %v3935 = vadd.f32 0.0, %v3934
    %v3936 = vpop.f32.mrf.mxu0
    %3937 = vdwg.mxu0
    %3938 = vmatpush.bf16.msra.mxu0 %v3830
    %3939 = vmatpush.bf16.msra.mxu0 %v3822
    %3940 = vmatpush.bf16.msra.mxu0 %v3814
    %3941 = vmatpush.bf16.msra.mxu0 %v3806
    %3942 = vmatpush.bf16.msra.mxu0 %v3798
    %3943 = vmatpush.bf16.msra.mxu0 %v3790
    %3944 = vmatpush.bf16.msra.mxu0 %v3782
    %3945 = vmatpush.bf16.msra.mxu0 %v3774
    %3946 = vmatmul.bf16.gmra.mxu0 %v3513
    %v3947 = vpop.f32.mrf.mxu0
    %v3948 = vadd.f32 0.0, %v3947
    %v3949 = vpop.f32.mrf.mxu0
    %3950 = vdwg.mxu0
    %3951 = vmatpush.bf16.msra.mxu0 %v3831
    %3952 = vmatpush.bf16.msra.mxu0 %v3823
    %3953 = vmatpush.bf16.msra.mxu0 %v3815
    %3954 = vmatpush.bf16.msra.mxu0 %v3807
    %3955 = vmatpush.bf16.msra.mxu0 %v3799
    %3956 = vmatpush.bf16.msra.mxu0 %v3791
    %3957 = vmatpush.bf16.msra.mxu0 %v3783
    %3958 = vmatpush.bf16.msra.mxu0 %v3775
    %3959 = vmatmul.bf16.gmra.mxu0 %v3513
    %v3960 = vpop.f32.mrf.mxu0
    %v3961 = vadd.f32 0.0, %v3960
    %v3962 = vpop.f32.mrf.mxu0
    %3963 = vdwg.mxu0
    %3964 = vmatpush.bf16.msra.mxu0 %v3832
    %3965 = vmatpush.bf16.msra.mxu0 %v3824
    %3966 = vmatpush.bf16.msra.mxu0 %v3816
    %3967 = vmatpush.bf16.msra.mxu0 %v3808
    %3968 = vmatpush.bf16.msra.mxu0 %v3800
    %3969 = vmatpush.bf16.msra.mxu0 %v3792
    %3970 = vmatpush.bf16.msra.mxu0 %v3784
    %3971 = vmatpush.bf16.msra.mxu0 %v3776
    %3972 = vmatmul.bf16.gmra.mxu0 %v3513
    %v3973 = vpop.f32.mrf.mxu0
    %v3974 = vadd.f32 0.0, %v3973
    %v3975 = vpop.f32.mrf.mxu0
    %3976 = vdwg.mxu0
    %3977 = vmatpush.bf16.msra.mxu0 %v3833
    %3978 = vmatpush.bf16.msra.mxu0 %v3825
    %3979 = vmatpush.bf16.msra.mxu0 %v3817
    %3980 = vmatpush.bf16.msra.mxu0 %v3809
    %3981 = vmatpush.bf16.msra.mxu0 %v3801
    %3982 = vmatpush.bf16.msra.mxu0 %v3793
    %3983 = vmatpush.bf16.msra.mxu0 %v3785
    %3984 = vmatpush.bf16.msra.mxu0 %v3777
    %3985 = vmatmul.bf16.gmra.mxu0 %v3513
    %v3986 = vpop.f32.mrf.mxu0
    %v3987 = vadd.f32 0.0, %v3986
    %v3988 = vpop.f32.mrf.mxu0
    %3989 = vdwg.mxu0
    %3990 = vmatpush.bf16.msra.mxu0 %v3834
    %3991 = vmatpush.bf16.msra.mxu0 %v3826
    %3992 = vmatpush.bf16.msra.mxu0 %v3818
    %3993 = vmatpush.bf16.msra.mxu0 %v3810
    %3994 = vmatpush.bf16.msra.mxu0 %v3802
    %3995 = vmatpush.bf16.msra.mxu0 %v3794
    %3996 = vmatpush.bf16.msra.mxu0 %v3786
    %3997 = vmatpush.bf16.msra.mxu0 %v3778
    %3998 = vmatmul.bf16.gmra.mxu0 %v3513
    %v3999 = vpop.f32.mrf.mxu0
    %v4000 = vadd.f32 0.0, %v3999
    %v4001 = vpop.f32.mrf.mxu0
    %4002 = vdwg.mxu0
    %v4003 = vadd.f32 %v3415, %v3909
    %v4004 = vadd.f32 %v3428, %v3922
    %v4005 = vadd.f32 %v3441, %v3935
    %v4006 = vadd.f32 %v3454, %v3948
    %v4007 = vadd.f32 %v3467, %v3961
    %v4008 = vadd.f32 %v3480, %v3974
    %v4009 = vadd.f32 %v3493, %v3987
    %v4010 = vadd.f32 %v3506, %v4000
    %s4011 = scalar_lea.vmem [#allocation6], 3
    %v4012 = vld [vmem:[%s4011] ss:$8 sm:$0xf]
    %v4013 = vld [vmem:[%s4011] ss:$8 sm:$0xf0]
    %v4014 = vor.u32 %v4012, %v4013
    %v4015 = vpack.c.bf16 %v4014, %v4014
    %s4016 = scalar_lea.vmem [#allocation14], 1536
    %v4017 = vld [vmem:[%s4016] sm:$0xff]
    %v4018 = vld [vmem:[%s4016 + $0x8] sm:$0xff]
    %v4019 = vld [vmem:[%s4016 + $0x10] sm:$0xff]
    %v4020 = vld [vmem:[%s4016 + $0x18] sm:$0xff]
    %v4021 = vld [vmem:[%s4016 + $0x20] sm:$0xff]
    %v4022 = vld [vmem:[%s4016 + $0x28] sm:$0xff]
    %v4023 = vld [vmem:[%s4016 + $0x30] sm:$0xff]
    %v4024 = vld [vmem:[%s4016 + $0x38] sm:$0xff]
    %v4025 = vld [vmem:[%s4016 + $0x40] sm:$0xff]
    %v4026 = vld [vmem:[%s4016 + $0x48] sm:$0xff]
    %v4027 = vld [vmem:[%s4016 + $0x50] sm:$0xff]
    %v4028 = vld [vmem:[%s4016 + $0x58] sm:$0xff]
    %v4029 = vld [vmem:[%s4016 + $0x60] sm:$0xff]
    %v4030 = vld [vmem:[%s4016 + $0x68] sm:$0xff]
    %v4031 = vld [vmem:[%s4016 + $0x70] sm:$0xff]
    %v4032 = vld [vmem:[%s4016 + $0x78] sm:$0xff]
    %v4033 = vld [vmem:[%s4016 + $0x80] sm:$0xff]
    %v4034 = vld [vmem:[%s4016 + $0x88] sm:$0xff]
    %v4035 = vld [vmem:[%s4016 + $0x90] sm:$0xff]
    %v4036 = vld [vmem:[%s4016 + $0x98] sm:$0xff]
    %v4037 = vld [vmem:[%s4016 + $0xa0] sm:$0xff]
    %v4038 = vld [vmem:[%s4016 + $0xa8] sm:$0xff]
    %v4039 = vld [vmem:[%s4016 + $0xb0] sm:$0xff]
    %v4040 = vld [vmem:[%s4016 + $0xb8] sm:$0xff]
    %v4041 = vld [vmem:[%s4016 + $0xc0] sm:$0xff]
    %v4042 = vld [vmem:[%s4016 + $0xc8] sm:$0xff]
    %v4043 = vld [vmem:[%s4016 + $0xd0] sm:$0xff]
    %v4044 = vld [vmem:[%s4016 + $0xd8] sm:$0xff]
    %v4045 = vld [vmem:[%s4016 + $0xe0] sm:$0xff]
    %v4046 = vld [vmem:[%s4016 + $0xe8] sm:$0xff]
    %v4047 = vld [vmem:[%s4016 + $0xf0] sm:$0xff]
    %v4048 = vld [vmem:[%s4016 + $0xf8] sm:$0xff]
    %v4049 = vld [vmem:[%s4016 + $0x100] sm:$0xff]
    %v4050 = vld [vmem:[%s4016 + $0x108] sm:$0xff]
    %v4051 = vld [vmem:[%s4016 + $0x110] sm:$0xff]
    %v4052 = vld [vmem:[%s4016 + $0x118] sm:$0xff]
    %v4053 = vld [vmem:[%s4016 + $0x120] sm:$0xff]
    %v4054 = vld [vmem:[%s4016 + $0x128] sm:$0xff]
    %v4055 = vld [vmem:[%s4016 + $0x130] sm:$0xff]
    %v4056 = vld [vmem:[%s4016 + $0x138] sm:$0xff]
    %v4057 = vld [vmem:[%s4016 + $0x140] sm:$0xff]
    %v4058 = vld [vmem:[%s4016 + $0x148] sm:$0xff]
    %v4059 = vld [vmem:[%s4016 + $0x150] sm:$0xff]
    %v4060 = vld [vmem:[%s4016 + $0x158] sm:$0xff]
    %v4061 = vld [vmem:[%s4016 + $0x160] sm:$0xff]
    %v4062 = vld [vmem:[%s4016 + $0x168] sm:$0xff]
    %v4063 = vld [vmem:[%s4016 + $0x170] sm:$0xff]
    %v4064 = vld [vmem:[%s4016 + $0x178] sm:$0xff]
    %v4065 = vld [vmem:[%s4016 + $0x180] sm:$0xff]
    %v4066 = vld [vmem:[%s4016 + $0x188] sm:$0xff]
    %v4067 = vld [vmem:[%s4016 + $0x190] sm:$0xff]
    %v4068 = vld [vmem:[%s4016 + $0x198] sm:$0xff]
    %v4069 = vld [vmem:[%s4016 + $0x1a0] sm:$0xff]
    %v4070 = vld [vmem:[%s4016 + $0x1a8] sm:$0xff]
    %v4071 = vld [vmem:[%s4016 + $0x1b0] sm:$0xff]
    %v4072 = vld [vmem:[%s4016 + $0x1b8] sm:$0xff]
    %v4073 = vld [vmem:[%s4016 + $0x1c0] sm:$0xff]
    %v4074 = vld [vmem:[%s4016 + $0x1c8] sm:$0xff]
    %v4075 = vld [vmem:[%s4016 + $0x1d0] sm:$0xff]
    %v4076 = vld [vmem:[%s4016 + $0x1d8] sm:$0xff]
    %v4077 = vld [vmem:[%s4016 + $0x1e0] sm:$0xff]
    %v4078 = vld [vmem:[%s4016 + $0x1e8] sm:$0xff]
    %v4079 = vld [vmem:[%s4016 + $0x1f0] sm:$0xff]
    %v4080 = vld [vmem:[%s4016 + $0x1f8] sm:$0xff]
    %v4145 = vunpack.c.l.b16 %v4017
    %v4146 = vunpack.c.h.b16 %v4017
    %v4147 = vunpack.c.l.b16 %v4018
    %v4148 = vunpack.c.h.b16 %v4018
    %v4149 = vunpack.c.l.b16 %v4019
    %v4150 = vunpack.c.h.b16 %v4019
    %v4151 = vunpack.c.l.b16 %v4020
    %v4152 = vunpack.c.h.b16 %v4020
    %v4153 = vunpack.c.l.b16 %v4021
    %v4154 = vunpack.c.h.b16 %v4021
    %v4155 = vunpack.c.l.b16 %v4022
    %v4156 = vunpack.c.h.b16 %v4022
    %v4157 = vunpack.c.l.b16 %v4023
    %v4158 = vunpack.c.h.b16 %v4023
    %v4159 = vunpack.c.l.b16 %v4024
    %v4160 = vunpack.c.h.b16 %v4024
    %v4161 = vunpack.c.l.b16 %v4025
    %v4162 = vunpack.c.h.b16 %v4025
    %v4163 = vunpack.c.l.b16 %v4026
    %v4164 = vunpack.c.h.b16 %v4026
    %v4165 = vunpack.c.l.b16 %v4027
    %v4166 = vunpack.c.h.b16 %v4027
    %v4167 = vunpack.c.l.b16 %v4028
    %v4168 = vunpack.c.h.b16 %v4028
    %v4169 = vunpack.c.l.b16 %v4029
    %v4170 = vunpack.c.h.b16 %v4029
    %v4171 = vunpack.c.l.b16 %v4030
    %v4172 = vunpack.c.h.b16 %v4030
    %v4173 = vunpack.c.l.b16 %v4031
    %v4174 = vunpack.c.h.b16 %v4031
    %v4175 = vunpack.c.l.b16 %v4032
    %v4176 = vunpack.c.h.b16 %v4032
    %v4177 = vunpack.c.l.b16 %v4033
    %v4178 = vunpack.c.h.b16 %v4033
    %v4179 = vunpack.c.l.b16 %v4034
    %v4180 = vunpack.c.h.b16 %v4034
    %v4181 = vunpack.c.l.b16 %v4035
    %v4182 = vunpack.c.h.b16 %v4035
    %v4183 = vunpack.c.l.b16 %v4036
    %v4184 = vunpack.c.h.b16 %v4036
    %v4185 = vunpack.c.l.b16 %v4037
    %v4186 = vunpack.c.h.b16 %v4037
    %v4187 = vunpack.c.l.b16 %v4038
    %v4188 = vunpack.c.h.b16 %v4038
    %v4189 = vunpack.c.l.b16 %v4039
    %v4190 = vunpack.c.h.b16 %v4039
    %v4191 = vunpack.c.l.b16 %v4040
    %v4192 = vunpack.c.h.b16 %v4040
    %v4193 = vunpack.c.l.b16 %v4041
    %v4194 = vunpack.c.h.b16 %v4041
    %v4195 = vunpack.c.l.b16 %v4042
    %v4196 = vunpack.c.h.b16 %v4042
    %v4197 = vunpack.c.l.b16 %v4043
    %v4198 = vunpack.c.h.b16 %v4043
    %v4199 = vunpack.c.l.b16 %v4044
    %v4200 = vunpack.c.h.b16 %v4044
    %v4201 = vunpack.c.l.b16 %v4045
    %v4202 = vunpack.c.h.b16 %v4045
    %v4203 = vunpack.c.l.b16 %v4046
    %v4204 = vunpack.c.h.b16 %v4046
    %v4205 = vunpack.c.l.b16 %v4047
    %v4206 = vunpack.c.h.b16 %v4047
    %v4207 = vunpack.c.l.b16 %v4048
    %v4208 = vunpack.c.h.b16 %v4048
    %v4209 = vunpack.c.l.b16 %v4049
    %v4210 = vunpack.c.h.b16 %v4049
    %v4211 = vunpack.c.l.b16 %v4050
    %v4212 = vunpack.c.h.b16 %v4050
    %v4213 = vunpack.c.l.b16 %v4051
    %v4214 = vunpack.c.h.b16 %v4051
    %v4215 = vunpack.c.l.b16 %v4052
    %v4216 = vunpack.c.h.b16 %v4052
    %v4217 = vunpack.c.l.b16 %v4053
    %v4218 = vunpack.c.h.b16 %v4053
    %v4219 = vunpack.c.l.b16 %v4054
    %v4220 = vunpack.c.h.b16 %v4054
    %v4221 = vunpack.c.l.b16 %v4055
    %v4222 = vunpack.c.h.b16 %v4055
    %v4223 = vunpack.c.l.b16 %v4056
    %v4224 = vunpack.c.h.b16 %v4056
    %v4225 = vunpack.c.l.b16 %v4057
    %v4226 = vunpack.c.h.b16 %v4057
    %v4227 = vunpack.c.l.b16 %v4058
    %v4228 = vunpack.c.h.b16 %v4058
    %v4229 = vunpack.c.l.b16 %v4059
    %v4230 = vunpack.c.h.b16 %v4059
    %v4231 = vunpack.c.l.b16 %v4060
    %v4232 = vunpack.c.h.b16 %v4060
    %v4233 = vunpack.c.l.b16 %v4061
    %v4234 = vunpack.c.h.b16 %v4061
    %v4235 = vunpack.c.l.b16 %v4062
    %v4236 = vunpack.c.h.b16 %v4062
    %v4237 = vunpack.c.l.b16 %v4063
    %v4238 = vunpack.c.h.b16 %v4063
    %v4239 = vunpack.c.l.b16 %v4064
    %v4240 = vunpack.c.h.b16 %v4064
    %v4241 = vunpack.c.l.b16 %v4065
    %v4242 = vunpack.c.h.b16 %v4065
    %v4243 = vunpack.c.l.b16 %v4066
    %v4244 = vunpack.c.h.b16 %v4066
    %v4245 = vunpack.c.l.b16 %v4067
    %v4246 = vunpack.c.h.b16 %v4067
    %v4247 = vunpack.c.l.b16 %v4068
    %v4248 = vunpack.c.h.b16 %v4068
    %v4249 = vunpack.c.l.b16 %v4069
    %v4250 = vunpack.c.h.b16 %v4069
    %v4251 = vunpack.c.l.b16 %v4070
    %v4252 = vunpack.c.h.b16 %v4070
    %v4253 = vunpack.c.l.b16 %v4071
    %v4254 = vunpack.c.h.b16 %v4071
    %v4255 = vunpack.c.l.b16 %v4072
    %v4256 = vunpack.c.h.b16 %v4072
    %v4257 = vunpack.c.l.b16 %v4073
    %v4258 = vunpack.c.h.b16 %v4073
    %v4259 = vunpack.c.l.b16 %v4074
    %v4260 = vunpack.c.h.b16 %v4074
    %v4261 = vunpack.c.l.b16 %v4075
    %v4262 = vunpack.c.h.b16 %v4075
    %v4263 = vunpack.c.l.b16 %v4076
    %v4264 = vunpack.c.h.b16 %v4076
    %v4265 = vunpack.c.l.b16 %v4077
    %v4266 = vunpack.c.h.b16 %v4077
    %v4267 = vunpack.c.l.b16 %v4078
    %v4268 = vunpack.c.h.b16 %v4078
    %v4269 = vunpack.c.l.b16 %v4079
    %v4270 = vunpack.c.h.b16 %v4079
    %v4271 = vunpack.c.l.b16 %v4080
    %v4272 = vunpack.c.h.b16 %v4080
    %v4273 = vpack.c.b16 %v4153, %v4145
    %v4274 = vpack.c.b16 %v4154, %v4146
    %v4275 = vpack.c.b16 %v4155, %v4147
    %v4276 = vpack.c.b16 %v4156, %v4148
    %v4277 = vpack.c.b16 %v4157, %v4149
    %v4278 = vpack.c.b16 %v4158, %v4150
    %v4279 = vpack.c.b16 %v4159, %v4151
    %v4280 = vpack.c.b16 %v4160, %v4152
    %v4281 = vpack.c.b16 %v4169, %v4161
    %v4282 = vpack.c.b16 %v4170, %v4162
    %v4283 = vpack.c.b16 %v4171, %v4163
    %v4284 = vpack.c.b16 %v4172, %v4164
    %v4285 = vpack.c.b16 %v4173, %v4165
    %v4286 = vpack.c.b16 %v4174, %v4166
    %v4287 = vpack.c.b16 %v4175, %v4167
    %v4288 = vpack.c.b16 %v4176, %v4168
    %v4289 = vpack.c.b16 %v4185, %v4177
    %v4290 = vpack.c.b16 %v4186, %v4178
    %v4291 = vpack.c.b16 %v4187, %v4179
    %v4292 = vpack.c.b16 %v4188, %v4180
    %v4293 = vpack.c.b16 %v4189, %v4181
    %v4294 = vpack.c.b16 %v4190, %v4182
    %v4295 = vpack.c.b16 %v4191, %v4183
    %v4296 = vpack.c.b16 %v4192, %v4184
    %v4297 = vpack.c.b16 %v4201, %v4193
    %v4298 = vpack.c.b16 %v4202, %v4194
    %v4299 = vpack.c.b16 %v4203, %v4195
    %v4300 = vpack.c.b16 %v4204, %v4196
    %v4301 = vpack.c.b16 %v4205, %v4197
    %v4302 = vpack.c.b16 %v4206, %v4198
    %v4303 = vpack.c.b16 %v4207, %v4199
    %v4304 = vpack.c.b16 %v4208, %v4200
    %v4305 = vpack.c.b16 %v4217, %v4209
    %v4306 = vpack.c.b16 %v4218, %v4210
    %v4307 = vpack.c.b16 %v4219, %v4211
    %v4308 = vpack.c.b16 %v4220, %v4212
    %v4309 = vpack.c.b16 %v4221, %v4213
    %v4310 = vpack.c.b16 %v4222, %v4214
    %v4311 = vpack.c.b16 %v4223, %v4215
    %v4312 = vpack.c.b16 %v4224, %v4216
    %v4313 = vpack.c.b16 %v4233, %v4225
    %v4314 = vpack.c.b16 %v4234, %v4226
    %v4315 = vpack.c.b16 %v4235, %v4227
    %v4316 = vpack.c.b16 %v4236, %v4228
    %v4317 = vpack.c.b16 %v4237, %v4229
    %v4318 = vpack.c.b16 %v4238, %v4230
    %v4319 = vpack.c.b16 %v4239, %v4231
    %v4320 = vpack.c.b16 %v4240, %v4232
    %v4321 = vpack.c.b16 %v4249, %v4241
    %v4322 = vpack.c.b16 %v4250, %v4242
    %v4323 = vpack.c.b16 %v4251, %v4243
    %v4324 = vpack.c.b16 %v4252, %v4244
    %v4325 = vpack.c.b16 %v4253, %v4245
    %v4326 = vpack.c.b16 %v4254, %v4246
    %v4327 = vpack.c.b16 %v4255, %v4247
    %v4328 = vpack.c.b16 %v4256, %v4248
    %v4329 = vpack.c.b16 %v4265, %v4257
    %v4330 = vpack.c.b16 %v4266, %v4258
    %v4331 = vpack.c.b16 %v4267, %v4259
    %v4332 = vpack.c.b16 %v4268, %v4260
    %v4333 = vpack.c.b16 %v4269, %v4261
    %v4334 = vpack.c.b16 %v4270, %v4262
    %v4335 = vpack.c.b16 %v4271, %v4263
    %v4336 = vpack.c.b16 %v4272, %v4264
    %4401 = vmatpush.bf16.msra.mxu0 %v4329
    %4402 = vmatpush.bf16.msra.mxu0 %v4321
    %4403 = vmatpush.bf16.msra.mxu0 %v4313
    %4404 = vmatpush.bf16.msra.mxu0 %v4305
    %4405 = vmatpush.bf16.msra.mxu0 %v4297
    %4406 = vmatpush.bf16.msra.mxu0 %v4289
    %4407 = vmatpush.bf16.msra.mxu0 %v4281
    %4408 = vmatpush.bf16.msra.mxu0 %v4273
    %4409 = vmatmul.bf16.gmra.mxu0 %v4015
    %v4410 = vpop.f32.mrf.mxu0
    %v4411 = vadd.f32 0.0, %v4410
    %v4412 = vpop.f32.mrf.mxu0
    %4413 = vdwg.mxu0
    %4414 = vmatpush.bf16.msra.mxu0 %v4330
    %4415 = vmatpush.bf16.msra.mxu0 %v4322
    %4416 = vmatpush.bf16.msra.mxu0 %v4314
    %4417 = vmatpush.bf16.msra.mxu0 %v4306
    %4418 = vmatpush.bf16.msra.mxu0 %v4298
    %4419 = vmatpush.bf16.msra.mxu0 %v4290
    %4420 = vmatpush.bf16.msra.mxu0 %v4282
    %4421 = vmatpush.bf16.msra.mxu0 %v4274
    %4422 = vmatmul.bf16.gmra.mxu0 %v4015
    %v4423 = vpop.f32.mrf.mxu0
    %v4424 = vadd.f32 0.0, %v4423
    %v4425 = vpop.f32.mrf.mxu0
    %4426 = vdwg.mxu0
    %4427 = vmatpush.bf16.msra.mxu0 %v4331
    %4428 = vmatpush.bf16.msra.mxu0 %v4323
    %4429 = vmatpush.bf16.msra.mxu0 %v4315
    %4430 = vmatpush.bf16.msra.mxu0 %v4307
    %4431 = vmatpush.bf16.msra.mxu0 %v4299
    %4432 = vmatpush.bf16.msra.mxu0 %v4291
    %4433 = vmatpush.bf16.msra.mxu0 %v4283
    %4434 = vmatpush.bf16.msra.mxu0 %v4275
    %4435 = vmatmul.bf16.gmra.mxu0 %v4015
    %v4436 = vpop.f32.mrf.mxu0
    %v4437 = vadd.f32 0.0, %v4436
    %v4438 = vpop.f32.mrf.mxu0
    %4439 = vdwg.mxu0
    %4440 = vmatpush.bf16.msra.mxu0 %v4332
    %4441 = vmatpush.bf16.msra.mxu0 %v4324
    %4442 = vmatpush.bf16.msra.mxu0 %v4316
    %4443 = vmatpush.bf16.msra.mxu0 %v4308
    %4444 = vmatpush.bf16.msra.mxu0 %v4300
    %4445 = vmatpush.bf16.msra.mxu0 %v4292
    %4446 = vmatpush.bf16.msra.mxu0 %v4284
    %4447 = vmatpush.bf16.msra.mxu0 %v4276
    %4448 = vmatmul.bf16.gmra.mxu0 %v4015
    %v4449 = vpop.f32.mrf.mxu0
    %v4450 = vadd.f32 0.0, %v4449
    %v4451 = vpop.f32.mrf.mxu0
    %4452 = vdwg.mxu0
    %4453 = vmatpush.bf16.msra.mxu0 %v4333
    %4454 = vmatpush.bf16.msra.mxu0 %v4325
    %4455 = vmatpush.bf16.msra.mxu0 %v4317
    %4456 = vmatpush.bf16.msra.mxu0 %v4309
    %4457 = vmatpush.bf16.msra.mxu0 %v4301
    %4458 = vmatpush.bf16.msra.mxu0 %v4293
    %4459 = vmatpush.bf16.msra.mxu0 %v4285
    %4460 = vmatpush.bf16.msra.mxu0 %v4277
    %4461 = vmatmul.bf16.gmra.mxu0 %v4015
    %v4462 = vpop.f32.mrf.mxu0
    %v4463 = vadd.f32 0.0, %v4462
    %v4464 = vpop.f32.mrf.mxu0
    %4465 = vdwg.mxu0
    %4466 = vmatpush.bf16.msra.mxu0 %v4334
    %4467 = vmatpush.bf16.msra.mxu0 %v4326
    %4468 = vmatpush.bf16.msra.mxu0 %v4318
    %4469 = vmatpush.bf16.msra.mxu0 %v4310
    %4470 = vmatpush.bf16.msra.mxu0 %v4302
    %4471 = vmatpush.bf16.msra.mxu0 %v4294
    %4472 = vmatpush.bf16.msra.mxu0 %v4286
    %4473 = vmatpush.bf16.msra.mxu0 %v4278
    %4474 = vmatmul.bf16.gmra.mxu0 %v4015
    %v4475 = vpop.f32.mrf.mxu0
    %v4476 = vadd.f32 0.0, %v4475
    %v4477 = vpop.f32.mrf.mxu0
    %4478 = vdwg.mxu0
    %4479 = vmatpush.bf16.msra.mxu0 %v4335
    %4480 = vmatpush.bf16.msra.mxu0 %v4327
    %4481 = vmatpush.bf16.msra.mxu0 %v4319
    %4482 = vmatpush.bf16.msra.mxu0 %v4311
    %4483 = vmatpush.bf16.msra.mxu0 %v4303
    %4484 = vmatpush.bf16.msra.mxu0 %v4295
    %4485 = vmatpush.bf16.msra.mxu0 %v4287
    %4486 = vmatpush.bf16.msra.mxu0 %v4279
    %4487 = vmatmul.bf16.gmra.mxu0 %v4015
    %v4488 = vpop.f32.mrf.mxu0
    %v4489 = vadd.f32 0.0, %v4488
    %v4490 = vpop.f32.mrf.mxu0
    %4491 = vdwg.mxu0
    %4492 = vmatpush.bf16.msra.mxu0 %v4336
    %4493 = vmatpush.bf16.msra.mxu0 %v4328
    %4494 = vmatpush.bf16.msra.mxu0 %v4320
    %4495 = vmatpush.bf16.msra.mxu0 %v4312
    %4496 = vmatpush.bf16.msra.mxu0 %v4304
    %4497 = vmatpush.bf16.msra.mxu0 %v4296
    %4498 = vmatpush.bf16.msra.mxu0 %v4288
    %4499 = vmatpush.bf16.msra.mxu0 %v4280
    %4500 = vmatmul.bf16.gmra.mxu0 %v4015
    %v4501 = vpop.f32.mrf.mxu0
    %v4502 = vadd.f32 0.0, %v4501
    %v4503 = vpop.f32.mrf.mxu0
    %4504 = vdwg.mxu0
    %v4505 = vadd.f32 %v4003, %v4411
    %v4506 = vadd.f32 %v4004, %v4424
    %v4507 = vadd.f32 %v4005, %v4437
    %v4508 = vadd.f32 %v4006, %v4450
    %v4509 = vadd.f32 %v4007, %v4463
    %v4510 = vadd.f32 %v4008, %v4476
    %v4511 = vadd.f32 %v4009, %v4489
    %v4512 = vadd.f32 %v4010, %v4502
    %s4513 = scalar_lea.vmem [#allocation6], 4
    %v4514 = vld [vmem:[%s4513] ss:$8 sm:$0xf]
    %v4515 = vld [vmem:[%s4513] ss:$8 sm:$0xf0]
    %v4516 = vor.u32 %v4514, %v4515
    %v4517 = vpack.c.bf16 %v4516, %v4516
    %s4518 = scalar_lea.vmem [#allocation14], 2048
    %v4519 = vld [vmem:[%s4518] sm:$0xff]
    %v4520 = vld [vmem:[%s4518 + $0x8] sm:$0xff]
    %v4521 = vld [vmem:[%s4518 + $0x10] sm:$0xff]
    %v4522 = vld [vmem:[%s4518 + $0x18] sm:$0xff]
    %v4523 = vld [vmem:[%s4518 + $0x20] sm:$0xff]
    %v4524 = vld [vmem:[%s4518 + $0x28] sm:$0xff]
    %v4525 = vld [vmem:[%s4518 + $0x30] sm:$0xff]
    %v4526 = vld [vmem:[%s4518 + $0x38] sm:$0xff]
    %v4527 = vld [vmem:[%s4518 + $0x40] sm:$0xff]
    %v4528 = vld [vmem:[%s4518 + $0x48] sm:$0xff]
    %v4529 = vld [vmem:[%s4518 + $0x50] sm:$0xff]
    %v4530 = vld [vmem:[%s4518 + $0x58] sm:$0xff]
    %v4531 = vld [vmem:[%s4518 + $0x60] sm:$0xff]
    %v4532 = vld [vmem:[%s4518 + $0x68] sm:$0xff]
    %v4533 = vld [vmem:[%s4518 + $0x70] sm:$0xff]
    %v4534 = vld [vmem:[%s4518 + $0x78] sm:$0xff]
    %v4535 = vld [vmem:[%s4518 + $0x80] sm:$0xff]
    %v4536 = vld [vmem:[%s4518 + $0x88] sm:$0xff]
    %v4537 = vld [vmem:[%s4518 + $0x90] sm:$0xff]
    %v4538 = vld [vmem:[%s4518 + $0x98] sm:$0xff]
    %v4539 = vld [vmem:[%s4518 + $0xa0] sm:$0xff]
    %v4540 = vld [vmem:[%s4518 + $0xa8] sm:$0xff]
    %v4541 = vld [vmem:[%s4518 + $0xb0] sm:$0xff]
    %v4542 = vld [vmem:[%s4518 + $0xb8] sm:$0xff]
    %v4543 = vld [vmem:[%s4518 + $0xc0] sm:$0xff]
    %v4544 = vld [vmem:[%s4518 + $0xc8] sm:$0xff]
    %v4545 = vld [vmem:[%s4518 + $0xd0] sm:$0xff]
    %v4546 = vld [vmem:[%s4518 + $0xd8] sm:$0xff]
    %v4547 = vld [vmem:[%s4518 + $0xe0] sm:$0xff]
    %v4548 = vld [vmem:[%s4518 + $0xe8] sm:$0xff]
    %v4549 = vld [vmem:[%s4518 + $0xf0] sm:$0xff]
    %v4550 = vld [vmem:[%s4518 + $0xf8] sm:$0xff]
    %v4551 = vld [vmem:[%s4518 + $0x100] sm:$0xff]
    %v4552 = vld [vmem:[%s4518 + $0x108] sm:$0xff]
    %v4553 = vld [vmem:[%s4518 + $0x110] sm:$0xff]
    %v4554 = vld [vmem:[%s4518 + $0x118] sm:$0xff]
    %v4555 = vld [vmem:[%s4518 + $0x120] sm:$0xff]
    %v4556 = vld [vmem:[%s4518 + $0x128] sm:$0xff]
    %v4557 = vld [vmem:[%s4518 + $0x130] sm:$0xff]
    %v4558 = vld [vmem:[%s4518 + $0x138] sm:$0xff]
    %v4559 = vld [vmem:[%s4518 + $0x140] sm:$0xff]
    %v4560 = vld [vmem:[%s4518 + $0x148] sm:$0xff]
    %v4561 = vld [vmem:[%s4518 + $0x150] sm:$0xff]
    %v4562 = vld [vmem:[%s4518 + $0x158] sm:$0xff]
    %v4563 = vld [vmem:[%s4518 + $0x160] sm:$0xff]
    %v4564 = vld [vmem:[%s4518 + $0x168] sm:$0xff]
    %v4565 = vld [vmem:[%s4518 + $0x170] sm:$0xff]
    %v4566 = vld [vmem:[%s4518 + $0x178] sm:$0xff]
    %v4567 = vld [vmem:[%s4518 + $0x180] sm:$0xff]
    %v4568 = vld [vmem:[%s4518 + $0x188] sm:$0xff]
    %v4569 = vld [vmem:[%s4518 + $0x190] sm:$0xff]
    %v4570 = vld [vmem:[%s4518 + $0x198] sm:$0xff]
    %v4571 = vld [vmem:[%s4518 + $0x1a0] sm:$0xff]
    %v4572 = vld [vmem:[%s4518 + $0x1a8] sm:$0xff]
    %v4573 = vld [vmem:[%s4518 + $0x1b0] sm:$0xff]
    %v4574 = vld [vmem:[%s4518 + $0x1b8] sm:$0xff]
    %v4575 = vld [vmem:[%s4518 + $0x1c0] sm:$0xff]
    %v4576 = vld [vmem:[%s4518 + $0x1c8] sm:$0xff]
    %v4577 = vld [vmem:[%s4518 + $0x1d0] sm:$0xff]
    %v4578 = vld [vmem:[%s4518 + $0x1d8] sm:$0xff]
    %v4579 = vld [vmem:[%s4518 + $0x1e0] sm:$0xff]
    %v4580 = vld [vmem:[%s4518 + $0x1e8] sm:$0xff]
    %v4581 = vld [vmem:[%s4518 + $0x1f0] sm:$0xff]
    %v4582 = vld [vmem:[%s4518 + $0x1f8] sm:$0xff]
    %v4647 = vunpack.c.l.b16 %v4519
    %v4648 = vunpack.c.h.b16 %v4519
    %v4649 = vunpack.c.l.b16 %v4520
    %v4650 = vunpack.c.h.b16 %v4520
    %v4651 = vunpack.c.l.b16 %v4521
    %v4652 = vunpack.c.h.b16 %v4521
    %v4653 = vunpack.c.l.b16 %v4522
    %v4654 = vunpack.c.h.b16 %v4522
    %v4655 = vunpack.c.l.b16 %v4523
    %v4656 = vunpack.c.h.b16 %v4523
    %v4657 = vunpack.c.l.b16 %v4524
    %v4658 = vunpack.c.h.b16 %v4524
    %v4659 = vunpack.c.l.b16 %v4525
    %v4660 = vunpack.c.h.b16 %v4525
    %v4661 = vunpack.c.l.b16 %v4526
    %v4662 = vunpack.c.h.b16 %v4526
    %v4663 = vunpack.c.l.b16 %v4527
    %v4664 = vunpack.c.h.b16 %v4527
    %v4665 = vunpack.c.l.b16 %v4528
    %v4666 = vunpack.c.h.b16 %v4528
    %v4667 = vunpack.c.l.b16 %v4529
    %v4668 = vunpack.c.h.b16 %v4529
    %v4669 = vunpack.c.l.b16 %v4530
    %v4670 = vunpack.c.h.b16 %v4530
    %v4671 = vunpack.c.l.b16 %v4531
    %v4672 = vunpack.c.h.b16 %v4531
    %v4673 = vunpack.c.l.b16 %v4532
    %v4674 = vunpack.c.h.b16 %v4532
    %v4675 = vunpack.c.l.b16 %v4533
    %v4676 = vunpack.c.h.b16 %v4533
    %v4677 = vunpack.c.l.b16 %v4534
    %v4678 = vunpack.c.h.b16 %v4534
    %v4679 = vunpack.c.l.b16 %v4535
    %v4680 = vunpack.c.h.b16 %v4535
    %v4681 = vunpack.c.l.b16 %v4536
    %v4682 = vunpack.c.h.b16 %v4536
    %v4683 = vunpack.c.l.b16 %v4537
    %v4684 = vunpack.c.h.b16 %v4537
    %v4685 = vunpack.c.l.b16 %v4538
    %v4686 = vunpack.c.h.b16 %v4538
    %v4687 = vunpack.c.l.b16 %v4539
    %v4688 = vunpack.c.h.b16 %v4539
    %v4689 = vunpack.c.l.b16 %v4540
    %v4690 = vunpack.c.h.b16 %v4540
    %v4691 = vunpack.c.l.b16 %v4541
    %v4692 = vunpack.c.h.b16 %v4541
    %v4693 = vunpack.c.l.b16 %v4542
    %v4694 = vunpack.c.h.b16 %v4542
    %v4695 = vunpack.c.l.b16 %v4543
    %v4696 = vunpack.c.h.b16 %v4543
    %v4697 = vunpack.c.l.b16 %v4544
    %v4698 = vunpack.c.h.b16 %v4544
    %v4699 = vunpack.c.l.b16 %v4545
    %v4700 = vunpack.c.h.b16 %v4545
    %v4701 = vunpack.c.l.b16 %v4546
    %v4702 = vunpack.c.h.b16 %v4546
    %v4703 = vunpack.c.l.b16 %v4547
    %v4704 = vunpack.c.h.b16 %v4547
    %v4705 = vunpack.c.l.b16 %v4548
    %v4706 = vunpack.c.h.b16 %v4548
    %v4707 = vunpack.c.l.b16 %v4549
    %v4708 = vunpack.c.h.b16 %v4549
    %v4709 = vunpack.c.l.b16 %v4550
    %v4710 = vunpack.c.h.b16 %v4550
    %v4711 = vunpack.c.l.b16 %v4551
    %v4712 = vunpack.c.h.b16 %v4551
    %v4713 = vunpack.c.l.b16 %v4552
    %v4714 = vunpack.c.h.b16 %v4552
    %v4715 = vunpack.c.l.b16 %v4553
    %v4716 = vunpack.c.h.b16 %v4553
    %v4717 = vunpack.c.l.b16 %v4554
    %v4718 = vunpack.c.h.b16 %v4554
    %v4719 = vunpack.c.l.b16 %v4555
    %v4720 = vunpack.c.h.b16 %v4555
    %v4721 = vunpack.c.l.b16 %v4556
    %v4722 = vunpack.c.h.b16 %v4556
    %v4723 = vunpack.c.l.b16 %v4557
    %v4724 = vunpack.c.h.b16 %v4557
    %v4725 = vunpack.c.l.b16 %v4558
    %v4726 = vunpack.c.h.b16 %v4558
    %v4727 = vunpack.c.l.b16 %v4559
    %v4728 = vunpack.c.h.b16 %v4559
    %v4729 = vunpack.c.l.b16 %v4560
    %v4730 = vunpack.c.h.b16 %v4560
    %v4731 = vunpack.c.l.b16 %v4561
    %v4732 = vunpack.c.h.b16 %v4561
    %v4733 = vunpack.c.l.b16 %v4562
    %v4734 = vunpack.c.h.b16 %v4562
    %v4735 = vunpack.c.l.b16 %v4563
    %v4736 = vunpack.c.h.b16 %v4563
    %v4737 = vunpack.c.l.b16 %v4564
    %v4738 = vunpack.c.h.b16 %v4564
    %v4739 = vunpack.c.l.b16 %v4565
    %v4740 = vunpack.c.h.b16 %v4565
    %v4741 = vunpack.c.l.b16 %v4566
    %v4742 = vunpack.c.h.b16 %v4566
    %v4743 = vunpack.c.l.b16 %v4567
    %v4744 = vunpack.c.h.b16 %v4567
    %v4745 = vunpack.c.l.b16 %v4568
    %v4746 = vunpack.c.h.b16 %v4568
    %v4747 = vunpack.c.l.b16 %v4569
    %v4748 = vunpack.c.h.b16 %v4569
    %v4749 = vunpack.c.l.b16 %v4570
    %v4750 = vunpack.c.h.b16 %v4570
    %v4751 = vunpack.c.l.b16 %v4571
    %v4752 = vunpack.c.h.b16 %v4571
    %v4753 = vunpack.c.l.b16 %v4572
    %v4754 = vunpack.c.h.b16 %v4572
    %v4755 = vunpack.c.l.b16 %v4573
    %v4756 = vunpack.c.h.b16 %v4573
    %v4757 = vunpack.c.l.b16 %v4574
    %v4758 = vunpack.c.h.b16 %v4574
    %v4759 = vunpack.c.l.b16 %v4575
    %v4760 = vunpack.c.h.b16 %v4575
    %v4761 = vunpack.c.l.b16 %v4576
    %v4762 = vunpack.c.h.b16 %v4576
    %v4763 = vunpack.c.l.b16 %v4577
    %v4764 = vunpack.c.h.b16 %v4577
    %v4765 = vunpack.c.l.b16 %v4578
    %v4766 = vunpack.c.h.b16 %v4578
    %v4767 = vunpack.c.l.b16 %v4579
    %v4768 = vunpack.c.h.b16 %v4579
    %v4769 = vunpack.c.l.b16 %v4580
    %v4770 = vunpack.c.h.b16 %v4580
    %v4771 = vunpack.c.l.b16 %v4581
    %v4772 = vunpack.c.h.b16 %v4581
    %v4773 = vunpack.c.l.b16 %v4582
    %v4774 = vunpack.c.h.b16 %v4582
    %v4775 = vpack.c.b16 %v4655, %v4647
    %v4776 = vpack.c.b16 %v4656, %v4648
    %v4777 = vpack.c.b16 %v4657, %v4649
    %v4778 = vpack.c.b16 %v4658, %v4650
    %v4779 = vpack.c.b16 %v4659, %v4651
    %v4780 = vpack.c.b16 %v4660, %v4652
    %v4781 = vpack.c.b16 %v4661, %v4653
    %v4782 = vpack.c.b16 %v4662, %v4654
    %v4783 = vpack.c.b16 %v4671, %v4663
    %v4784 = vpack.c.b16 %v4672, %v4664
    %v4785 = vpack.c.b16 %v4673, %v4665
    %v4786 = vpack.c.b16 %v4674, %v4666
    %v4787 = vpack.c.b16 %v4675, %v4667
    %v4788 = vpack.c.b16 %v4676, %v4668
    %v4789 = vpack.c.b16 %v4677, %v4669
    %v4790 = vpack.c.b16 %v4678, %v4670
    %v4791 = vpack.c.b16 %v4687, %v4679
    %v4792 = vpack.c.b16 %v4688, %v4680
    %v4793 = vpack.c.b16 %v4689, %v4681
    %v4794 = vpack.c.b16 %v4690, %v4682
    %v4795 = vpack.c.b16 %v4691, %v4683
    %v4796 = vpack.c.b16 %v4692, %v4684
    %v4797 = vpack.c.b16 %v4693, %v4685
    %v4798 = vpack.c.b16 %v4694, %v4686
    %v4799 = vpack.c.b16 %v4703, %v4695
    %v4800 = vpack.c.b16 %v4704, %v4696
    %v4801 = vpack.c.b16 %v4705, %v4697
    %v4802 = vpack.c.b16 %v4706, %v4698
    %v4803 = vpack.c.b16 %v4707, %v4699
    %v4804 = vpack.c.b16 %v4708, %v4700
    %v4805 = vpack.c.b16 %v4709, %v4701
    %v4806 = vpack.c.b16 %v4710, %v4702
    %v4807 = vpack.c.b16 %v4719, %v4711
    %v4808 = vpack.c.b16 %v4720, %v4712
    %v4809 = vpack.c.b16 %v4721, %v4713
    %v4810 = vpack.c.b16 %v4722, %v4714
    %v4811 = vpack.c.b16 %v4723, %v4715
    %v4812 = vpack.c.b16 %v4724, %v4716
    %v4813 = vpack.c.b16 %v4725, %v4717
    %v4814 = vpack.c.b16 %v4726, %v4718
    %v4815 = vpack.c.b16 %v4735, %v4727
    %v4816 = vpack.c.b16 %v4736, %v4728
    %v4817 = vpack.c.b16 %v4737, %v4729
    %v4818 = vpack.c.b16 %v4738, %v4730
    %v4819 = vpack.c.b16 %v4739, %v4731
    %v4820 = vpack.c.b16 %v4740, %v4732
    %v4821 = vpack.c.b16 %v4741, %v4733
    %v4822 = vpack.c.b16 %v4742, %v4734
    %v4823 = vpack.c.b16 %v4751, %v4743
    %v4824 = vpack.c.b16 %v4752, %v4744
    %v4825 = vpack.c.b16 %v4753, %v4745
    %v4826 = vpack.c.b16 %v4754, %v4746
    %v4827 = vpack.c.b16 %v4755, %v4747
    %v4828 = vpack.c.b16 %v4756, %v4748
    %v4829 = vpack.c.b16 %v4757, %v4749
    %v4830 = vpack.c.b16 %v4758, %v4750
    %v4831 = vpack.c.b16 %v4767, %v4759
    %v4832 = vpack.c.b16 %v4768, %v4760
    %v4833 = vpack.c.b16 %v4769, %v4761
    %v4834 = vpack.c.b16 %v4770, %v4762
    %v4835 = vpack.c.b16 %v4771, %v4763
    %v4836 = vpack.c.b16 %v4772, %v4764
    %v4837 = vpack.c.b16 %v4773, %v4765
    %v4838 = vpack.c.b16 %v4774, %v4766
    %4903 = vmatpush.bf16.msra.mxu0 %v4831
    %4904 = vmatpush.bf16.msra.mxu0 %v4823
    %4905 = vmatpush.bf16.msra.mxu0 %v4815
    %4906 = vmatpush.bf16.msra.mxu0 %v4807
    %4907 = vmatpush.bf16.msra.mxu0 %v4799
    %4908 = vmatpush.bf16.msra.mxu0 %v4791
    %4909 = vmatpush.bf16.msra.mxu0 %v4783
    %4910 = vmatpush.bf16.msra.mxu0 %v4775
    %4911 = vmatmul.bf16.gmra.mxu0 %v4517
    %v4912 = vpop.f32.mrf.mxu0
    %v4913 = vadd.f32 0.0, %v4912
    %v4914 = vpop.f32.mrf.mxu0
    %4915 = vdwg.mxu0
    %4916 = vmatpush.bf16.msra.mxu0 %v4832
    %4917 = vmatpush.bf16.msra.mxu0 %v4824
    %4918 = vmatpush.bf16.msra.mxu0 %v4816
    %4919 = vmatpush.bf16.msra.mxu0 %v4808
    %4920 = vmatpush.bf16.msra.mxu0 %v4800
    %4921 = vmatpush.bf16.msra.mxu0 %v4792
    %4922 = vmatpush.bf16.msra.mxu0 %v4784
    %4923 = vmatpush.bf16.msra.mxu0 %v4776
    %4924 = vmatmul.bf16.gmra.mxu0 %v4517
    %v4925 = vpop.f32.mrf.mxu0
    %v4926 = vadd.f32 0.0, %v4925
    %v4927 = vpop.f32.mrf.mxu0
    %4928 = vdwg.mxu0
    %4929 = vmatpush.bf16.msra.mxu0 %v4833
    %4930 = vmatpush.bf16.msra.mxu0 %v4825
    %4931 = vmatpush.bf16.msra.mxu0 %v4817
    %4932 = vmatpush.bf16.msra.mxu0 %v4809
    %4933 = vmatpush.bf16.msra.mxu0 %v4801
    %4934 = vmatpush.bf16.msra.mxu0 %v4793
    %4935 = vmatpush.bf16.msra.mxu0 %v4785
    %4936 = vmatpush.bf16.msra.mxu0 %v4777
    %4937 = vmatmul.bf16.gmra.mxu0 %v4517
    %v4938 = vpop.f32.mrf.mxu0
    %v4939 = vadd.f32 0.0, %v4938
    %v4940 = vpop.f32.mrf.mxu0
    %4941 = vdwg.mxu0
    %4942 = vmatpush.bf16.msra.mxu0 %v4834
    %4943 = vmatpush.bf16.msra.mxu0 %v4826
    %4944 = vmatpush.bf16.msra.mxu0 %v4818
    %4945 = vmatpush.bf16.msra.mxu0 %v4810
    %4946 = vmatpush.bf16.msra.mxu0 %v4802
    %4947 = vmatpush.bf16.msra.mxu0 %v4794
    %4948 = vmatpush.bf16.msra.mxu0 %v4786
    %4949 = vmatpush.bf16.msra.mxu0 %v4778
    %4950 = vmatmul.bf16.gmra.mxu0 %v4517
    %v4951 = vpop.f32.mrf.mxu0
    %v4952 = vadd.f32 0.0, %v4951
    %v4953 = vpop.f32.mrf.mxu0
    %4954 = vdwg.mxu0
    %4955 = vmatpush.bf16.msra.mxu0 %v4835
    %4956 = vmatpush.bf16.msra.mxu0 %v4827
    %4957 = vmatpush.bf16.msra.mxu0 %v4819
    %4958 = vmatpush.bf16.msra.mxu0 %v4811
    %4959 = vmatpush.bf16.msra.mxu0 %v4803
    %4960 = vmatpush.bf16.msra.mxu0 %v4795
    %4961 = vmatpush.bf16.msra.mxu0 %v4787
    %4962 = vmatpush.bf16.msra.mxu0 %v4779
    %4963 = vmatmul.bf16.gmra.mxu0 %v4517
    %v4964 = vpop.f32.mrf.mxu0
    %v4965 = vadd.f32 0.0, %v4964
    %v4966 = vpop.f32.mrf.mxu0
    %4967 = vdwg.mxu0
    %4968 = vmatpush.bf16.msra.mxu0 %v4836
    %4969 = vmatpush.bf16.msra.mxu0 %v4828
    %4970 = vmatpush.bf16.msra.mxu0 %v4820
    %4971 = vmatpush.bf16.msra.mxu0 %v4812
    %4972 = vmatpush.bf16.msra.mxu0 %v4804
    %4973 = vmatpush.bf16.msra.mxu0 %v4796
    %4974 = vmatpush.bf16.msra.mxu0 %v4788
    %4975 = vmatpush.bf16.msra.mxu0 %v4780
    %4976 = vmatmul.bf16.gmra.mxu0 %v4517
    %v4977 = vpop.f32.mrf.mxu0
    %v4978 = vadd.f32 0.0, %v4977
    %v4979 = vpop.f32.mrf.mxu0
    %4980 = vdwg.mxu0
    %4981 = vmatpush.bf16.msra.mxu0 %v4837
    %4982 = vmatpush.bf16.msra.mxu0 %v4829
    %4983 = vmatpush.bf16.msra.mxu0 %v4821
    %4984 = vmatpush.bf16.msra.mxu0 %v4813
    %4985 = vmatpush.bf16.msra.mxu0 %v4805
    %4986 = vmatpush.bf16.msra.mxu0 %v4797
    %4987 = vmatpush.bf16.msra.mxu0 %v4789
    %4988 = vmatpush.bf16.msra.mxu0 %v4781
    %4989 = vmatmul.bf16.gmra.mxu0 %v4517
    %v4990 = vpop.f32.mrf.mxu0
    %v4991 = vadd.f32 0.0, %v4990
    %v4992 = vpop.f32.mrf.mxu0
    %4993 = vdwg.mxu0
    %4994 = vmatpush.bf16.msra.mxu0 %v4838
    %4995 = vmatpush.bf16.msra.mxu0 %v4830
    %4996 = vmatpush.bf16.msra.mxu0 %v4822
    %4997 = vmatpush.bf16.msra.mxu0 %v4814
    %4998 = vmatpush.bf16.msra.mxu0 %v4806
    %4999 = vmatpush.bf16.msra.mxu0 %v4798
    %5000 = vmatpush.bf16.msra.mxu0 %v4790
    %5001 = vmatpush.bf16.msra.mxu0 %v4782
    %5002 = vmatmul.bf16.gmra.mxu0 %v4517
    %v5003 = vpop.f32.mrf.mxu0
    %v5004 = vadd.f32 0.0, %v5003
    %v5005 = vpop.f32.mrf.mxu0
    %5006 = vdwg.mxu0
    %v5007 = vadd.f32 %v4505, %v4913
    %v5008 = vadd.f32 %v4506, %v4926
    %v5009 = vadd.f32 %v4507, %v4939
    %v5010 = vadd.f32 %v4508, %v4952
    %v5011 = vadd.f32 %v4509, %v4965
    %v5012 = vadd.f32 %v4510, %v4978
    %v5013 = vadd.f32 %v4511, %v4991
    %v5014 = vadd.f32 %v4512, %v5004
    %s5015 = scalar_lea.vmem [#allocation6], 5
    %v5016 = vld [vmem:[%s5015] ss:$8 sm:$0xf]
    %v5017 = vld [vmem:[%s5015] ss:$8 sm:$0xf0]
    %v5018 = vor.u32 %v5016, %v5017
    %v5019 = vpack.c.bf16 %v5018, %v5018
    %s5020 = scalar_lea.vmem [#allocation14], 2560
    %v5021 = vld [vmem:[%s5020] sm:$0xff]
    %v5022 = vld [vmem:[%s5020 + $0x8] sm:$0xff]
    %v5023 = vld [vmem:[%s5020 + $0x10] sm:$0xff]
    %v5024 = vld [vmem:[%s5020 + $0x18] sm:$0xff]
    %v5025 = vld [vmem:[%s5020 + $0x20] sm:$0xff]
    %v5026 = vld [vmem:[%s5020 + $0x28] sm:$0xff]
    %v5027 = vld [vmem:[%s5020 + $0x30] sm:$0xff]
    %v5028 = vld [vmem:[%s5020 + $0x38] sm:$0xff]
    %v5029 = vld [vmem:[%s5020 + $0x40] sm:$0xff]
    %v5030 = vld [vmem:[%s5020 + $0x48] sm:$0xff]
    %v5031 = vld [vmem:[%s5020 + $0x50] sm:$0xff]
    %v5032 = vld [vmem:[%s5020 + $0x58] sm:$0xff]
    %v5033 = vld [vmem:[%s5020 + $0x60] sm:$0xff]
    %v5034 = vld [vmem:[%s5020 + $0x68] sm:$0xff]
    %v5035 = vld [vmem:[%s5020 + $0x70] sm:$0xff]
    %v5036 = vld [vmem:[%s5020 + $0x78] sm:$0xff]
    %v5037 = vld [vmem:[%s5020 + $0x80] sm:$0xff]
    %v5038 = vld [vmem:[%s5020 + $0x88] sm:$0xff]
    %v5039 = vld [vmem:[%s5020 + $0x90] sm:$0xff]
    %v5040 = vld [vmem:[%s5020 + $0x98] sm:$0xff]
    %v5041 = vld [vmem:[%s5020 + $0xa0] sm:$0xff]
    %v5042 = vld [vmem:[%s5020 + $0xa8] sm:$0xff]
    %v5043 = vld [vmem:[%s5020 + $0xb0] sm:$0xff]
    %v5044 = vld [vmem:[%s5020 + $0xb8] sm:$0xff]
    %v5045 = vld [vmem:[%s5020 + $0xc0] sm:$0xff]
    %v5046 = vld [vmem:[%s5020 + $0xc8] sm:$0xff]
    %v5047 = vld [vmem:[%s5020 + $0xd0] sm:$0xff]
    %v5048 = vld [vmem:[%s5020 + $0xd8] sm:$0xff]
    %v5049 = vld [vmem:[%s5020 + $0xe0] sm:$0xff]
    %v5050 = vld [vmem:[%s5020 + $0xe8] sm:$0xff]
    %v5051 = vld [vmem:[%s5020 + $0xf0] sm:$0xff]
    %v5052 = vld [vmem:[%s5020 + $0xf8] sm:$0xff]
    %v5053 = vld [vmem:[%s5020 + $0x100] sm:$0xff]
    %v5054 = vld [vmem:[%s5020 + $0x108] sm:$0xff]
    %v5055 = vld [vmem:[%s5020 + $0x110] sm:$0xff]
    %v5056 = vld [vmem:[%s5020 + $0x118] sm:$0xff]
    %v5057 = vld [vmem:[%s5020 + $0x120] sm:$0xff]
    %v5058 = vld [vmem:[%s5020 + $0x128] sm:$0xff]
    %v5059 = vld [vmem:[%s5020 + $0x130] sm:$0xff]
    %v5060 = vld [vmem:[%s5020 + $0x138] sm:$0xff]
    %v5061 = vld [vmem:[%s5020 + $0x140] sm:$0xff]
    %v5062 = vld [vmem:[%s5020 + $0x148] sm:$0xff]
    %v5063 = vld [vmem:[%s5020 + $0x150] sm:$0xff]
    %v5064 = vld [vmem:[%s5020 + $0x158] sm:$0xff]
    %v5065 = vld [vmem:[%s5020 + $0x160] sm:$0xff]
    %v5066 = vld [vmem:[%s5020 + $0x168] sm:$0xff]
    %v5067 = vld [vmem:[%s5020 + $0x170] sm:$0xff]
    %v5068 = vld [vmem:[%s5020 + $0x178] sm:$0xff]
    %v5069 = vld [vmem:[%s5020 + $0x180] sm:$0xff]
    %v5070 = vld [vmem:[%s5020 + $0x188] sm:$0xff]
    %v5071 = vld [vmem:[%s5020 + $0x190] sm:$0xff]
    %v5072 = vld [vmem:[%s5020 + $0x198] sm:$0xff]
    %v5073 = vld [vmem:[%s5020 + $0x1a0] sm:$0xff]
    %v5074 = vld [vmem:[%s5020 + $0x1a8] sm:$0xff]
    %v5075 = vld [vmem:[%s5020 + $0x1b0] sm:$0xff]
    %v5076 = vld [vmem:[%s5020 + $0x1b8] sm:$0xff]
    %v5077 = vld [vmem:[%s5020 + $0x1c0] sm:$0xff]
    %v5078 = vld [vmem:[%s5020 + $0x1c8] sm:$0xff]
    %v5079 = vld [vmem:[%s5020 + $0x1d0] sm:$0xff]
    %v5080 = vld [vmem:[%s5020 + $0x1d8] sm:$0xff]
    %v5081 = vld [vmem:[%s5020 + $0x1e0] sm:$0xff]
    %v5082 = vld [vmem:[%s5020 + $0x1e8] sm:$0xff]
    %v5083 = vld [vmem:[%s5020 + $0x1f0] sm:$0xff]
    %v5084 = vld [vmem:[%s5020 + $0x1f8] sm:$0xff]
    %v5149 = vunpack.c.l.b16 %v5021
    %v5150 = vunpack.c.h.b16 %v5021
    %v5151 = vunpack.c.l.b16 %v5022
    %v5152 = vunpack.c.h.b16 %v5022
    %v5153 = vunpack.c.l.b16 %v5023
    %v5154 = vunpack.c.h.b16 %v5023
    %v5155 = vunpack.c.l.b16 %v5024
    %v5156 = vunpack.c.h.b16 %v5024
    %v5157 = vunpack.c.l.b16 %v5025
    %v5158 = vunpack.c.h.b16 %v5025
    %v5159 = vunpack.c.l.b16 %v5026
    %v5160 = vunpack.c.h.b16 %v5026
    %v5161 = vunpack.c.l.b16 %v5027
    %v5162 = vunpack.c.h.b16 %v5027
    %v5163 = vunpack.c.l.b16 %v5028
    %v5164 = vunpack.c.h.b16 %v5028
    %v5165 = vunpack.c.l.b16 %v5029
    %v5166 = vunpack.c.h.b16 %v5029
    %v5167 = vunpack.c.l.b16 %v5030
    %v5168 = vunpack.c.h.b16 %v5030
    %v5169 = vunpack.c.l.b16 %v5031
    %v5170 = vunpack.c.h.b16 %v5031
    %v5171 = vunpack.c.l.b16 %v5032
    %v5172 = vunpack.c.h.b16 %v5032
    %v5173 = vunpack.c.l.b16 %v5033
    %v5174 = vunpack.c.h.b16 %v5033
    %v5175 = vunpack.c.l.b16 %v5034
    %v5176 = vunpack.c.h.b16 %v5034
    %v5177 = vunpack.c.l.b16 %v5035
    %v5178 = vunpack.c.h.b16 %v5035
    %v5179 = vunpack.c.l.b16 %v5036
    %v5180 = vunpack.c.h.b16 %v5036
    %v5181 = vunpack.c.l.b16 %v5037
    %v5182 = vunpack.c.h.b16 %v5037
    %v5183 = vunpack.c.l.b16 %v5038
    %v5184 = vunpack.c.h.b16 %v5038
    %v5185 = vunpack.c.l.b16 %v5039
    %v5186 = vunpack.c.h.b16 %v5039
    %v5187 = vunpack.c.l.b16 %v5040
    %v5188 = vunpack.c.h.b16 %v5040
    %v5189 = vunpack.c.l.b16 %v5041
    %v5190 = vunpack.c.h.b16 %v5041
    %v5191 = vunpack.c.l.b16 %v5042
    %v5192 = vunpack.c.h.b16 %v5042
    %v5193 = vunpack.c.l.b16 %v5043
    %v5194 = vunpack.c.h.b16 %v5043
    %v5195 = vunpack.c.l.b16 %v5044
    %v5196 = vunpack.c.h.b16 %v5044
    %v5197 = vunpack.c.l.b16 %v5045
    %v5198 = vunpack.c.h.b16 %v5045
    %v5199 = vunpack.c.l.b16 %v5046
    %v5200 = vunpack.c.h.b16 %v5046
    %v5201 = vunpack.c.l.b16 %v5047
    %v5202 = vunpack.c.h.b16 %v5047
    %v5203 = vunpack.c.l.b16 %v5048
    %v5204 = vunpack.c.h.b16 %v5048
    %v5205 = vunpack.c.l.b16 %v5049
    %v5206 = vunpack.c.h.b16 %v5049
    %v5207 = vunpack.c.l.b16 %v5050
    %v5208 = vunpack.c.h.b16 %v5050
    %v5209 = vunpack.c.l.b16 %v5051
    %v5210 = vunpack.c.h.b16 %v5051
    %v5211 = vunpack.c.l.b16 %v5052
    %v5212 = vunpack.c.h.b16 %v5052
    %v5213 = vunpack.c.l.b16 %v5053
    %v5214 = vunpack.c.h.b16 %v5053
    %v5215 = vunpack.c.l.b16 %v5054
    %v5216 = vunpack.c.h.b16 %v5054
    %v5217 = vunpack.c.l.b16 %v5055
    %v5218 = vunpack.c.h.b16 %v5055
    %v5219 = vunpack.c.l.b16 %v5056
    %v5220 = vunpack.c.h.b16 %v5056
    %v5221 = vunpack.c.l.b16 %v5057
    %v5222 = vunpack.c.h.b16 %v5057
    %v5223 = vunpack.c.l.b16 %v5058
    %v5224 = vunpack.c.h.b16 %v5058
    %v5225 = vunpack.c.l.b16 %v5059
    %v5226 = vunpack.c.h.b16 %v5059
    %v5227 = vunpack.c.l.b16 %v5060
    %v5228 = vunpack.c.h.b16 %v5060
    %v5229 = vunpack.c.l.b16 %v5061
    %v5230 = vunpack.c.h.b16 %v5061
    %v5231 = vunpack.c.l.b16 %v5062
    %v5232 = vunpack.c.h.b16 %v5062
    %v5233 = vunpack.c.l.b16 %v5063
    %v5234 = vunpack.c.h.b16 %v5063
    %v5235 = vunpack.c.l.b16 %v5064
    %v5236 = vunpack.c.h.b16 %v5064
    %v5237 = vunpack.c.l.b16 %v5065
    %v5238 = vunpack.c.h.b16 %v5065
    %v5239 = vunpack.c.l.b16 %v5066
    %v5240 = vunpack.c.h.b16 %v5066
    %v5241 = vunpack.c.l.b16 %v5067
    %v5242 = vunpack.c.h.b16 %v5067
    %v5243 = vunpack.c.l.b16 %v5068
    %v5244 = vunpack.c.h.b16 %v5068
    %v5245 = vunpack.c.l.b16 %v5069
    %v5246 = vunpack.c.h.b16 %v5069
    %v5247 = vunpack.c.l.b16 %v5070
    %v5248 = vunpack.c.h.b16 %v5070
    %v5249 = vunpack.c.l.b16 %v5071
    %v5250 = vunpack.c.h.b16 %v5071
    %v5251 = vunpack.c.l.b16 %v5072
    %v5252 = vunpack.c.h.b16 %v5072
    %v5253 = vunpack.c.l.b16 %v5073
    %v5254 = vunpack.c.h.b16 %v5073
    %v5255 = vunpack.c.l.b16 %v5074
    %v5256 = vunpack.c.h.b16 %v5074
    %v5257 = vunpack.c.l.b16 %v5075
    %v5258 = vunpack.c.h.b16 %v5075
    %v5259 = vunpack.c.l.b16 %v5076
    %v5260 = vunpack.c.h.b16 %v5076
    %v5261 = vunpack.c.l.b16 %v5077
    %v5262 = vunpack.c.h.b16 %v5077
    %v5263 = vunpack.c.l.b16 %v5078
    %v5264 = vunpack.c.h.b16 %v5078
    %v5265 = vunpack.c.l.b16 %v5079
    %v5266 = vunpack.c.h.b16 %v5079
    %v5267 = vunpack.c.l.b16 %v5080
    %v5268 = vunpack.c.h.b16 %v5080
    %v5269 = vunpack.c.l.b16 %v5081
    %v5270 = vunpack.c.h.b16 %v5081
    %v5271 = vunpack.c.l.b16 %v5082
    %v5272 = vunpack.c.h.b16 %v5082
    %v5273 = vunpack.c.l.b16 %v5083
    %v5274 = vunpack.c.h.b16 %v5083
    %v5275 = vunpack.c.l.b16 %v5084
    %v5276 = vunpack.c.h.b16 %v5084
    %v5277 = vpack.c.b16 %v5157, %v5149
    %v5278 = vpack.c.b16 %v5158, %v5150
    %v5279 = vpack.c.b16 %v5159, %v5151
    %v5280 = vpack.c.b16 %v5160, %v5152
    %v5281 = vpack.c.b16 %v5161, %v5153
    %v5282 = vpack.c.b16 %v5162, %v5154
    %v5283 = vpack.c.b16 %v5163, %v5155
    %v5284 = vpack.c.b16 %v5164, %v5156
    %v5285 = vpack.c.b16 %v5173, %v5165
    %v5286 = vpack.c.b16 %v5174, %v5166
    %v5287 = vpack.c.b16 %v5175, %v5167
    %v5288 = vpack.c.b16 %v5176, %v5168
    %v5289 = vpack.c.b16 %v5177, %v5169
    %v5290 = vpack.c.b16 %v5178, %v5170
    %v5291 = vpack.c.b16 %v5179, %v5171
    %v5292 = vpack.c.b16 %v5180, %v5172
    %v5293 = vpack.c.b16 %v5189, %v5181
    %v5294 = vpack.c.b16 %v5190, %v5182
    %v5295 = vpack.c.b16 %v5191, %v5183
    %v5296 = vpack.c.b16 %v5192, %v5184
    %v5297 = vpack.c.b16 %v5193, %v5185
    %v5298 = vpack.c.b16 %v5194, %v5186
    %v5299 = vpack.c.b16 %v5195, %v5187
    %v5300 = vpack.c.b16 %v5196, %v5188
    %v5301 = vpack.c.b16 %v5205, %v5197
    %v5302 = vpack.c.b16 %v5206, %v5198
    %v5303 = vpack.c.b16 %v5207, %v5199
    %v5304 = vpack.c.b16 %v5208, %v5200
    %v5305 = vpack.c.b16 %v5209, %v5201
    %v5306 = vpack.c.b16 %v5210, %v5202
    %v5307 = vpack.c.b16 %v5211, %v5203
    %v5308 = vpack.c.b16 %v5212, %v5204
    %v5309 = vpack.c.b16 %v5221, %v5213
    %v5310 = vpack.c.b16 %v5222, %v5214
    %v5311 = vpack.c.b16 %v5223, %v5215
    %v5312 = vpack.c.b16 %v5224, %v5216
    %v5313 = vpack.c.b16 %v5225, %v5217
    %v5314 = vpack.c.b16 %v5226, %v5218
    %v5315 = vpack.c.b16 %v5227, %v5219
    %v5316 = vpack.c.b16 %v5228, %v5220
    %v5317 = vpack.c.b16 %v5237, %v5229
    %v5318 = vpack.c.b16 %v5238, %v5230
    %v5319 = vpack.c.b16 %v5239, %v5231
    %v5320 = vpack.c.b16 %v5240, %v5232
    %v5321 = vpack.c.b16 %v5241, %v5233
    %v5322 = vpack.c.b16 %v5242, %v5234
    %v5323 = vpack.c.b16 %v5243, %v5235
    %v5324 = vpack.c.b16 %v5244, %v5236
    %v5325 = vpack.c.b16 %v5253, %v5245
    %v5326 = vpack.c.b16 %v5254, %v5246
    %v5327 = vpack.c.b16 %v5255, %v5247
    %v5328 = vpack.c.b16 %v5256, %v5248
    %v5329 = vpack.c.b16 %v5257, %v5249
    %v5330 = vpack.c.b16 %v5258, %v5250
    %v5331 = vpack.c.b16 %v5259, %v5251
    %v5332 = vpack.c.b16 %v5260, %v5252
    %v5333 = vpack.c.b16 %v5269, %v5261
    %v5334 = vpack.c.b16 %v5270, %v5262
    %v5335 = vpack.c.b16 %v5271, %v5263
    %v5336 = vpack.c.b16 %v5272, %v5264
    %v5337 = vpack.c.b16 %v5273, %v5265
    %v5338 = vpack.c.b16 %v5274, %v5266
    %v5339 = vpack.c.b16 %v5275, %v5267
    %v5340 = vpack.c.b16 %v5276, %v5268
    %5405 = vmatpush.bf16.msra.mxu0 %v5333
    %5406 = vmatpush.bf16.msra.mxu0 %v5325
    %5407 = vmatpush.bf16.msra.mxu0 %v5317
    %5408 = vmatpush.bf16.msra.mxu0 %v5309
    %5409 = vmatpush.bf16.msra.mxu0 %v5301
    %5410 = vmatpush.bf16.msra.mxu0 %v5293
    %5411 = vmatpush.bf16.msra.mxu0 %v5285
    %5412 = vmatpush.bf16.msra.mxu0 %v5277
    %5413 = vmatmul.bf16.gmra.mxu0 %v5019
    %v5414 = vpop.f32.mrf.mxu0
    %v5415 = vadd.f32 0.0, %v5414
    %v5416 = vpop.f32.mrf.mxu0
    %5417 = vdwg.mxu0
    %5418 = vmatpush.bf16.msra.mxu0 %v5334
    %5419 = vmatpush.bf16.msra.mxu0 %v5326
    %5420 = vmatpush.bf16.msra.mxu0 %v5318
    %5421 = vmatpush.bf16.msra.mxu0 %v5310
    %5422 = vmatpush.bf16.msra.mxu0 %v5302
    %5423 = vmatpush.bf16.msra.mxu0 %v5294
    %5424 = vmatpush.bf16.msra.mxu0 %v5286
    %5425 = vmatpush.bf16.msra.mxu0 %v5278
    %5426 = vmatmul.bf16.gmra.mxu0 %v5019
    %v5427 = vpop.f32.mrf.mxu0
    %v5428 = vadd.f32 0.0, %v5427
    %v5429 = vpop.f32.mrf.mxu0
    %5430 = vdwg.mxu0
    %5431 = vmatpush.bf16.msra.mxu0 %v5335
    %5432 = vmatpush.bf16.msra.mxu0 %v5327
    %5433 = vmatpush.bf16.msra.mxu0 %v5319
    %5434 = vmatpush.bf16.msra.mxu0 %v5311
    %5435 = vmatpush.bf16.msra.mxu0 %v5303
    %5436 = vmatpush.bf16.msra.mxu0 %v5295
    %5437 = vmatpush.bf16.msra.mxu0 %v5287
    %5438 = vmatpush.bf16.msra.mxu0 %v5279
    %5439 = vmatmul.bf16.gmra.mxu0 %v5019
    %v5440 = vpop.f32.mrf.mxu0
    %v5441 = vadd.f32 0.0, %v5440
    %v5442 = vpop.f32.mrf.mxu0
    %5443 = vdwg.mxu0
    %5444 = vmatpush.bf16.msra.mxu0 %v5336
    %5445 = vmatpush.bf16.msra.mxu0 %v5328
    %5446 = vmatpush.bf16.msra.mxu0 %v5320
    %5447 = vmatpush.bf16.msra.mxu0 %v5312
    %5448 = vmatpush.bf16.msra.mxu0 %v5304
    %5449 = vmatpush.bf16.msra.mxu0 %v5296
    %5450 = vmatpush.bf16.msra.mxu0 %v5288
    %5451 = vmatpush.bf16.msra.mxu0 %v5280
    %5452 = vmatmul.bf16.gmra.mxu0 %v5019
    %v5453 = vpop.f32.mrf.mxu0
    %v5454 = vadd.f32 0.0, %v5453
    %v5455 = vpop.f32.mrf.mxu0
    %5456 = vdwg.mxu0
    %5457 = vmatpush.bf16.msra.mxu0 %v5337
    %5458 = vmatpush.bf16.msra.mxu0 %v5329
    %5459 = vmatpush.bf16.msra.mxu0 %v5321
    %5460 = vmatpush.bf16.msra.mxu0 %v5313
    %5461 = vmatpush.bf16.msra.mxu0 %v5305
    %5462 = vmatpush.bf16.msra.mxu0 %v5297
    %5463 = vmatpush.bf16.msra.mxu0 %v5289
    %5464 = vmatpush.bf16.msra.mxu0 %v5281
    %5465 = vmatmul.bf16.gmra.mxu0 %v5019
    %v5466 = vpop.f32.mrf.mxu0
    %v5467 = vadd.f32 0.0, %v5466
    %v5468 = vpop.f32.mrf.mxu0
    %5469 = vdwg.mxu0
    %5470 = vmatpush.bf16.msra.mxu0 %v5338
    %5471 = vmatpush.bf16.msra.mxu0 %v5330
    %5472 = vmatpush.bf16.msra.mxu0 %v5322
    %5473 = vmatpush.bf16.msra.mxu0 %v5314
    %5474 = vmatpush.bf16.msra.mxu0 %v5306
    %5475 = vmatpush.bf16.msra.mxu0 %v5298
    %5476 = vmatpush.bf16.msra.mxu0 %v5290
    %5477 = vmatpush.bf16.msra.mxu0 %v5282
    %5478 = vmatmul.bf16.gmra.mxu0 %v5019
    %v5479 = vpop.f32.mrf.mxu0
    %v5480 = vadd.f32 0.0, %v5479
    %v5481 = vpop.f32.mrf.mxu0
    %5482 = vdwg.mxu0
    %5483 = vmatpush.bf16.msra.mxu0 %v5339
    %5484 = vmatpush.bf16.msra.mxu0 %v5331
    %5485 = vmatpush.bf16.msra.mxu0 %v5323
    %5486 = vmatpush.bf16.msra.mxu0 %v5315
    %5487 = vmatpush.bf16.msra.mxu0 %v5307
    %5488 = vmatpush.bf16.msra.mxu0 %v5299
    %5489 = vmatpush.bf16.msra.mxu0 %v5291
    %5490 = vmatpush.bf16.msra.mxu0 %v5283
    %5491 = vmatmul.bf16.gmra.mxu0 %v5019
    %v5492 = vpop.f32.mrf.mxu0
    %v5493 = vadd.f32 0.0, %v5492
    %v5494 = vpop.f32.mrf.mxu0
    %5495 = vdwg.mxu0
    %5496 = vmatpush.bf16.msra.mxu0 %v5340
    %5497 = vmatpush.bf16.msra.mxu0 %v5332
    %5498 = vmatpush.bf16.msra.mxu0 %v5324
    %5499 = vmatpush.bf16.msra.mxu0 %v5316
    %5500 = vmatpush.bf16.msra.mxu0 %v5308
    %5501 = vmatpush.bf16.msra.mxu0 %v5300
    %5502 = vmatpush.bf16.msra.mxu0 %v5292
    %5503 = vmatpush.bf16.msra.mxu0 %v5284
    %5504 = vmatmul.bf16.gmra.mxu0 %v5019
    %v5505 = vpop.f32.mrf.mxu0
    %v5506 = vadd.f32 0.0, %v5505
    %v5507 = vpop.f32.mrf.mxu0
    %5508 = vdwg.mxu0
    %v5509 = vadd.f32 %v5007, %v5415
    %v5510 = vadd.f32 %v5008, %v5428
    %v5511 = vadd.f32 %v5009, %v5441
    %v5512 = vadd.f32 %v5010, %v5454
    %v5513 = vadd.f32 %v5011, %v5467
    %v5514 = vadd.f32 %v5012, %v5480
    %v5515 = vadd.f32 %v5013, %v5493
    %v5516 = vadd.f32 %v5014, %v5506
    %s5517 = scalar_lea.vmem [#allocation6], 6
    %v5518 = vld [vmem:[%s5517] ss:$8 sm:$0xf]
    %v5519 = vld [vmem:[%s5517] ss:$8 sm:$0xf0]
    %v5520 = vor.u32 %v5518, %v5519
    %v5521 = vpack.c.bf16 %v5520, %v5520
    %s5522 = scalar_lea.vmem [#allocation14], 3072
    %v5523 = vld [vmem:[%s5522] sm:$0xff]
    %v5524 = vld [vmem:[%s5522 + $0x8] sm:$0xff]
    %v5525 = vld [vmem:[%s5522 + $0x10] sm:$0xff]
    %v5526 = vld [vmem:[%s5522 + $0x18] sm:$0xff]
    %v5527 = vld [vmem:[%s5522 + $0x20] sm:$0xff]
    %v5528 = vld [vmem:[%s5522 + $0x28] sm:$0xff]
    %v5529 = vld [vmem:[%s5522 + $0x30] sm:$0xff]
    %v5530 = vld [vmem:[%s5522 + $0x38] sm:$0xff]
    %v5531 = vld [vmem:[%s5522 + $0x40] sm:$0xff]
    %v5532 = vld [vmem:[%s5522 + $0x48] sm:$0xff]
    %v5533 = vld [vmem:[%s5522 + $0x50] sm:$0xff]
    %v5534 = vld [vmem:[%s5522 + $0x58] sm:$0xff]
    %v5535 = vld [vmem:[%s5522 + $0x60] sm:$0xff]
    %v5536 = vld [vmem:[%s5522 + $0x68] sm:$0xff]
    %v5537 = vld [vmem:[%s5522 + $0x70] sm:$0xff]
    %v5538 = vld [vmem:[%s5522 + $0x78] sm:$0xff]
    %v5539 = vld [vmem:[%s5522 + $0x80] sm:$0xff]
    %v5540 = vld [vmem:[%s5522 + $0x88] sm:$0xff]
    %v5541 = vld [vmem:[%s5522 + $0x90] sm:$0xff]
    %v5542 = vld [vmem:[%s5522 + $0x98] sm:$0xff]
    %v5543 = vld [vmem:[%s5522 + $0xa0] sm:$0xff]
    %v5544 = vld [vmem:[%s5522 + $0xa8] sm:$0xff]
    %v5545 = vld [vmem:[%s5522 + $0xb0] sm:$0xff]
    %v5546 = vld [vmem:[%s5522 + $0xb8] sm:$0xff]
    %v5547 = vld [vmem:[%s5522 + $0xc0] sm:$0xff]
    %v5548 = vld [vmem:[%s5522 + $0xc8] sm:$0xff]
    %v5549 = vld [vmem:[%s5522 + $0xd0] sm:$0xff]
    %v5550 = vld [vmem:[%s5522 + $0xd8] sm:$0xff]
    %v5551 = vld [vmem:[%s5522 + $0xe0] sm:$0xff]
    %v5552 = vld [vmem:[%s5522 + $0xe8] sm:$0xff]
    %v5553 = vld [vmem:[%s5522 + $0xf0] sm:$0xff]
    %v5554 = vld [vmem:[%s5522 + $0xf8] sm:$0xff]
    %v5555 = vld [vmem:[%s5522 + $0x100] sm:$0xff]
    %v5556 = vld [vmem:[%s5522 + $0x108] sm:$0xff]
    %v5557 = vld [vmem:[%s5522 + $0x110] sm:$0xff]
    %v5558 = vld [vmem:[%s5522 + $0x118] sm:$0xff]
    %v5559 = vld [vmem:[%s5522 + $0x120] sm:$0xff]
    %v5560 = vld [vmem:[%s5522 + $0x128] sm:$0xff]
    %v5561 = vld [vmem:[%s5522 + $0x130] sm:$0xff]
    %v5562 = vld [vmem:[%s5522 + $0x138] sm:$0xff]
    %v5563 = vld [vmem:[%s5522 + $0x140] sm:$0xff]
    %v5564 = vld [vmem:[%s5522 + $0x148] sm:$0xff]
    %v5565 = vld [vmem:[%s5522 + $0x150] sm:$0xff]
    %v5566 = vld [vmem:[%s5522 + $0x158] sm:$0xff]
    %v5567 = vld [vmem:[%s5522 + $0x160] sm:$0xff]
    %v5568 = vld [vmem:[%s5522 + $0x168] sm:$0xff]
    %v5569 = vld [vmem:[%s5522 + $0x170] sm:$0xff]
    %v5570 = vld [vmem:[%s5522 + $0x178] sm:$0xff]
    %v5571 = vld [vmem:[%s5522 + $0x180] sm:$0xff]
    %v5572 = vld [vmem:[%s5522 + $0x188] sm:$0xff]
    %v5573 = vld [vmem:[%s5522 + $0x190] sm:$0xff]
    %v5574 = vld [vmem:[%s5522 + $0x198] sm:$0xff]
    %v5575 = vld [vmem:[%s5522 + $0x1a0] sm:$0xff]
    %v5576 = vld [vmem:[%s5522 + $0x1a8] sm:$0xff]
    %v5577 = vld [vmem:[%s5522 + $0x1b0] sm:$0xff]
    %v5578 = vld [vmem:[%s5522 + $0x1b8] sm:$0xff]
    %v5579 = vld [vmem:[%s5522 + $0x1c0] sm:$0xff]
    %v5580 = vld [vmem:[%s5522 + $0x1c8] sm:$0xff]
    %v5581 = vld [vmem:[%s5522 + $0x1d0] sm:$0xff]
    %v5582 = vld [vmem:[%s5522 + $0x1d8] sm:$0xff]
    %v5583 = vld [vmem:[%s5522 + $0x1e0] sm:$0xff]
    %v5584 = vld [vmem:[%s5522 + $0x1e8] sm:$0xff]
    %v5585 = vld [vmem:[%s5522 + $0x1f0] sm:$0xff]
    %v5586 = vld [vmem:[%s5522 + $0x1f8] sm:$0xff]
    %v5651 = vunpack.c.l.b16 %v5523
    %v5652 = vunpack.c.h.b16 %v5523
    %v5653 = vunpack.c.l.b16 %v5524
    %v5654 = vunpack.c.h.b16 %v5524
    %v5655 = vunpack.c.l.b16 %v5525
    %v5656 = vunpack.c.h.b16 %v5525
    %v5657 = vunpack.c.l.b16 %v5526
    %v5658 = vunpack.c.h.b16 %v5526
    %v5659 = vunpack.c.l.b16 %v5527
    %v5660 = vunpack.c.h.b16 %v5527
    %v5661 = vunpack.c.l.b16 %v5528
    %v5662 = vunpack.c.h.b16 %v5528
    %v5663 = vunpack.c.l.b16 %v5529
    %v5664 = vunpack.c.h.b16 %v5529
    %v5665 = vunpack.c.l.b16 %v5530
    %v5666 = vunpack.c.h.b16 %v5530
    %v5667 = vunpack.c.l.b16 %v5531
    %v5668 = vunpack.c.h.b16 %v5531
    %v5669 = vunpack.c.l.b16 %v5532
    %v5670 = vunpack.c.h.b16 %v5532
    %v5671 = vunpack.c.l.b16 %v5533
    %v5672 = vunpack.c.h.b16 %v5533
    %v5673 = vunpack.c.l.b16 %v5534
    %v5674 = vunpack.c.h.b16 %v5534
    %v5675 = vunpack.c.l.b16 %v5535
    %v5676 = vunpack.c.h.b16 %v5535
    %v5677 = vunpack.c.l.b16 %v5536
    %v5678 = vunpack.c.h.b16 %v5536
    %v5679 = vunpack.c.l.b16 %v5537
    %v5680 = vunpack.c.h.b16 %v5537
    %v5681 = vunpack.c.l.b16 %v5538
    %v5682 = vunpack.c.h.b16 %v5538
    %v5683 = vunpack.c.l.b16 %v5539
    %v5684 = vunpack.c.h.b16 %v5539
    %v5685 = vunpack.c.l.b16 %v5540
    %v5686 = vunpack.c.h.b16 %v5540
    %v5687 = vunpack.c.l.b16 %v5541
    %v5688 = vunpack.c.h.b16 %v5541
    %v5689 = vunpack.c.l.b16 %v5542
    %v5690 = vunpack.c.h.b16 %v5542
    %v5691 = vunpack.c.l.b16 %v5543
    %v5692 = vunpack.c.h.b16 %v5543
    %v5693 = vunpack.c.l.b16 %v5544
    %v5694 = vunpack.c.h.b16 %v5544
    %v5695 = vunpack.c.l.b16 %v5545
    %v5696 = vunpack.c.h.b16 %v5545
    %v5697 = vunpack.c.l.b16 %v5546
    %v5698 = vunpack.c.h.b16 %v5546
    %v5699 = vunpack.c.l.b16 %v5547
    %v5700 = vunpack.c.h.b16 %v5547
    %v5701 = vunpack.c.l.b16 %v5548
    %v5702 = vunpack.c.h.b16 %v5548
    %v5703 = vunpack.c.l.b16 %v5549
    %v5704 = vunpack.c.h.b16 %v5549
    %v5705 = vunpack.c.l.b16 %v5550
    %v5706 = vunpack.c.h.b16 %v5550
    %v5707 = vunpack.c.l.b16 %v5551
    %v5708 = vunpack.c.h.b16 %v5551
    %v5709 = vunpack.c.l.b16 %v5552
    %v5710 = vunpack.c.h.b16 %v5552
    %v5711 = vunpack.c.l.b16 %v5553
    %v5712 = vunpack.c.h.b16 %v5553
    %v5713 = vunpack.c.l.b16 %v5554
    %v5714 = vunpack.c.h.b16 %v5554
    %v5715 = vunpack.c.l.b16 %v5555
    %v5716 = vunpack.c.h.b16 %v5555
    %v5717 = vunpack.c.l.b16 %v5556
    %v5718 = vunpack.c.h.b16 %v5556
    %v5719 = vunpack.c.l.b16 %v5557
    %v5720 = vunpack.c.h.b16 %v5557
    %v5721 = vunpack.c.l.b16 %v5558
    %v5722 = vunpack.c.h.b16 %v5558
    %v5723 = vunpack.c.l.b16 %v5559
    %v5724 = vunpack.c.h.b16 %v5559
    %v5725 = vunpack.c.l.b16 %v5560
    %v5726 = vunpack.c.h.b16 %v5560
    %v5727 = vunpack.c.l.b16 %v5561
    %v5728 = vunpack.c.h.b16 %v5561
    %v5729 = vunpack.c.l.b16 %v5562
    %v5730 = vunpack.c.h.b16 %v5562
    %v5731 = vunpack.c.l.b16 %v5563
    %v5732 = vunpack.c.h.b16 %v5563
    %v5733 = vunpack.c.l.b16 %v5564
    %v5734 = vunpack.c.h.b16 %v5564
    %v5735 = vunpack.c.l.b16 %v5565
    %v5736 = vunpack.c.h.b16 %v5565
    %v5737 = vunpack.c.l.b16 %v5566
    %v5738 = vunpack.c.h.b16 %v5566
    %v5739 = vunpack.c.l.b16 %v5567
    %v5740 = vunpack.c.h.b16 %v5567
    %v5741 = vunpack.c.l.b16 %v5568
    %v5742 = vunpack.c.h.b16 %v5568
    %v5743 = vunpack.c.l.b16 %v5569
    %v5744 = vunpack.c.h.b16 %v5569
    %v5745 = vunpack.c.l.b16 %v5570
    %v5746 = vunpack.c.h.b16 %v5570
    %v5747 = vunpack.c.l.b16 %v5571
    %v5748 = vunpack.c.h.b16 %v5571
    %v5749 = vunpack.c.l.b16 %v5572
    %v5750 = vunpack.c.h.b16 %v5572
    %v5751 = vunpack.c.l.b16 %v5573
    %v5752 = vunpack.c.h.b16 %v5573
    %v5753 = vunpack.c.l.b16 %v5574
    %v5754 = vunpack.c.h.b16 %v5574
    %v5755 = vunpack.c.l.b16 %v5575
    %v5756 = vunpack.c.h.b16 %v5575
    %v5757 = vunpack.c.l.b16 %v5576
    %v5758 = vunpack.c.h.b16 %v5576
    %v5759 = vunpack.c.l.b16 %v5577
    %v5760 = vunpack.c.h.b16 %v5577
    %v5761 = vunpack.c.l.b16 %v5578
    %v5762 = vunpack.c.h.b16 %v5578
    %v5763 = vunpack.c.l.b16 %v5579
    %v5764 = vunpack.c.h.b16 %v5579
    %v5765 = vunpack.c.l.b16 %v5580
    %v5766 = vunpack.c.h.b16 %v5580
    %v5767 = vunpack.c.l.b16 %v5581
    %v5768 = vunpack.c.h.b16 %v5581
    %v5769 = vunpack.c.l.b16 %v5582
    %v5770 = vunpack.c.h.b16 %v5582
    %v5771 = vunpack.c.l.b16 %v5583
    %v5772 = vunpack.c.h.b16 %v5583
    %v5773 = vunpack.c.l.b16 %v5584
    %v5774 = vunpack.c.h.b16 %v5584
    %v5775 = vunpack.c.l.b16 %v5585
    %v5776 = vunpack.c.h.b16 %v5585
    %v5777 = vunpack.c.l.b16 %v5586
    %v5778 = vunpack.c.h.b16 %v5586
    %v5779 = vpack.c.b16 %v5659, %v5651
    %v5780 = vpack.c.b16 %v5660, %v5652
    %v5781 = vpack.c.b16 %v5661, %v5653
    %v5782 = vpack.c.b16 %v5662, %v5654
    %v5783 = vpack.c.b16 %v5663, %v5655
    %v5784 = vpack.c.b16 %v5664, %v5656
    %v5785 = vpack.c.b16 %v5665, %v5657
    %v5786 = vpack.c.b16 %v5666, %v5658
    %v5787 = vpack.c.b16 %v5675, %v5667
    %v5788 = vpack.c.b16 %v5676, %v5668
    %v5789 = vpack.c.b16 %v5677, %v5669
    %v5790 = vpack.c.b16 %v5678, %v5670
    %v5791 = vpack.c.b16 %v5679, %v5671
    %v5792 = vpack.c.b16 %v5680, %v5672
    %v5793 = vpack.c.b16 %v5681, %v5673
    %v5794 = vpack.c.b16 %v5682, %v5674
    %v5795 = vpack.c.b16 %v5691, %v5683
    %v5796 = vpack.c.b16 %v5692, %v5684
    %v5797 = vpack.c.b16 %v5693, %v5685
    %v5798 = vpack.c.b16 %v5694, %v5686
    %v5799 = vpack.c.b16 %v5695, %v5687
    %v5800 = vpack.c.b16 %v5696, %v5688
    %v5801 = vpack.c.b16 %v5697, %v5689
    %v5802 = vpack.c.b16 %v5698, %v5690
    %v5803 = vpack.c.b16 %v5707, %v5699
    %v5804 = vpack.c.b16 %v5708, %v5700
    %v5805 = vpack.c.b16 %v5709, %v5701
    %v5806 = vpack.c.b16 %v5710, %v5702
    %v5807 = vpack.c.b16 %v5711, %v5703
    %v5808 = vpack.c.b16 %v5712, %v5704
    %v5809 = vpack.c.b16 %v5713, %v5705
    %v5810 = vpack.c.b16 %v5714, %v5706
    %v5811 = vpack.c.b16 %v5723, %v5715
    %v5812 = vpack.c.b16 %v5724, %v5716
    %v5813 = vpack.c.b16 %v5725, %v5717
    %v5814 = vpack.c.b16 %v5726, %v5718
    %v5815 = vpack.c.b16 %v5727, %v5719
    %v5816 = vpack.c.b16 %v5728, %v5720
    %v5817 = vpack.c.b16 %v5729, %v5721
    %v5818 = vpack.c.b16 %v5730, %v5722
    %v5819 = vpack.c.b16 %v5739, %v5731
    %v5820 = vpack.c.b16 %v5740, %v5732
    %v5821 = vpack.c.b16 %v5741, %v5733
    %v5822 = vpack.c.b16 %v5742, %v5734
    %v5823 = vpack.c.b16 %v5743, %v5735
    %v5824 = vpack.c.b16 %v5744, %v5736
    %v5825 = vpack.c.b16 %v5745, %v5737
    %v5826 = vpack.c.b16 %v5746, %v5738
    %v5827 = vpack.c.b16 %v5755, %v5747
    %v5828 = vpack.c.b16 %v5756, %v5748
    %v5829 = vpack.c.b16 %v5757, %v5749
    %v5830 = vpack.c.b16 %v5758, %v5750
    %v5831 = vpack.c.b16 %v5759, %v5751
    %v5832 = vpack.c.b16 %v5760, %v5752
    %v5833 = vpack.c.b16 %v5761, %v5753
    %v5834 = vpack.c.b16 %v5762, %v5754
    %v5835 = vpack.c.b16 %v5771, %v5763
    %v5836 = vpack.c.b16 %v5772, %v5764
    %v5837 = vpack.c.b16 %v5773, %v5765
    %v5838 = vpack.c.b16 %v5774, %v5766
    %v5839 = vpack.c.b16 %v5775, %v5767
    %v5840 = vpack.c.b16 %v5776, %v5768
    %v5841 = vpack.c.b16 %v5777, %v5769
    %v5842 = vpack.c.b16 %v5778, %v5770
    %5907 = vmatpush.bf16.msra.mxu0 %v5835
    %5908 = vmatpush.bf16.msra.mxu0 %v5827
    %5909 = vmatpush.bf16.msra.mxu0 %v5819
    %5910 = vmatpush.bf16.msra.mxu0 %v5811
    %5911 = vmatpush.bf16.msra.mxu0 %v5803
    %5912 = vmatpush.bf16.msra.mxu0 %v5795
    %5913 = vmatpush.bf16.msra.mxu0 %v5787
    %5914 = vmatpush.bf16.msra.mxu0 %v5779
    %5915 = vmatmul.bf16.gmra.mxu0 %v5521
    %v5916 = vpop.f32.mrf.mxu0
    %v5917 = vadd.f32 0.0, %v5916
    %v5918 = vpop.f32.mrf.mxu0
    %5919 = vdwg.mxu0
    %5920 = vmatpush.bf16.msra.mxu0 %v5836
    %5921 = vmatpush.bf16.msra.mxu0 %v5828
    %5922 = vmatpush.bf16.msra.mxu0 %v5820
    %5923 = vmatpush.bf16.msra.mxu0 %v5812
    %5924 = vmatpush.bf16.msra.mxu0 %v5804
    %5925 = vmatpush.bf16.msra.mxu0 %v5796
    %5926 = vmatpush.bf16.msra.mxu0 %v5788
    %5927 = vmatpush.bf16.msra.mxu0 %v5780
    %5928 = vmatmul.bf16.gmra.mxu0 %v5521
    %v5929 = vpop.f32.mrf.mxu0
    %v5930 = vadd.f32 0.0, %v5929
    %v5931 = vpop.f32.mrf.mxu0
    %5932 = vdwg.mxu0
    %5933 = vmatpush.bf16.msra.mxu0 %v5837
    %5934 = vmatpush.bf16.msra.mxu0 %v5829
    %5935 = vmatpush.bf16.msra.mxu0 %v5821
    %5936 = vmatpush.bf16.msra.mxu0 %v5813
    %5937 = vmatpush.bf16.msra.mxu0 %v5805
    %5938 = vmatpush.bf16.msra.mxu0 %v5797
    %5939 = vmatpush.bf16.msra.mxu0 %v5789
    %5940 = vmatpush.bf16.msra.mxu0 %v5781
    %5941 = vmatmul.bf16.gmra.mxu0 %v5521
    %v5942 = vpop.f32.mrf.mxu0
    %v5943 = vadd.f32 0.0, %v5942
    %v5944 = vpop.f32.mrf.mxu0
    %5945 = vdwg.mxu0
    %5946 = vmatpush.bf16.msra.mxu0 %v5838
    %5947 = vmatpush.bf16.msra.mxu0 %v5830
    %5948 = vmatpush.bf16.msra.mxu0 %v5822
    %5949 = vmatpush.bf16.msra.mxu0 %v5814
    %5950 = vmatpush.bf16.msra.mxu0 %v5806
    %5951 = vmatpush.bf16.msra.mxu0 %v5798
    %5952 = vmatpush.bf16.msra.mxu0 %v5790
    %5953 = vmatpush.bf16.msra.mxu0 %v5782
    %5954 = vmatmul.bf16.gmra.mxu0 %v5521
    %v5955 = vpop.f32.mrf.mxu0
    %v5956 = vadd.f32 0.0, %v5955
    %v5957 = vpop.f32.mrf.mxu0
    %5958 = vdwg.mxu0
    %5959 = vmatpush.bf16.msra.mxu0 %v5839
    %5960 = vmatpush.bf16.msra.mxu0 %v5831
    %5961 = vmatpush.bf16.msra.mxu0 %v5823
    %5962 = vmatpush.bf16.msra.mxu0 %v5815
    %5963 = vmatpush.bf16.msra.mxu0 %v5807
    %5964 = vmatpush.bf16.msra.mxu0 %v5799
    %5965 = vmatpush.bf16.msra.mxu0 %v5791
    %5966 = vmatpush.bf16.msra.mxu0 %v5783
    %5967 = vmatmul.bf16.gmra.mxu0 %v5521
    %v5968 = vpop.f32.mrf.mxu0
    %v5969 = vadd.f32 0.0, %v5968
    %v5970 = vpop.f32.mrf.mxu0
    %5971 = vdwg.mxu0
    %5972 = vmatpush.bf16.msra.mxu0 %v5840
    %5973 = vmatpush.bf16.msra.mxu0 %v5832
    %5974 = vmatpush.bf16.msra.mxu0 %v5824
    %5975 = vmatpush.bf16.msra.mxu0 %v5816
    %5976 = vmatpush.bf16.msra.mxu0 %v5808
    %5977 = vmatpush.bf16.msra.mxu0 %v5800
    %5978 = vmatpush.bf16.msra.mxu0 %v5792
    %5979 = vmatpush.bf16.msra.mxu0 %v5784
    %5980 = vmatmul.bf16.gmra.mxu0 %v5521
    %v5981 = vpop.f32.mrf.mxu0
    %v5982 = vadd.f32 0.0, %v5981
    %v5983 = vpop.f32.mrf.mxu0
    %5984 = vdwg.mxu0
    %5985 = vmatpush.bf16.msra.mxu0 %v5841
    %5986 = vmatpush.bf16.msra.mxu0 %v5833
    %5987 = vmatpush.bf16.msra.mxu0 %v5825
    %5988 = vmatpush.bf16.msra.mxu0 %v5817
    %5989 = vmatpush.bf16.msra.mxu0 %v5809
    %5990 = vmatpush.bf16.msra.mxu0 %v5801
    %5991 = vmatpush.bf16.msra.mxu0 %v5793
    %5992 = vmatpush.bf16.msra.mxu0 %v5785
    %5993 = vmatmul.bf16.gmra.mxu0 %v5521
    %v5994 = vpop.f32.mrf.mxu0
    %v5995 = vadd.f32 0.0, %v5994
    %v5996 = vpop.f32.mrf.mxu0
    %5997 = vdwg.mxu0
    %5998 = vmatpush.bf16.msra.mxu0 %v5842
    %5999 = vmatpush.bf16.msra.mxu0 %v5834
    %6000 = vmatpush.bf16.msra.mxu0 %v5826
    %6001 = vmatpush.bf16.msra.mxu0 %v5818
    %6002 = vmatpush.bf16.msra.mxu0 %v5810
    %6003 = vmatpush.bf16.msra.mxu0 %v5802
    %6004 = vmatpush.bf16.msra.mxu0 %v5794
    %6005 = vmatpush.bf16.msra.mxu0 %v5786
    %6006 = vmatmul.bf16.gmra.mxu0 %v5521
    %v6007 = vpop.f32.mrf.mxu0
    %v6008 = vadd.f32 0.0, %v6007
    %v6009 = vpop.f32.mrf.mxu0
    %6010 = vdwg.mxu0
    %v6011 = vadd.f32 %v5509, %v5917
    %v6012 = vadd.f32 %v5510, %v5930
    %v6013 = vadd.f32 %v5511, %v5943
    %v6014 = vadd.f32 %v5512, %v5956
    %v6015 = vadd.f32 %v5513, %v5969
    %v6016 = vadd.f32 %v5514, %v5982
    %v6017 = vadd.f32 %v5515, %v5995
    %v6018 = vadd.f32 %v5516, %v6008
    %v6019 = vld [vmem:[#allocation15] sm:$0xff]
    %v6021 = vperm.slane %v6019, 0
    %v6022 = vperm.slane %v6019, 1
    %v6023 = vperm.slane %v6019, 2
    %v6024 = vperm.slane %v6019, 3
    %v6025 = vperm.slane %v6019, 4
    %v6026 = vperm.slane %v6019, 5
    %v6027 = vperm.slane %v6019, 6
    %v6028 = vperm.slane %v6019, 7
    %v6037 = vadd.f32 %v6011, %v6021
    %v6038 = vadd.f32 %v6012, %v6022
    %v6039 = vadd.f32 %v6013, %v6023
    %v6040 = vadd.f32 %v6014, %v6024
    %v6041 = vadd.f32 %v6015, %v6025
    %v6042 = vadd.f32 %v6016, %v6026
    %v6043 = vadd.f32 %v6017, %v6027
    %v6044 = vadd.f32 %v6018, %v6028
    %v6045 = vpack.c.bf16 %v6037, %v6037
    %v6046 = vpack.c.bf16 %v6038, %v6038
    %v6047 = vpack.c.bf16 %v6039, %v6039
    %v6048 = vpack.c.bf16 %v6040, %v6040
    %v6049 = vpack.c.bf16 %v6041, %v6041
    %v6050 = vpack.c.bf16 %v6042, %v6042
    %v6051 = vpack.c.bf16 %v6043, %v6043
    %v6052 = vpack.c.bf16 %v6044, %v6044
    %v6053 = vld [vmem:[#allocation17] sm:$0xf]
    %v6054 = vld [vmem:[#allocation17 + $0x4] sm:$0xf]
    %v6055 = vld [vmem:[#allocation17 + $0x8] sm:$0xf]
    %v6056 = vld [vmem:[#allocation17 + $0xc] sm:$0xf]
    %v6057 = vld [vmem:[#allocation17 + $0x10] sm:$0xf]
    %v6058 = vld [vmem:[#allocation17 + $0x14] sm:$0xf]
    %v6059 = vld [vmem:[#allocation17 + $0x18] sm:$0xf]
    %v6060 = vld [vmem:[#allocation17 + $0x1c] sm:$0xf]
    %v6061 = vld [vmem:[#allocation17 + $0x20] sm:$0xf]
    %v6062 = vld [vmem:[#allocation17 + $0x24] sm:$0xf]
    %v6063 = vld [vmem:[#allocation17 + $0x28] sm:$0xf]
    %v6064 = vld [vmem:[#allocation17 + $0x2c] sm:$0xf]
    %v6065 = vld [vmem:[#allocation17 + $0x30] sm:$0xf]
    %v6066 = vld [vmem:[#allocation17 + $0x34] sm:$0xf]
    %v6067 = vld [vmem:[#allocation17 + $0x38] sm:$0xf]
    %v6068 = vld [vmem:[#allocation17 + $0x3c] sm:$0xf]
    %v6069 = vld [vmem:[#allocation17 + $0x40] sm:$0xf]
    %v6070 = vld [vmem:[#allocation17 + $0x44] sm:$0xf]
    %v6071 = vld [vmem:[#allocation17 + $0x48] sm:$0xf]
    %v6072 = vld [vmem:[#allocation17 + $0x4c] sm:$0xf]
    %v6073 = vld [vmem:[#allocation17 + $0x50] sm:$0xf]
    %v6074 = vld [vmem:[#allocation17 + $0x54] sm:$0xf]
    %v6075 = vld [vmem:[#allocation17 + $0x58] sm:$0xf]
    %v6076 = vld [vmem:[#allocation17 + $0x5c] sm:$0xf]
    %v6077 = vld [vmem:[#allocation17 + $0x60] sm:$0xf]
    %v6078 = vld [vmem:[#allocation17 + $0x64] sm:$0xf]
    %v6079 = vld [vmem:[#allocation17 + $0x68] sm:$0xf]
    %v6080 = vld [vmem:[#allocation17 + $0x6c] sm:$0xf]
    %v6081 = vld [vmem:[#allocation17 + $0x70] sm:$0xf]
    %v6082 = vld [vmem:[#allocation17 + $0x74] sm:$0xf]
    %v6083 = vld [vmem:[#allocation17 + $0x78] sm:$0xf]
    %v6084 = vld [vmem:[#allocation17 + $0x7c] sm:$0xf]
    %v6085 = vld [vmem:[#allocation17 + $0x80] sm:$0xf]
    %v6086 = vld [vmem:[#allocation17 + $0x84] sm:$0xf]
    %v6087 = vld [vmem:[#allocation17 + $0x88] sm:$0xf]
    %v6088 = vld [vmem:[#allocation17 + $0x8c] sm:$0xf]
    %v6089 = vld [vmem:[#allocation17 + $0x90] sm:$0xf]
    %v6090 = vld [vmem:[#allocation17 + $0x94] sm:$0xf]
    %v6091 = vld [vmem:[#allocation17 + $0x98] sm:$0xf]
    %v6092 = vld [vmem:[#allocation17 + $0x9c] sm:$0xf]
    %v6093 = vld [vmem:[#allocation17 + $0xa0] sm:$0xf]
    %v6094 = vld [vmem:[#allocation17 + $0xa4] sm:$0xf]
    %v6095 = vld [vmem:[#allocation17 + $0xa8] sm:$0xf]
    %v6096 = vld [vmem:[#allocation17 + $0xac] sm:$0xf]
    %v6097 = vld [vmem:[#allocation17 + $0xb0] sm:$0xf]
    %v6098 = vld [vmem:[#allocation17 + $0xb4] sm:$0xf]
    %v6099 = vld [vmem:[#allocation17 + $0xb8] sm:$0xf]
    %v6100 = vld [vmem:[#allocation17 + $0xbc] sm:$0xf]
    %v6101 = vld [vmem:[#allocation17 + $0xc0] sm:$0xf]
    %v6102 = vld [vmem:[#allocation17 + $0xc4] sm:$0xf]
    %v6103 = vld [vmem:[#allocation17 + $0xc8] sm:$0xf]
    %v6104 = vld [vmem:[#allocation17 + $0xcc] sm:$0xf]
    %v6105 = vld [vmem:[#allocation17 + $0xd0] sm:$0xf]
    %v6106 = vld [vmem:[#allocation17 + $0xd4] sm:$0xf]
    %v6107 = vld [vmem:[#allocation17 + $0xd8] sm:$0xf]
    %v6108 = vld [vmem:[#allocation17 + $0xdc] sm:$0xf]
    %v6109 = vld [vmem:[#allocation17 + $0xe0] sm:$0xf]
    %v6110 = vld [vmem:[#allocation17 + $0xe4] sm:$0xf]
    %v6111 = vld [vmem:[#allocation17 + $0xe8] sm:$0xf]
    %v6112 = vld [vmem:[#allocation17 + $0xec] sm:$0xf]
    %v6113 = vld [vmem:[#allocation17 + $0xf0] sm:$0xf]
    %v6114 = vld [vmem:[#allocation17 + $0xf4] sm:$0xf]
    %v6115 = vld [vmem:[#allocation17 + $0xf8] sm:$0xf]
    %v6116 = vld [vmem:[#allocation17 + $0xfc] sm:$0xf]
    %v6117 = vld [vmem:[#allocation17 + $0x100] sm:$0xf]
    %v6118 = vld [vmem:[#allocation17 + $0x104] sm:$0xf]
    %v6119 = vld [vmem:[#allocation17 + $0x108] sm:$0xf]
    %v6120 = vld [vmem:[#allocation17 + $0x10c] sm:$0xf]
    %v6121 = vld [vmem:[#allocation17 + $0x110] sm:$0xf]
    %v6122 = vld [vmem:[#allocation17 + $0x114] sm:$0xf]
    %v6123 = vld [vmem:[#allocation17 + $0x118] sm:$0xf]
    %v6124 = vld [vmem:[#allocation17 + $0x11c] sm:$0xf]
    %v6125 = vld [vmem:[#allocation17 + $0x120] sm:$0xf]
    %v6126 = vld [vmem:[#allocation17 + $0x124] sm:$0xf]
    %v6127 = vld [vmem:[#allocation17 + $0x128] sm:$0xf]
    %v6128 = vld [vmem:[#allocation17 + $0x12c] sm:$0xf]
    %v6129 = vld [vmem:[#allocation17 + $0x130] sm:$0xf]
    %v6130 = vld [vmem:[#allocation17 + $0x134] sm:$0xf]
    %v6131 = vld [vmem:[#allocation17 + $0x138] sm:$0xf]
    %v6132 = vld [vmem:[#allocation17 + $0x13c] sm:$0xf]
    %v6133 = vld [vmem:[#allocation17 + $0x140] sm:$0xf]
    %v6134 = vld [vmem:[#allocation17 + $0x144] sm:$0xf]
    %v6135 = vld [vmem:[#allocation17 + $0x148] sm:$0xf]
    %v6136 = vld [vmem:[#allocation17 + $0x14c] sm:$0xf]
    %v6137 = vld [vmem:[#allocation17 + $0x150] sm:$0xf]
    %v6138 = vld [vmem:[#allocation17 + $0x154] sm:$0xf]
    %v6139 = vld [vmem:[#allocation17 + $0x158] sm:$0xf]
    %v6140 = vld [vmem:[#allocation17 + $0x15c] sm:$0xf]
    %v6141 = vld [vmem:[#allocation17 + $0x160] sm:$0xf]
    %v6142 = vld [vmem:[#allocation17 + $0x164] sm:$0xf]
    %v6143 = vld [vmem:[#allocation17 + $0x168] sm:$0xf]
    %v6144 = vld [vmem:[#allocation17 + $0x16c] sm:$0xf]
    %v6145 = vld [vmem:[#allocation17 + $0x170] sm:$0xf]
    %v6146 = vld [vmem:[#allocation17 + $0x174] sm:$0xf]
    %v6147 = vld [vmem:[#allocation17 + $0x178] sm:$0xf]
    %v6148 = vld [vmem:[#allocation17 + $0x17c] sm:$0xf]
    %v6149 = vld [vmem:[#allocation17 + $0x180] sm:$0xf]
    %v6150 = vld [vmem:[#allocation17 + $0x184] sm:$0xf]
    %v6151 = vld [vmem:[#allocation17 + $0x188] sm:$0xf]
    %v6152 = vld [vmem:[#allocation17 + $0x18c] sm:$0xf]
    %v6153 = vld [vmem:[#allocation17 + $0x190] sm:$0xf]
    %v6154 = vld [vmem:[#allocation17 + $0x194] sm:$0xf]
    %v6155 = vld [vmem:[#allocation17 + $0x198] sm:$0xf]
    %v6156 = vld [vmem:[#allocation17 + $0x19c] sm:$0xf]
    %v6157 = vld [vmem:[#allocation17 + $0x1a0] sm:$0xf]
    %v6158 = vld [vmem:[#allocation17 + $0x1a4] sm:$0xf]
    %v6159 = vld [vmem:[#allocation17 + $0x1a8] sm:$0xf]
    %v6160 = vld [vmem:[#allocation17 + $0x1ac] sm:$0xf]
    %v6161 = vld [vmem:[#allocation17 + $0x1b0] sm:$0xf]
    %v6162 = vld [vmem:[#allocation17 + $0x1b4] sm:$0xf]
    %v6163 = vld [vmem:[#allocation17 + $0x1b8] sm:$0xf]
    %v6164 = vld [vmem:[#allocation17 + $0x1bc] sm:$0xf]
    %v6165 = vld [vmem:[#allocation17 + $0x1c0] sm:$0xf]
    %v6166 = vld [vmem:[#allocation17 + $0x1c4] sm:$0xf]
    %v6167 = vld [vmem:[#allocation17 + $0x1c8] sm:$0xf]
    %v6168 = vld [vmem:[#allocation17 + $0x1cc] sm:$0xf]
    %v6169 = vld [vmem:[#allocation17 + $0x1d0] sm:$0xf]
    %v6170 = vld [vmem:[#allocation17 + $0x1d4] sm:$0xf]
    %v6171 = vld [vmem:[#allocation17 + $0x1d8] sm:$0xf]
    %v6172 = vld [vmem:[#allocation17 + $0x1dc] sm:$0xf]
    %v6173 = vld [vmem:[#allocation17 + $0x1e0] sm:$0xf]
    %v6174 = vld [vmem:[#allocation17 + $0x1e4] sm:$0xf]
    %v6175 = vld [vmem:[#allocation17 + $0x1e8] sm:$0xf]
    %v6176 = vld [vmem:[#allocation17 + $0x1ec] sm:$0xf]
    %v6177 = vld [vmem:[#allocation17 + $0x1f0] sm:$0xf]
    %v6178 = vld [vmem:[#allocation17 + $0x1f4] sm:$0xf]
    %v6179 = vld [vmem:[#allocation17 + $0x1f8] sm:$0xf]
    %v6180 = vld [vmem:[#allocation17 + $0x1fc] sm:$0xf]
    %v6181 = vld [vmem:[#allocation18] sm:$0x1]
    %v6183 = vperm.slane %v6181, 0
    %v6313 = vunpack.c.l.b16 %v6053
    %v6314 = vunpack.c.l.b16 %v6054
    %v6315 = vunpack.c.l.b16 %v6055
    %v6316 = vunpack.c.l.b16 %v6056
    %v6317 = vunpack.c.l.b16 %v6057
    %v6318 = vunpack.c.l.b16 %v6058
    %v6319 = vunpack.c.l.b16 %v6059
    %v6320 = vunpack.c.l.b16 %v6060
    %v6321 = vunpack.c.l.b16 %v6061
    %v6322 = vunpack.c.l.b16 %v6062
    %v6323 = vunpack.c.l.b16 %v6063
    %v6324 = vunpack.c.l.b16 %v6064
    %v6325 = vunpack.c.l.b16 %v6065
    %v6326 = vunpack.c.l.b16 %v6066
    %v6327 = vunpack.c.l.b16 %v6067
    %v6328 = vunpack.c.l.b16 %v6068
    %v6329 = vunpack.c.l.b16 %v6069
    %v6330 = vunpack.c.l.b16 %v6070
    %v6331 = vunpack.c.l.b16 %v6071
    %v6332 = vunpack.c.l.b16 %v6072
    %v6333 = vunpack.c.l.b16 %v6073
    %v6334 = vunpack.c.l.b16 %v6074
    %v6335 = vunpack.c.l.b16 %v6075
    %v6336 = vunpack.c.l.b16 %v6076
    %v6337 = vunpack.c.l.b16 %v6077
    %v6338 = vunpack.c.l.b16 %v6078
    %v6339 = vunpack.c.l.b16 %v6079
    %v6340 = vunpack.c.l.b16 %v6080
    %v6341 = vunpack.c.l.b16 %v6081
    %v6342 = vunpack.c.l.b16 %v6082
    %v6343 = vunpack.c.l.b16 %v6083
    %v6344 = vunpack.c.l.b16 %v6084
    %v6345 = vunpack.c.l.b16 %v6085
    %v6346 = vunpack.c.l.b16 %v6086
    %v6347 = vunpack.c.l.b16 %v6087
    %v6348 = vunpack.c.l.b16 %v6088
    %v6349 = vunpack.c.l.b16 %v6089
    %v6350 = vunpack.c.l.b16 %v6090
    %v6351 = vunpack.c.l.b16 %v6091
    %v6352 = vunpack.c.l.b16 %v6092
    %v6353 = vunpack.c.l.b16 %v6093
    %v6354 = vunpack.c.l.b16 %v6094
    %v6355 = vunpack.c.l.b16 %v6095
    %v6356 = vunpack.c.l.b16 %v6096
    %v6357 = vunpack.c.l.b16 %v6097
    %v6358 = vunpack.c.l.b16 %v6098
    %v6359 = vunpack.c.l.b16 %v6099
    %v6360 = vunpack.c.l.b16 %v6100
    %v6361 = vunpack.c.l.b16 %v6101
    %v6362 = vunpack.c.l.b16 %v6102
    %v6363 = vunpack.c.l.b16 %v6103
    %v6364 = vunpack.c.l.b16 %v6104
    %v6365 = vunpack.c.l.b16 %v6105
    %v6366 = vunpack.c.l.b16 %v6106
    %v6367 = vunpack.c.l.b16 %v6107
    %v6368 = vunpack.c.l.b16 %v6108
    %v6369 = vunpack.c.l.b16 %v6109
    %v6370 = vunpack.c.l.b16 %v6110
    %v6371 = vunpack.c.l.b16 %v6111
    %v6372 = vunpack.c.l.b16 %v6112
    %v6373 = vunpack.c.l.b16 %v6113
    %v6374 = vunpack.c.l.b16 %v6114
    %v6375 = vunpack.c.l.b16 %v6115
    %v6376 = vunpack.c.l.b16 %v6116
    %v6377 = vunpack.c.l.b16 %v6117
    %v6378 = vunpack.c.l.b16 %v6118
    %v6379 = vunpack.c.l.b16 %v6119
    %v6380 = vunpack.c.l.b16 %v6120
    %v6381 = vunpack.c.l.b16 %v6121
    %v6382 = vunpack.c.l.b16 %v6122
    %v6383 = vunpack.c.l.b16 %v6123
    %v6384 = vunpack.c.l.b16 %v6124
    %v6385 = vunpack.c.l.b16 %v6125
    %v6386 = vunpack.c.l.b16 %v6126
    %v6387 = vunpack.c.l.b16 %v6127
    %v6388 = vunpack.c.l.b16 %v6128
    %v6389 = vunpack.c.l.b16 %v6129
    %v6390 = vunpack.c.l.b16 %v6130
    %v6391 = vunpack.c.l.b16 %v6131
    %v6392 = vunpack.c.l.b16 %v6132
    %v6393 = vunpack.c.l.b16 %v6133
    %v6394 = vunpack.c.l.b16 %v6134
    %v6395 = vunpack.c.l.b16 %v6135
    %v6396 = vunpack.c.l.b16 %v6136
    %v6397 = vunpack.c.l.b16 %v6137
    %v6398 = vunpack.c.l.b16 %v6138
    %v6399 = vunpack.c.l.b16 %v6139
    %v6400 = vunpack.c.l.b16 %v6140
    %v6401 = vunpack.c.l.b16 %v6141
    %v6402 = vunpack.c.l.b16 %v6142
    %v6403 = vunpack.c.l.b16 %v6143
    %v6404 = vunpack.c.l.b16 %v6144
    %v6405 = vunpack.c.l.b16 %v6145
    %v6406 = vunpack.c.l.b16 %v6146
    %v6407 = vunpack.c.l.b16 %v6147
    %v6408 = vunpack.c.l.b16 %v6148
    %v6409 = vunpack.c.l.b16 %v6149
    %v6410 = vunpack.c.l.b16 %v6150
    %v6411 = vunpack.c.l.b16 %v6151
    %v6412 = vunpack.c.l.b16 %v6152
    %v6413 = vunpack.c.l.b16 %v6153
    %v6414 = vunpack.c.l.b16 %v6154
    %v6415 = vunpack.c.l.b16 %v6155
    %v6416 = vunpack.c.l.b16 %v6156
    %v6417 = vunpack.c.l.b16 %v6157
    %v6418 = vunpack.c.l.b16 %v6158
    %v6419 = vunpack.c.l.b16 %v6159
    %v6420 = vunpack.c.l.b16 %v6160
    %v6421 = vunpack.c.l.b16 %v6161
    %v6422 = vunpack.c.l.b16 %v6162
    %v6423 = vunpack.c.l.b16 %v6163
    %v6424 = vunpack.c.l.b16 %v6164
    %v6425 = vunpack.c.l.b16 %v6165
    %v6426 = vunpack.c.l.b16 %v6166
    %v6427 = vunpack.c.l.b16 %v6167
    %v6428 = vunpack.c.l.b16 %v6168
    %v6429 = vunpack.c.l.b16 %v6169
    %v6430 = vunpack.c.l.b16 %v6170
    %v6431 = vunpack.c.l.b16 %v6171
    %v6432 = vunpack.c.l.b16 %v6172
    %v6433 = vunpack.c.l.b16 %v6173
    %v6434 = vunpack.c.l.b16 %v6174
    %v6435 = vunpack.c.l.b16 %v6175
    %v6436 = vunpack.c.l.b16 %v6176
    %v6437 = vunpack.c.l.b16 %v6177
    %v6438 = vunpack.c.l.b16 %v6178
    %v6439 = vunpack.c.l.b16 %v6179
    %v6440 = vunpack.c.l.b16 %v6180
    %v6441 = vpack.c.b16 %v6314, %v6313
    %v6442 = vpack.c.b16 %v6316, %v6315
    %v6443 = vpack.c.b16 %v6318, %v6317
    %v6444 = vpack.c.b16 %v6320, %v6319
    %v6445 = vpack.c.b16 %v6322, %v6321
    %v6446 = vpack.c.b16 %v6324, %v6323
    %v6447 = vpack.c.b16 %v6326, %v6325
    %v6448 = vpack.c.b16 %v6328, %v6327
    %v6449 = vpack.c.b16 %v6330, %v6329
    %v6450 = vpack.c.b16 %v6332, %v6331
    %v6451 = vpack.c.b16 %v6334, %v6333
    %v6452 = vpack.c.b16 %v6336, %v6335
    %v6453 = vpack.c.b16 %v6338, %v6337
    %v6454 = vpack.c.b16 %v6340, %v6339
    %v6455 = vpack.c.b16 %v6342, %v6341
    %v6456 = vpack.c.b16 %v6344, %v6343
    %v6457 = vpack.c.b16 %v6346, %v6345
    %v6458 = vpack.c.b16 %v6348, %v6347
    %v6459 = vpack.c.b16 %v6350, %v6349
    %v6460 = vpack.c.b16 %v6352, %v6351
    %v6461 = vpack.c.b16 %v6354, %v6353
    %v6462 = vpack.c.b16 %v6356, %v6355
    %v6463 = vpack.c.b16 %v6358, %v6357
    %v6464 = vpack.c.b16 %v6360, %v6359
    %v6465 = vpack.c.b16 %v6362, %v6361
    %v6466 = vpack.c.b16 %v6364, %v6363
    %v6467 = vpack.c.b16 %v6366, %v6365
    %v6468 = vpack.c.b16 %v6368, %v6367
    %v6469 = vpack.c.b16 %v6370, %v6369
    %v6470 = vpack.c.b16 %v6372, %v6371
    %v6471 = vpack.c.b16 %v6374, %v6373
    %v6472 = vpack.c.b16 %v6376, %v6375
    %v6473 = vpack.c.b16 %v6378, %v6377
    %v6474 = vpack.c.b16 %v6380, %v6379
    %v6475 = vpack.c.b16 %v6382, %v6381
    %v6476 = vpack.c.b16 %v6384, %v6383
    %v6477 = vpack.c.b16 %v6386, %v6385
    %v6478 = vpack.c.b16 %v6388, %v6387
    %v6479 = vpack.c.b16 %v6390, %v6389
    %v6480 = vpack.c.b16 %v6392, %v6391
    %v6481 = vpack.c.b16 %v6394, %v6393
    %v6482 = vpack.c.b16 %v6396, %v6395
    %v6483 = vpack.c.b16 %v6398, %v6397
    %v6484 = vpack.c.b16 %v6400, %v6399
    %v6485 = vpack.c.b16 %v6402, %v6401
    %v6486 = vpack.c.b16 %v6404, %v6403
    %v6487 = vpack.c.b16 %v6406, %v6405
    %v6488 = vpack.c.b16 %v6408, %v6407
    %v6489 = vpack.c.b16 %v6410, %v6409
    %v6490 = vpack.c.b16 %v6412, %v6411
    %v6491 = vpack.c.b16 %v6414, %v6413
    %v6492 = vpack.c.b16 %v6416, %v6415
    %v6493 = vpack.c.b16 %v6418, %v6417
    %v6494 = vpack.c.b16 %v6420, %v6419
    %v6495 = vpack.c.b16 %v6422, %v6421
    %v6496 = vpack.c.b16 %v6424, %v6423
    %v6497 = vpack.c.b16 %v6426, %v6425
    %v6498 = vpack.c.b16 %v6428, %v6427
    %v6499 = vpack.c.b16 %v6430, %v6429
    %v6500 = vpack.c.b16 %v6432, %v6431
    %v6501 = vpack.c.b16 %v6434, %v6433
    %v6502 = vpack.c.b16 %v6436, %v6435
    %v6503 = vpack.c.b16 %v6438, %v6437
    %v6504 = vpack.c.b16 %v6440, %v6439
    %6569 = vmatpush.bf16.msra.mxu0 %v6448
    %6570 = vmatpush.bf16.msra.mxu0 %v6447
    %6571 = vmatpush.bf16.msra.mxu0 %v6446
    %6572 = vmatpush.bf16.msra.mxu0 %v6445
    %6573 = vmatpush.bf16.msra.mxu0 %v6444
    %6574 = vmatpush.bf16.msra.mxu0 %v6443
    %6575 = vmatpush.bf16.msra.mxu0 %v6442
    %6576 = vmatpush.bf16.msra.mxu0 %v6441
    %6577 = vmatmul.bf16.gmra.mxu0 %v6045
    %v6578 = vpop.f32.mrf.mxu0
    %v6579 = vadd.f32 %v6183, %v6578
    %v6580 = vpop.f32.mrf.mxu0
    %6581 = vdwg.mxu0
    %6582 = vmatpush.bf16.msra.mxu0 %v6456
    %6583 = vmatpush.bf16.msra.mxu0 %v6455
    %6584 = vmatpush.bf16.msra.mxu0 %v6454
    %6585 = vmatpush.bf16.msra.mxu0 %v6453
    %6586 = vmatpush.bf16.msra.mxu0 %v6452
    %6587 = vmatpush.bf16.msra.mxu0 %v6451
    %6588 = vmatpush.bf16.msra.mxu0 %v6450
    %6589 = vmatpush.bf16.msra.mxu0 %v6449
    %6590 = vmatmul.bf16.gmra.mxu0 %v6046
    %v6591 = vpop.f32.mrf.mxu0
    %v6592 = vadd.f32 %v6579, %v6591
    %v6593 = vpop.f32.mrf.mxu0
    %6594 = vdwg.mxu0
    %6595 = vmatpush.bf16.msra.mxu0 %v6464
    %6596 = vmatpush.bf16.msra.mxu0 %v6463
    %6597 = vmatpush.bf16.msra.mxu0 %v6462
    %6598 = vmatpush.bf16.msra.mxu0 %v6461
    %6599 = vmatpush.bf16.msra.mxu0 %v6460
    %6600 = vmatpush.bf16.msra.mxu0 %v6459
    %6601 = vmatpush.bf16.msra.mxu0 %v6458
    %6602 = vmatpush.bf16.msra.mxu0 %v6457
    %6603 = vmatmul.bf16.gmra.mxu0 %v6047
    %v6604 = vpop.f32.mrf.mxu0
    %v6605 = vadd.f32 %v6592, %v6604
    %v6606 = vpop.f32.mrf.mxu0
    %6607 = vdwg.mxu0
    %6608 = vmatpush.bf16.msra.mxu0 %v6472
    %6609 = vmatpush.bf16.msra.mxu0 %v6471
    %6610 = vmatpush.bf16.msra.mxu0 %v6470
    %6611 = vmatpush.bf16.msra.mxu0 %v6469
    %6612 = vmatpush.bf16.msra.mxu0 %v6468
    %6613 = vmatpush.bf16.msra.mxu0 %v6467
    %6614 = vmatpush.bf16.msra.mxu0 %v6466
    %6615 = vmatpush.bf16.msra.mxu0 %v6465
    %6616 = vmatmul.bf16.gmra.mxu0 %v6048
    %v6617 = vpop.f32.mrf.mxu0
    %v6618 = vadd.f32 %v6605, %v6617
    %v6619 = vpop.f32.mrf.mxu0
    %6620 = vdwg.mxu0
    %6621 = vmatpush.bf16.msra.mxu0 %v6480
    %6622 = vmatpush.bf16.msra.mxu0 %v6479
    %6623 = vmatpush.bf16.msra.mxu0 %v6478
    %6624 = vmatpush.bf16.msra.mxu0 %v6477
    %6625 = vmatpush.bf16.msra.mxu0 %v6476
    %6626 = vmatpush.bf16.msra.mxu0 %v6475
    %6627 = vmatpush.bf16.msra.mxu0 %v6474
    %6628 = vmatpush.bf16.msra.mxu0 %v6473
    %6629 = vmatmul.bf16.gmra.mxu0 %v6049
    %v6630 = vpop.f32.mrf.mxu0
    %v6631 = vadd.f32 %v6618, %v6630
    %v6632 = vpop.f32.mrf.mxu0
    %6633 = vdwg.mxu0
    %6634 = vmatpush.bf16.msra.mxu0 %v6488
    %6635 = vmatpush.bf16.msra.mxu0 %v6487
    %6636 = vmatpush.bf16.msra.mxu0 %v6486
    %6637 = vmatpush.bf16.msra.mxu0 %v6485
    %6638 = vmatpush.bf16.msra.mxu0 %v6484
    %6639 = vmatpush.bf16.msra.mxu0 %v6483
    %6640 = vmatpush.bf16.msra.mxu0 %v6482
    %6641 = vmatpush.bf16.msra.mxu0 %v6481
    %6642 = vmatmul.bf16.gmra.mxu0 %v6050
    %v6643 = vpop.f32.mrf.mxu0
    %v6644 = vadd.f32 %v6631, %v6643
    %v6645 = vpop.f32.mrf.mxu0
    %6646 = vdwg.mxu0
    %6647 = vmatpush.bf16.msra.mxu0 %v6496
    %6648 = vmatpush.bf16.msra.mxu0 %v6495
    %6649 = vmatpush.bf16.msra.mxu0 %v6494
    %6650 = vmatpush.bf16.msra.mxu0 %v6493
    %6651 = vmatpush.bf16.msra.mxu0 %v6492
    %6652 = vmatpush.bf16.msra.mxu0 %v6491
    %6653 = vmatpush.bf16.msra.mxu0 %v6490
    %6654 = vmatpush.bf16.msra.mxu0 %v6489
    %6655 = vmatmul.bf16.gmra.mxu0 %v6051
    %v6656 = vpop.f32.mrf.mxu0
    %v6657 = vadd.f32 %v6644, %v6656
    %v6658 = vpop.f32.mrf.mxu0
    %6659 = vdwg.mxu0
    %6660 = vmatpush.bf16.msra.mxu0 %v6504
    %6661 = vmatpush.bf16.msra.mxu0 %v6503
    %6662 = vmatpush.bf16.msra.mxu0 %v6502
    %6663 = vmatpush.bf16.msra.mxu0 %v6501
    %6664 = vmatpush.bf16.msra.mxu0 %v6500
    %6665 = vmatpush.bf16.msra.mxu0 %v6499
    %6666 = vmatpush.bf16.msra.mxu0 %v6498
    %6667 = vmatpush.bf16.msra.mxu0 %v6497
    %6668 = vmatmul.bf16.gmra.mxu0 %v6052
    %v6669 = vpop.f32.mrf.mxu0
    %v6670 = vadd.f32 %v6657, %v6669
    %v6671 = vpop.f32.mrf.mxu0
    %6672 = vdwg.mxu0
    %6673 = vst [vmem:[%s9] sm:$0xff] %v6670
    // Predicated region
    $region70: #{smallnet_forward.1} parent=1 // pred_check
      _
    $region71: #{smallnet_forward.1} parent=1 // pred_check_branch
      %6675 = sbr.rel (0) target = $region73
    $region72: #{smallnet_forward.1} parent=1 // pred_region
      _
    $region73: #{smallnet_forward.1} parent=1 // pred_fallthru
      _
    // Predicated region
    $region74: #{smallnet_forward.1} parent=1 // pred_check
      _
    $region75: #{smallnet_forward.1} parent=1 // pred_check_branch
      %6677 = sbr.rel (0) target = $region77
    $region76: #{smallnet_forward.1} parent=1 // pred_region
      _
    $region77: #{smallnet_forward.1} parent=1 // pred_fallthru
      _
    %6678 = vsyncpa [#allocation8], 1
    %6679 = vsyncpa [#allocation10], 1
    %6680 = vsyncpa [#allocation13], 1
    %6681 = vsyncpa [#allocation16], 1
    %6682 = vsyncpa [#allocation19], 1

</llo_original>
